<compile_context>
chip_gen: v5e
topology: v5e:2x2
jax: 0.10.0
libtpu: 0.0.40
codegen_flags: <defaults>
</compile_context>

<pallas_src>
import functools

import jax
import jax.numpy as jnp
from jax.experimental import pallas as pl
from jax.experimental.pallas import tpu as pltpu


_VMEM_LIMIT = 32 * 1024 * 1024


# ----------------------------------------------------------------------------- helpers
def _round_up(n, m):
    return ((n + m - 1) // m) * m


def _pad_to(a, shape):
    return jnp.pad(a, [(0, s - d) for d, s in zip(a.shape, shape)])


def _layer_norm(x, gamma, beta, n_valid, eps=1e-5):
    """LayerNorm over the last (lane) axis; only the first n_valid lanes are real.

    Padded lanes of x are zero on entry and zero on exit (gamma/beta padded with 0).
    """
    lane = jax.lax.broadcasted_iota(jnp.int32, x.shape, x.ndim - 1)
    mask = lane < n_valid
    mean = jnp.sum(x, axis=-1, keepdims=True) / n_valid
    xc = jnp.where(mask, x - mean, 0.0)
    var = jnp.sum(xc * xc, axis=-1, keepdims=True) / n_valid
    inv = jax.lax.rsqrt(var + eps)
    return xc * inv * gamma + beta


# ----------------------------------------------------------------------------- fused kernel
def _make_fused_kernel(*, S, Sp, T, B, Cp, n_blocks, compute_dtype):
    """Whole forward for the padded model: (B*T, Sp) activations -> (B, Cp) logits."""
    scale = 1.0 / (S ** 0.5)               # head_size == n_embd (n_head = 1)
    n_per_block = 11

    def kernel(x_ref, pos_ref, *refs):
        blk_refs = refs[: n_blocks * n_per_block]
        lnf_g, lnf_b, w3_ref, bh_ref, o_ref = refs[n_blocks * n_per_block:]

        # Positional embedding fused into the kernel (added once, no per-block zeros DMA).
        x = x_ref[...] + pos_ref[...]                                   # (B*T, Sp) f32

        for i in range(n_blocks):                                       # n_blocks is static
            (g1, b1, wqkv, wp, bp, g2, b2, w1, bh1, w2, bh2) = \
                blk_refs[i * n_per_block:(i + 1) * n_per_block]

            # ---- LayerNorm 1 + single-head self-attention (head_size == S) ----
            xn = _layer_norm(x, g1[...], b1[...], S)
            qkv = jnp.dot(xn.astype(compute_dtype), wqkv[...],
                          preferred_element_type=jnp.float32)           # (B*T, 3*Sp), M=B*T
            q = qkv[:, :Sp]
            k = qkv[:, Sp:2 * Sp]
            v = qkv[:, 2 * Sp:3 * Sp]

            attn_rows = []
            for b in range(B):                 # tiny (T,T) step per batch row (B static)
                rs = slice(b * T, (b + 1) * T)
                qb = q[rs].astype(compute_dtype)                        # (T, Sp)
                kb = k[rs].astype(compute_dtype)
                vb = v[rs].astype(compute_dtype)
                s = jax.lax.dot_general(qb, kb, (((1,), (1,)), ((), ())),
                                        preferred_element_type=jnp.float32) * scale
                m = jnp.max(s, axis=-1, keepdims=True)
                e = jnp.exp(s - m)
                inv = pl.reciprocal(jnp.sum(e, axis=-1, keepdims=True), approx=True)
                pr = (e * inv).astype(compute_dtype)                    # softmax probs
                attn_rows.append(jnp.dot(pr, vb,
                                         preferred_element_type=jnp.float32))  # (T, Sp)
            attn = jnp.concatenate(attn_rows, axis=0)                   # (B*T, Sp) f32

            sa = jnp.dot(attn.astype(compute_dtype), wp[...],
                         preferred_element_type=jnp.float32) + bp[...]
            x = x + sa                                                  # residual 1

            # ---- LayerNorm 2 + FeedForward (Linear -> ReLU -> Linear) ----
            xn2 = _layer_norm(x, g2[...], b2[...], S)
            h = jnp.dot(xn2.astype(compute_dtype), w1[...],
                        preferred_element_type=jnp.float32) + bh1[...]
            h = jnp.maximum(h, 0.0)                                     # ReLU in f32
            f = jnp.dot(h.astype(compute_dtype), w2[...],
                        preferred_element_type=jnp.float32) + bh2[...]
            x = x + f                                                   # residual 2

        # ---- final LayerNorm + flatten(T*S) + lm_head ----
        xn = _layer_norm(x, lnf_g[...], lnf_b[...], S)                  # (B*T, Sp)
        # One MXU contraction chain against the time-concatenated lm_head weight:
        #   p[b*T+t, t'*Cp+c] = sum_s xn[b,t,s] * W_head[t'*S+s, c]
        p = jnp.dot(xn.astype(compute_dtype), w3_ref[...],
                    preferred_element_type=jnp.float32)                 # (B*T, T*Cp)
        # Select the matching time chunk per row (block diagonal) and reduce over T.
        rows = []
        for b in range(B):
            r = jnp.zeros((1, Cp), jnp.float32)
            for t in range(T):
                r = r + p[b * T + t:b * T + t + 1, t * Cp:(t + 1) * Cp]
            rows.append(r)
        logits = jnp.concatenate(rows, axis=0) + bh_ref[...]            # (B, Cp)
        o_ref[...] = logits.astype(o_ref.dtype)

    return kernel


def _fused_forward(x2, pos2, pp, *, n_embd, B, T):
    _, Sp = x2.shape
    blocks = pp["blocks"]
    n_blocks = len(blocks)
    Cp = pp["bh"].shape[1]
    cdt = blocks[0]["wqkv"].dtype

    kernel = _make_fused_kernel(S=n_embd, Sp=Sp, T=T, B=B, Cp=Cp,
                                n_blocks=n_blocks, compute_dtype=cdt)

    block_keys = ("g1", "b1", "wqkv", "wp", "bp", "g2", "b2", "w1", "bh1", "w2", "bh2")
    inputs = [x2, pos2]
    for blk in blocks:
        inputs.extend(blk[k] for k in block_keys)
    inputs.extend([pp["lnf_g"], pp["lnf_b"], pp["w3cat"], pp["bh"]])

    def full_spec(a):
        return pl.BlockSpec(a.shape, lambda i, _n=a.ndim: (0,) * _n)

    return pl.pallas_call(
        kernel,
        out_shape=jax.ShapeDtypeStruct((B, Cp), jnp.float32),
        grid_spec=pltpu.PrefetchScalarGridSpec(
            num_scalar_prefetch=0,
            grid=(1,),                                     # whole model, single launch
            in_specs=[full_spec(a) for a in inputs],
            out_specs=pl.BlockSpec((B, Cp), lambda i: (0, 0)),
        ),
        compiler_params=pltpu.CompilerParams(
            dimension_semantics=("arbitrary",),            # no megacore split at this size
            vmem_limit_bytes=_VMEM_LIMIT,
        ),
    )(*inputs)


@functools.partial(jax.jit, static_argnames=("num_classes",))
def microtransformer_forward(x, pp, *, num_classes):
    """x: (B, T, S) float32 -> logits (B, num_classes) float32."""
    B, T, S = x.shape
    Sp = pp["blocks"][0]["wp"].shape[0]
    x2 = _pad_to(x, (B, T, Sp)).reshape(B * T, Sp)         # lane-dense, batch folded into M
    pos2 = jnp.tile(pp["pos"], (B, 1))                     # (B*T, Sp), tiny, fused under jit
    logits_p = _fused_forward(x2, pos2, pp, n_embd=S, B=B, T=T)
    return logits_p[:, :num_classes]


# ----------------------------------------------------------------------------- params
def init_params(key, sensor_size, context_size, num_classes, n_blocks):
    """Unpadded f32 params; linear weights stored (in_features, out_features)."""
    S, T = sensor_size, context_size
    H = 8 * S
    kpos, khead, *kblocks = jax.random.split(key, 2 + n_blocks)

    def linear_init(k, fan_in, shape):
        lim = 1.0 / (fan_in ** 0.5)
        return jax.random.uniform(k, shape, jnp.float32, -lim, lim)

    blocks = []
    for kb in kblocks:
        ks = jax.random.split(kb, 9)
        std = (2.0 / S) ** 0.5               # kaiming-normal-ish
        blocks.append(dict(
            ln1_g=jnp.ones((S,), jnp.float32), ln1_b=jnp.zeros((S,), jnp.float32),
            wq=std * jax.random.normal(ks[0], (S, S), jnp.float32),
            wk=std * jax.random.normal(ks[1], (S, S), jnp.float32),
            wv=std * jax.random.normal(ks[2], (S, S), jnp.float32),
            w_proj=linear_init(ks[3], S, (S, S)),
            b_proj=linear_init(ks[4], S, (S,)),
            ln2_g=jnp.ones((S,), jnp.float32), ln2_b=jnp.zeros((S,), jnp.float32),
            w1=linear_init(ks[5], S, (S, H)), b1=linear_init(ks[6], S, (H,)),
            w2=linear_init(ks[7], H, (H, S)), b2=linear_init(ks[8], H, (S,)),
        ))
    khw, khb = jax.random.split(khead)
    return dict(
        pos_emb=jax.random.normal(kpos, (T, S), jnp.float32),
        blocks=blocks,
        lnf_g=jnp.ones((S,), jnp.float32), lnf_b=jnp.zeros((S,), jnp.float32),
        w_head=linear_init(khw, S * T, (S * T, num_classes)),
        b_head=linear_init(khb, S * T, (num_classes,)),
    )


def prepare_padded_params(params, compute_dtype=jnp.bfloat16):
    """Zero-pad channel axes to multiples of 128 (lane-dense), cast matmul weights to bf16.

    Returned pytree contains ONLY arrays (jit-friendly).
    """
    T, S = params["pos_emb"].shape
    num_classes = params["w_head"].shape[1]
    H = 8 * S
    Sp, Hp, Cp = _round_up(S, 128), _round_up(H, 128), _round_up(num_classes, 128)

    def padw(a, shape):                      # matmul operand -> bf16
        return _pad_to(a, shape).astype(compute_dtype)

    def padv(a, shape):                      # bias / LN param -> f32
        return _pad_to(a, shape).astype(jnp.float32)

    blocks = []
    for blk in params["blocks"]:
        wqkv = jnp.concatenate(
            [_pad_to(blk["wq"], (Sp, Sp)), _pad_to(blk["wk"], (Sp, Sp)),
             _pad_to(blk["wv"], (Sp, Sp))], axis=1).astype(compute_dtype)
        blocks.append(dict(
            g1=padv(blk["ln1_g"].reshape(1, S), (1, Sp)),
            b1=padv(blk["ln1_b"].reshape(1, S), (1, Sp)),
            wqkv=wqkv,
            wp=padw(blk["w_proj"], (Sp, Sp)),
            bp=padv(blk["b_proj"].reshape(1, S), (1, Sp)),
            g2=padv(blk["ln2_g"].reshape(1, S), (1, Sp)),
            b2=padv(blk["ln2_b"].reshape(1, S), (1, Sp)),
            w1=padw(blk["w1"], (Sp, Hp)),
            bh1=padv(blk["b1"].reshape(1, H), (1, Hp)),
            w2=padw(blk["w2"], (Hp, Sp)),
            bh2=padv(blk["b2"].reshape(1, S), (1, Sp)),
        ))
    # lm_head weight: flatten order is (t, s) -> pad -> time-concatenated lane-dense slab:
    #   w3cat[s, t*Cp + c] = W_head[t*S + s, c]
    w3 = _pad_to(params["w_head"].reshape(T, S, num_classes), (T, Sp, Cp))
    w3cat = jnp.transpose(w3, (1, 0, 2)).reshape(Sp, T * Cp).astype(compute_dtype)
    return dict(
        pos=padv(params["pos_emb"], (T, Sp)),
        blocks=blocks,
        lnf_g=padv(params["lnf_g"].reshape(1, S), (1, Sp)),
        lnf_b=padv(params["lnf_b"].reshape(1, S), (1, Sp)),
        w3cat=w3cat,
        bh=padv(params["b_head"].reshape(1, num_classes), (1, Cp)),
    )


# ----------------------------------------------------------------------------- pure-JAX reference
def reference_forward(x, params, compute_dtype=jnp.bfloat16):
    """Mirrors the kernel math (bf16 matmuls, f32 accumulation / elementwise)."""
    f32 = jnp.float32

    def ln(v, g, b, eps=1e-5):
        m = jnp.mean(v, axis=-1, keepdims=True)
        var = jnp.mean((v - m) ** 2, axis=-1, keepdims=True)
        return (v - m) * jax.lax.rsqrt(var + eps) * g + b

    def mm(a, w):
        return jnp.dot(a.astype(compute_dtype), w.astype(compute_dtype),
                       preferred_element_type=f32)

    B, T, S = x.shape
    h = x + params["pos_emb"][None]
    for blk in params["blocks"]:
        xn = ln(h, blk["ln1_g"], blk["ln1_b"])
        q, k, v = mm(xn, blk["wq"]), mm(xn, blk["wk"]), mm(xn, blk["wv"])
        scores = jnp.einsum("btd,bsd->bts", q.astype(compute_dtype),
                            k.astype(compute_dtype),
                            preferred_element_type=f32) / (S ** 0.5)
        m = jnp.max(scores, axis=-1, keepdims=True)
        e = jnp.exp(scores - m)
        probs = e / jnp.sum(e, axis=-1, keepdims=True)
        attn = jnp.einsum("bts,bsd->btd", probs.astype(compute_dtype),
                          v.astype(compute_dtype), preferred_element_type=f32)
        h = h + (mm(attn, blk["w_proj"]) + blk["b_proj"])
        xn2 = ln(h, blk["ln2_g"], blk["ln2_b"])
        hid = jnp.maximum(mm(xn2, blk["w1"]) + blk["b1"], 0.0)
        h = h + (mm(hid, blk["w2"]) + blk["b2"])
    hn = ln(h, params["lnf_g"], params["lnf_b"])
    flat = hn.reshape(B, T * S)
    return mm(flat, params["w_head"]) + params["b_head"]


# ----------------------------------------------------------------------------- main
if __name__ == "__main__":
    key = jax.random.PRNGKey(0)
    kx, kp = jax.random.split(key)

    B, T, S = 2, 8, 32                      # batch, context_size, sensor_size
    num_classes, n_blocks = 4, 2

    x = jax.random.normal(kx, (B, T, S), jnp.float32)
    params = init_params(kp, S, T, num_classes, n_blocks)
    padded = prepare_padded_params(params, compute_dtype=jnp.bfloat16)

    logits = microtransformer_forward(x, padded, num_classes=num_classes)
    logits = jax.block_until_ready(logits)

    ref = reference_forward(x, params, compute_dtype=jnp.bfloat16)
    assert logits.shape == (B, num_classes)
    max_err = float(jnp.max(jnp.abs(logits - ref)))
    assert jnp.allclose(logits, ref, atol=1e-2, rtol=1e-2), f"max abs err {max_err}"

    print("KERNEL_OK")
</pallas_src>

<mosaic_0001>
module attributes {stable_mosaic.version = 11 : i64} {
  func.func @kernel(%arg0: i32, %arg1: memref<16x128xf32, #tpu.memory_space<vmem>>, %arg2: memref<16x128xf32, #tpu.memory_space<vmem>>, %arg3: memref<1x128xf32, #tpu.memory_space<vmem>>, %arg4: memref<1x128xf32, #tpu.memory_space<vmem>>, %arg5: memref<128x384xbf16, #tpu.memory_space<vmem>>, %arg6: memref<128x128xbf16, #tpu.memory_space<vmem>>, %arg7: memref<1x128xf32, #tpu.memory_space<vmem>>, %arg8: memref<1x128xf32, #tpu.memory_space<vmem>>, %arg9: memref<1x128xf32, #tpu.memory_space<vmem>>, %arg10: memref<128x256xbf16, #tpu.memory_space<vmem>>, %arg11: memref<1x256xf32, #tpu.memory_space<vmem>>, %arg12: memref<256x128xbf16, #tpu.memory_space<vmem>>, %arg13: memref<1x128xf32, #tpu.memory_space<vmem>>, %arg14: memref<1x128xf32, #tpu.memory_space<vmem>>, %arg15: memref<1x128xf32, #tpu.memory_space<vmem>>, %arg16: memref<128x384xbf16, #tpu.memory_space<vmem>>, %arg17: memref<128x128xbf16, #tpu.memory_space<vmem>>, %arg18: memref<1x128xf32, #tpu.memory_space<vmem>>, %arg19: memref<1x128xf32, #tpu.memory_space<vmem>>, %arg20: memref<1x128xf32, #tpu.memory_space<vmem>>, %arg21: memref<128x256xbf16, #tpu.memory_space<vmem>>, %arg22: memref<1x256xf32, #tpu.memory_space<vmem>>, %arg23: memref<256x128xbf16, #tpu.memory_space<vmem>>, %arg24: memref<1x128xf32, #tpu.memory_space<vmem>>, %arg25: memref<1x128xf32, #tpu.memory_space<vmem>>, %arg26: memref<1x128xf32, #tpu.memory_space<vmem>>, %arg27: memref<128x1024xbf16, #tpu.memory_space<vmem>>, %arg28: memref<1x128xf32, #tpu.memory_space<vmem>>, %arg29: memref<2x128xf32, #tpu.memory_space<vmem>>) attributes {dimension_semantics = [#tpu.dimension_semantics<arbitrary>], iteration_bounds = array<i64: 1>, scalar_prefetch = 0 : i64, scratch_operands = 0 : i64, tpu.core_type = #tpu.core_type<tc>, window_params = [{pipeline_mode = #tpu.pipeline_mode<synchronous>, transform_indices = @transform_0, window_bounds = array<i64: 16, 128>}, {pipeline_mode = #tpu.pipeline_mode<synchronous>, transform_indices = @transform_1, window_bounds = array<i64: 16, 128>}, {pipeline_mode = #tpu.pipeline_mode<synchronous>, transform_indices = @transform_2, window_bounds = array<i64: 1, 128>}, {pipeline_mode = #tpu.pipeline_mode<synchronous>, transform_indices = @transform_3, window_bounds = array<i64: 1, 128>}, {pipeline_mode = #tpu.pipeline_mode<synchronous>, transform_indices = @transform_4, window_bounds = array<i64: 128, 384>}, {pipeline_mode = #tpu.pipeline_mode<synchronous>, transform_indices = @transform_5, window_bounds = array<i64: 128, 128>}, {pipeline_mode = #tpu.pipeline_mode<synchronous>, transform_indices = @transform_6, window_bounds = array<i64: 1, 128>}, {pipeline_mode = #tpu.pipeline_mode<synchronous>, transform_indices = @transform_7, window_bounds = array<i64: 1, 128>}, {pipeline_mode = #tpu.pipeline_mode<synchronous>, transform_indices = @transform_8, window_bounds = array<i64: 1, 128>}, {pipeline_mode = #tpu.pipeline_mode<synchronous>, transform_indices = @transform_9, window_bounds = array<i64: 128, 256>}, {pipeline_mode = #tpu.pipeline_mode<synchronous>, transform_indices = @transform_10, window_bounds = array<i64: 1, 256>}, {pipeline_mode = #tpu.pipeline_mode<synchronous>, transform_indices = @transform_11, window_bounds = array<i64: 256, 128>}, {pipeline_mode = #tpu.pipeline_mode<synchronous>, transform_indices = @transform_12, window_bounds = array<i64: 1, 128>}, {pipeline_mode = #tpu.pipeline_mode<synchronous>, transform_indices = @transform_13, window_bounds = array<i64: 1, 128>}, {pipeline_mode = #tpu.pipeline_mode<synchronous>, transform_indices = @transform_14, window_bounds = array<i64: 1, 128>}, {pipeline_mode = #tpu.pipeline_mode<synchronous>, transform_indices = @transform_15, window_bounds = array<i64: 128, 384>}, {pipeline_mode = #tpu.pipeline_mode<synchronous>, transform_indices = @transform_16, window_bounds = array<i64: 128, 128>}, {pipeline_mode = #tpu.pipeline_mode<synchronous>, transform_indices = @transform_17, window_bounds = array<i64: 1, 128>}, {pipeline_mode = #tpu.pipeline_mode<synchronous>, transform_indices = @transform_18, window_bounds = array<i64: 1, 128>}, {pipeline_mode = #tpu.pipeline_mode<synchronous>, transform_indices = @transform_19, window_bounds = array<i64: 1, 128>}, {pipeline_mode = #tpu.pipeline_mode<synchronous>, transform_indices = @transform_20, window_bounds = array<i64: 128, 256>}, {pipeline_mode = #tpu.pipeline_mode<synchronous>, transform_indices = @transform_21, window_bounds = array<i64: 1, 256>}, {pipeline_mode = #tpu.pipeline_mode<synchronous>, transform_indices = @transform_22, window_bounds = array<i64: 256, 128>}, {pipeline_mode = #tpu.pipeline_mode<synchronous>, transform_indices = @transform_23, window_bounds = array<i64: 1, 128>}, {pipeline_mode = #tpu.pipeline_mode<synchronous>, transform_indices = @transform_24, window_bounds = array<i64: 1, 128>}, {pipeline_mode = #tpu.pipeline_mode<synchronous>, transform_indices = @transform_25, window_bounds = array<i64: 1, 128>}, {pipeline_mode = #tpu.pipeline_mode<synchronous>, transform_indices = @transform_26, window_bounds = array<i64: 128, 1024>}, {pipeline_mode = #tpu.pipeline_mode<synchronous>, transform_indices = @transform_27, window_bounds = array<i64: 1, 128>}, {pipeline_mode = #tpu.pipeline_mode<synchronous>, transform_indices = @transform_28, window_bounds = array<i64: 2, 128>}]} {
    %c0 = arith.constant 0 : index
    %c0_0 = arith.constant 0 : index
    %0 = vector.load %arg1[%c0, %c0_0] : memref<16x128xf32, #tpu.memory_space<vmem>>, vector<16x128xf32>
    %c0_1 = arith.constant 0 : index
    %c0_2 = arith.constant 0 : index
    %1 = vector.load %arg2[%c0_1, %c0_2] : memref<16x128xf32, #tpu.memory_space<vmem>>, vector<16x128xf32>
    %2 = arith.addf %0, %1 : vector<16x128xf32>
    %c0_3 = arith.constant 0 : index
    %c0_4 = arith.constant 0 : index
    %3 = vector.load %arg3[%c0_3, %c0_4] : memref<1x128xf32, #tpu.memory_space<vmem>>, vector<1x128xf32>
    %c0_5 = arith.constant 0 : index
    %c0_6 = arith.constant 0 : index
    %4 = vector.load %arg4[%c0_5, %c0_6] : memref<1x128xf32, #tpu.memory_space<vmem>>, vector<1x128xf32>
    %5 = tpu.iota {dimensions = array<i32: 1>} : vector<16x128xi32>
    %c32_i32 = arith.constant 32 : i32
    %6 = vector.broadcast %c32_i32 : i32 to vector<16x128xi32>
    %7 = arith.cmpi slt, %5, %6 : vector<16x128xi32>
    %cst = arith.constant dense<0.000000e+00> : vector<16xf32>
    %8 = vector.multi_reduction <add>, %2, %cst [1] : vector<16x128xf32> to vector<16xf32>
    %9 = vector.shape_cast %8 : vector<16xf32> to vector<16x1xf32>
    %cst_7 = arith.constant 3.200000e+01 : f32
    %10 = vector.broadcast %cst_7 : f32 to vector<16x1xf32>
    %11 = arith.divf %9, %10 : vector<16x1xf32>
    %12 = vector.broadcast %11 : vector<16x1xf32> to vector<16x128xf32>
    %13 = arith.subf %2, %12 : vector<16x128xf32>
    %cst_8 = arith.constant 0.000000e+00 : f32
    %14 = vector.broadcast %cst_8 : f32 to vector<16x128xf32>
    %15 = arith.select %7, %13, %14 : vector<16x128xi1>, vector<16x128xf32>
    %16 = arith.mulf %15, %15 : vector<16x128xf32>
    %cst_9 = arith.constant dense<0.000000e+00> : vector<16xf32>
    %17 = vector.multi_reduction <add>, %16, %cst_9 [1] : vector<16x128xf32> to vector<16xf32>
    %18 = vector.shape_cast %17 : vector<16xf32> to vector<16x1xf32>
    %cst_10 = arith.constant 3.200000e+01 : f32
    %19 = vector.broadcast %cst_10 : f32 to vector<16x1xf32>
    %20 = arith.divf %18, %19 : vector<16x1xf32>
    %cst_11 = arith.constant 9.99999974E-6 : f32
    %21 = vector.broadcast %cst_11 : f32 to vector<16x1xf32>
    %22 = arith.addf %20, %21 : vector<16x1xf32>
    %23 = math.rsqrt %22 : vector<16x1xf32>
    %24 = vector.broadcast %23 : vector<16x1xf32> to vector<16x128xf32>
    %25 = arith.mulf %15, %24 : vector<16x128xf32>
    %26 = vector.broadcast %3 : vector<1x128xf32> to vector<16x128xf32>
    %27 = arith.mulf %25, %26 : vector<16x128xf32>
    %28 = vector.broadcast %4 : vector<1x128xf32> to vector<16x128xf32>
    %29 = arith.addf %27, %28 : vector<16x128xf32>
    %30 = arith.truncf %29 : vector<16x128xf32> to vector<16x128xbf16>
    %c0_12 = arith.constant 0 : index
    %c0_13 = arith.constant 0 : index
    %31 = vector.load %arg5[%c0_12, %c0_13] : memref<128x384xbf16, #tpu.memory_space<vmem>>, vector<128x384xbf16>
    %cst_14 = arith.constant dense<0.000000e+00> : vector<16x384xf32>
    %32 = tpu.matmul %30, %31, %cst_14 {dimension_numbers = #tpu.dot_dimension_numbers<[1], [0], [0], [1], [0, 0, 1, 1], [], []>} : vector<16x128xbf16>, vector<128x384xbf16>, vector<16x384xf32> -> vector<16x384xf32>
    %33 = vector.extract_strided_slice %32 {offsets = [0, 0], sizes = [16, 128], strides = [1, 1]} : vector<16x384xf32> to vector<16x128xf32>
    %34 = vector.extract_strided_slice %32 {offsets = [0, 128], sizes = [16, 128], strides = [1, 1]} : vector<16x384xf32> to vector<16x128xf32>
    %35 = vector.extract_strided_slice %32 {offsets = [0, 256], sizes = [16, 128], strides = [1, 1]} : vector<16x384xf32> to vector<16x128xf32>
    %36 = vector.extract_strided_slice %33 {offsets = [0, 0], sizes = [8, 128], strides = [1, 1]} : vector<16x128xf32> to vector<8x128xf32>
    %37 = arith.truncf %36 : vector<8x128xf32> to vector<8x128xbf16>
    %38 = vector.extract_strided_slice %34 {offsets = [0, 0], sizes = [8, 128], strides = [1, 1]} : vector<16x128xf32> to vector<8x128xf32>
    %39 = arith.truncf %38 : vector<8x128xf32> to vector<8x128xbf16>
    %40 = vector.extract_strided_slice %35 {offsets = [0, 0], sizes = [8, 128], strides = [1, 1]} : vector<16x128xf32> to vector<8x128xf32>
    %41 = arith.truncf %40 : vector<8x128xf32> to vector<8x128xbf16>
    %cst_15 = arith.constant dense<0.000000e+00> : vector<8x8xf32>
    %42 = tpu.matmul %37, %39, %cst_15 {dimension_numbers = #tpu.dot_dimension_numbers<[1], [1], [0], [0], [0, 0, 1, 0], [], []>} : vector<8x128xbf16>, vector<8x128xbf16>, vector<8x8xf32> -> vector<8x8xf32>
    %cst_16 = arith.constant 0.176776692 : f32
    %43 = vector.broadcast %cst_16 : f32 to vector<8x8xf32>
    %44 = arith.mulf %42, %43 : vector<8x8xf32>
    %cst_17 = arith.constant dense<0xFF800000> : vector<8xf32>
    %45 = vector.multi_reduction <maximumf>, %44, %cst_17 [1] : vector<8x8xf32> to vector<8xf32>
    %46 = vector.shape_cast %45 : vector<8xf32> to vector<8x1xf32>
    %47 = vector.broadcast %46 : vector<8x1xf32> to vector<8x8xf32>
    %48 = arith.subf %44, %47 : vector<8x8xf32>
    %49 = math.exp %48 : vector<8x8xf32>
    %cst_18 = arith.constant dense<0.000000e+00> : vector<8xf32>
    %50 = vector.multi_reduction <add>, %49, %cst_18 [1] : vector<8x8xf32> to vector<8xf32>
    %51 = vector.shape_cast %50 : vector<8xf32> to vector<8x1xf32>
    %52 = tpu.reciprocal %51 {approx = true} : vector<8x1xf32> -> vector<8x1xf32>
    %53 = vector.broadcast %52 : vector<8x1xf32> to vector<8x8xf32>
    %54 = arith.mulf %49, %53 : vector<8x8xf32>
    %55 = arith.truncf %54 : vector<8x8xf32> to vector<8x8xbf16>
    %cst_19 = arith.constant dense<0.000000e+00> : vector<8x128xf32>
    %56 = tpu.matmul %55, %41, %cst_19 {dimension_numbers = #tpu.dot_dimension_numbers<[1], [0], [0], [1], [0, 0, 1, 1], [], []>} : vector<8x8xbf16>, vector<8x128xbf16>, vector<8x128xf32> -> vector<8x128xf32>
    %57 = vector.extract_strided_slice %33 {offsets = [8, 0], sizes = [8, 128], strides = [1, 1]} : vector<16x128xf32> to vector<8x128xf32>
    %58 = arith.truncf %57 : vector<8x128xf32> to vector<8x128xbf16>
    %59 = vector.extract_strided_slice %34 {offsets = [8, 0], sizes = [8, 128], strides = [1, 1]} : vector<16x128xf32> to vector<8x128xf32>
    %60 = arith.truncf %59 : vector<8x128xf32> to vector<8x128xbf16>
    %61 = vector.extract_strided_slice %35 {offsets = [8, 0], sizes = [8, 128], strides = [1, 1]} : vector<16x128xf32> to vector<8x128xf32>
    %62 = arith.truncf %61 : vector<8x128xf32> to vector<8x128xbf16>
    %cst_20 = arith.constant dense<0.000000e+00> : vector<8x8xf32>
    %63 = tpu.matmul %58, %60, %cst_20 {dimension_numbers = #tpu.dot_dimension_numbers<[1], [1], [0], [0], [0, 0, 1, 0], [], []>} : vector<8x128xbf16>, vector<8x128xbf16>, vector<8x8xf32> -> vector<8x8xf32>
    %cst_21 = arith.constant 0.176776692 : f32
    %64 = vector.broadcast %cst_21 : f32 to vector<8x8xf32>
    %65 = arith.mulf %63, %64 : vector<8x8xf32>
    %cst_22 = arith.constant dense<0xFF800000> : vector<8xf32>
    %66 = vector.multi_reduction <maximumf>, %65, %cst_22 [1] : vector<8x8xf32> to vector<8xf32>
    %67 = vector.shape_cast %66 : vector<8xf32> to vector<8x1xf32>
    %68 = vector.broadcast %67 : vector<8x1xf32> to vector<8x8xf32>
    %69 = arith.subf %65, %68 : vector<8x8xf32>
    %70 = math.exp %69 : vector<8x8xf32>
    %cst_23 = arith.constant dense<0.000000e+00> : vector<8xf32>
    %71 = vector.multi_reduction <add>, %70, %cst_23 [1] : vector<8x8xf32> to vector<8xf32>
    %72 = vector.shape_cast %71 : vector<8xf32> to vector<8x1xf32>
    %73 = tpu.reciprocal %72 {approx = true} : vector<8x1xf32> -> vector<8x1xf32>
    %74 = vector.broadcast %73 : vector<8x1xf32> to vector<8x8xf32>
    %75 = arith.mulf %70, %74 : vector<8x8xf32>
    %76 = arith.truncf %75 : vector<8x8xf32> to vector<8x8xbf16>
    %cst_24 = arith.constant dense<0.000000e+00> : vector<8x128xf32>
    %77 = tpu.matmul %76, %62, %cst_24 {dimension_numbers = #tpu.dot_dimension_numbers<[1], [0], [0], [1], [0, 0, 1, 1], [], []>} : vector<8x8xbf16>, vector<8x128xbf16>, vector<8x128xf32> -> vector<8x128xf32>
    %78 = tpu.concatenate %56, %77 in 0 : vector<8x128xf32>, vector<8x128xf32> -> vector<16x128xf32>
    %79 = arith.truncf %78 : vector<16x128xf32> to vector<16x128xbf16>
    %c0_25 = arith.constant 0 : index
    %c0_26 = arith.constant 0 : index
    %80 = vector.load %arg6[%c0_25, %c0_26] : memref<128x128xbf16, #tpu.memory_space<vmem>>, vector<128x128xbf16>
    %cst_27 = arith.constant dense<0.000000e+00> : vector<16x128xf32>
    %81 = tpu.matmul %79, %80, %cst_27 {dimension_numbers = #tpu.dot_dimension_numbers<[1], [0], [0], [1], [0, 0, 1, 1], [], []>} : vector<16x128xbf16>, vector<128x128xbf16>, vector<16x128xf32> -> vector<16x128xf32>
    %c0_28 = arith.constant 0 : index
    %c0_29 = arith.constant 0 : index
    %82 = vector.load %arg7[%c0_28, %c0_29] : memref<1x128xf32, #tpu.memory_space<vmem>>, vector<1x128xf32>
    %83 = vector.broadcast %82 : vector<1x128xf32> to vector<16x128xf32>
    %84 = arith.addf %81, %83 : vector<16x128xf32>
    %85 = arith.addf %2, %84 : vector<16x128xf32>
    %c0_30 = arith.constant 0 : index
    %c0_31 = arith.constant 0 : index
    %86 = vector.load %arg8[%c0_30, %c0_31] : memref<1x128xf32, #tpu.memory_space<vmem>>, vector<1x128xf32>
    %c0_32 = arith.constant 0 : index
    %c0_33 = arith.constant 0 : index
    %87 = vector.load %arg9[%c0_32, %c0_33] : memref<1x128xf32, #tpu.memory_space<vmem>>, vector<1x128xf32>
    %88 = tpu.iota {dimensions = array<i32: 1>} : vector<16x128xi32>
    %c32_i32_34 = arith.constant 32 : i32
    %89 = vector.broadcast %c32_i32_34 : i32 to vector<16x128xi32>
    %90 = arith.cmpi slt, %88, %89 : vector<16x128xi32>
    %cst_35 = arith.constant dense<0.000000e+00> : vector<16xf32>
    %91 = vector.multi_reduction <add>, %85, %cst_35 [1] : vector<16x128xf32> to vector<16xf32>
    %92 = vector.shape_cast %91 : vector<16xf32> to vector<16x1xf32>
    %cst_36 = arith.constant 3.200000e+01 : f32
    %93 = vector.broadcast %cst_36 : f32 to vector<16x1xf32>
    %94 = arith.divf %92, %93 : vector<16x1xf32>
    %95 = vector.broadcast %94 : vector<16x1xf32> to vector<16x128xf32>
    %96 = arith.subf %85, %95 : vector<16x128xf32>
    %cst_37 = arith.constant 0.000000e+00 : f32
    %97 = vector.broadcast %cst_37 : f32 to vector<16x128xf32>
    %98 = arith.select %90, %96, %97 : vector<16x128xi1>, vector<16x128xf32>
    %99 = arith.mulf %98, %98 : vector<16x128xf32>
    %cst_38 = arith.constant dense<0.000000e+00> : vector<16xf32>
    %100 = vector.multi_reduction <add>, %99, %cst_38 [1] : vector<16x128xf32> to vector<16xf32>
    %101 = vector.shape_cast %100 : vector<16xf32> to vector<16x1xf32>
    %cst_39 = arith.constant 3.200000e+01 : f32
    %102 = vector.broadcast %cst_39 : f32 to vector<16x1xf32>
    %103 = arith.divf %101, %102 : vector<16x1xf32>
    %cst_40 = arith.constant 9.99999974E-6 : f32
    %104 = vector.broadcast %cst_40 : f32 to vector<16x1xf32>
    %105 = arith.addf %103, %104 : vector<16x1xf32>
    %106 = math.rsqrt %105 : vector<16x1xf32>
    %107 = vector.broadcast %106 : vector<16x1xf32> to vector<16x128xf32>
    %108 = arith.mulf %98, %107 : vector<16x128xf32>
    %109 = vector.broadcast %86 : vector<1x128xf32> to vector<16x128xf32>
    %110 = arith.mulf %108, %109 : vector<16x128xf32>
    %111 = vector.broadcast %87 : vector<1x128xf32> to vector<16x128xf32>
    %112 = arith.addf %110, %111 : vector<16x128xf32>
    %113 = arith.truncf %112 : vector<16x128xf32> to vector<16x128xbf16>
    %c0_41 = arith.constant 0 : index
    %c0_42 = arith.constant 0 : index
    %114 = vector.load %arg10[%c0_41, %c0_42] : memref<128x256xbf16, #tpu.memory_space<vmem>>, vector<128x256xbf16>
    %cst_43 = arith.constant dense<0.000000e+00> : vector<16x256xf32>
    %115 = tpu.matmul %113, %114, %cst_43 {dimension_numbers = #tpu.dot_dimension_numbers<[1], [0], [0], [1], [0, 0, 1, 1], [], []>} : vector<16x128xbf16>, vector<128x256xbf16>, vector<16x256xf32> -> vector<16x256xf32>
    %c0_44 = arith.constant 0 : index
    %c0_45 = arith.constant 0 : index
    %116 = vector.load %arg11[%c0_44, %c0_45] : memref<1x256xf32, #tpu.memory_space<vmem>>, vector<1x256xf32>
    %117 = vector.broadcast %116 : vector<1x256xf32> to vector<16x256xf32>
    %118 = arith.addf %115, %117 : vector<16x256xf32>
    %cst_46 = arith.constant 0.000000e+00 : f32
    %119 = vector.broadcast %cst_46 : f32 to vector<16x256xf32>
    %120 = arith.maximumf %118, %119 : vector<16x256xf32>
    %121 = arith.truncf %120 : vector<16x256xf32> to vector<16x256xbf16>
    %c0_47 = arith.constant 0 : index
    %c0_48 = arith.constant 0 : index
    %122 = vector.load %arg12[%c0_47, %c0_48] : memref<256x128xbf16, #tpu.memory_space<vmem>>, vector<256x128xbf16>
    %cst_49 = arith.constant dense<0.000000e+00> : vector<16x128xf32>
    %123 = tpu.matmul %121, %122, %cst_49 {dimension_numbers = #tpu.dot_dimension_numbers<[1], [0], [0], [1], [0, 0, 1, 1], [], []>} : vector<16x256xbf16>, vector<256x128xbf16>, vector<16x128xf32> -> vector<16x128xf32>
    %c0_50 = arith.constant 0 : index
    %c0_51 = arith.constant 0 : index
    %124 = vector.load %arg13[%c0_50, %c0_51] : memref<1x128xf32, #tpu.memory_space<vmem>>, vector<1x128xf32>
    %125 = vector.broadcast %124 : vector<1x128xf32> to vector<16x128xf32>
    %126 = arith.addf %123, %125 : vector<16x128xf32>
    %127 = arith.addf %85, %126 : vector<16x128xf32>
    %c0_52 = arith.constant 0 : index
    %c0_53 = arith.constant 0 : index
    %128 = vector.load %arg14[%c0_52, %c0_53] : memref<1x128xf32, #tpu.memory_space<vmem>>, vector<1x128xf32>
    %c0_54 = arith.constant 0 : index
    %c0_55 = arith.constant 0 : index
    %129 = vector.load %arg15[%c0_54, %c0_55] : memref<1x128xf32, #tpu.memory_space<vmem>>, vector<1x128xf32>
    %130 = tpu.iota {dimensions = array<i32: 1>} : vector<16x128xi32>
    %c32_i32_56 = arith.constant 32 : i32
    %131 = vector.broadcast %c32_i32_56 : i32 to vector<16x128xi32>
    %132 = arith.cmpi slt, %130, %131 : vector<16x128xi32>
    %cst_57 = arith.constant dense<0.000000e+00> : vector<16xf32>
    %133 = vector.multi_reduction <add>, %127, %cst_57 [1] : vector<16x128xf32> to vector<16xf32>
    %134 = vector.shape_cast %133 : vector<16xf32> to vector<16x1xf32>
    %cst_58 = arith.constant 3.200000e+01 : f32
    %135 = vector.broadcast %cst_58 : f32 to vector<16x1xf32>
    %136 = arith.divf %134, %135 : vector<16x1xf32>
    %137 = vector.broadcast %136 : vector<16x1xf32> to vector<16x128xf32>
    %138 = arith.subf %127, %137 : vector<16x128xf32>
    %cst_59 = arith.constant 0.000000e+00 : f32
    %139 = vector.broadcast %cst_59 : f32 to vector<16x128xf32>
    %140 = arith.select %132, %138, %139 : vector<16x128xi1>, vector<16x128xf32>
    %141 = arith.mulf %140, %140 : vector<16x128xf32>
    %cst_60 = arith.constant dense<0.000000e+00> : vector<16xf32>
    %142 = vector.multi_reduction <add>, %141, %cst_60 [1] : vector<16x128xf32> to vector<16xf32>
    %143 = vector.shape_cast %142 : vector<16xf32> to vector<16x1xf32>
    %cst_61 = arith.constant 3.200000e+01 : f32
    %144 = vector.broadcast %cst_61 : f32 to vector<16x1xf32>
    %145 = arith.divf %143, %144 : vector<16x1xf32>
    %cst_62 = arith.constant 9.99999974E-6 : f32
    %146 = vector.broadcast %cst_62 : f32 to vector<16x1xf32>
    %147 = arith.addf %145, %146 : vector<16x1xf32>
    %148 = math.rsqrt %147 : vector<16x1xf32>
    %149 = vector.broadcast %148 : vector<16x1xf32> to vector<16x128xf32>
    %150 = arith.mulf %140, %149 : vector<16x128xf32>
    %151 = vector.broadcast %128 : vector<1x128xf32> to vector<16x128xf32>
    %152 = arith.mulf %150, %151 : vector<16x128xf32>
    %153 = vector.broadcast %129 : vector<1x128xf32> to vector<16x128xf32>
    %154 = arith.addf %152, %153 : vector<16x128xf32>
    %155 = arith.truncf %154 : vector<16x128xf32> to vector<16x128xbf16>
    %c0_63 = arith.constant 0 : index
    %c0_64 = arith.constant 0 : index
    %156 = vector.load %arg16[%c0_63, %c0_64] : memref<128x384xbf16, #tpu.memory_space<vmem>>, vector<128x384xbf16>
    %cst_65 = arith.constant dense<0.000000e+00> : vector<16x384xf32>
    %157 = tpu.matmul %155, %156, %cst_65 {dimension_numbers = #tpu.dot_dimension_numbers<[1], [0], [0], [1], [0, 0, 1, 1], [], []>} : vector<16x128xbf16>, vector<128x384xbf16>, vector<16x384xf32> -> vector<16x384xf32>
    %158 = vector.extract_strided_slice %157 {offsets = [0, 0], sizes = [16, 128], strides = [1, 1]} : vector<16x384xf32> to vector<16x128xf32>
    %159 = vector.extract_strided_slice %157 {offsets = [0, 128], sizes = [16, 128], strides = [1, 1]} : vector<16x384xf32> to vector<16x128xf32>
    %160 = vector.extract_strided_slice %157 {offsets = [0, 256], sizes = [16, 128], strides = [1, 1]} : vector<16x384xf32> to vector<16x128xf32>
    %161 = vector.extract_strided_slice %158 {offsets = [0, 0], sizes = [8, 128], strides = [1, 1]} : vector<16x128xf32> to vector<8x128xf32>
    %162 = arith.truncf %161 : vector<8x128xf32> to vector<8x128xbf16>
    %163 = vector.extract_strided_slice %159 {offsets = [0, 0], sizes = [8, 128], strides = [1, 1]} : vector<16x128xf32> to vector<8x128xf32>
    %164 = arith.truncf %163 : vector<8x128xf32> to vector<8x128xbf16>
    %165 = vector.extract_strided_slice %160 {offsets = [0, 0], sizes = [8, 128], strides = [1, 1]} : vector<16x128xf32> to vector<8x128xf32>
    %166 = arith.truncf %165 : vector<8x128xf32> to vector<8x128xbf16>
    %cst_66 = arith.constant dense<0.000000e+00> : vector<8x8xf32>
    %167 = tpu.matmul %162, %164, %cst_66 {dimension_numbers = #tpu.dot_dimension_numbers<[1], [1], [0], [0], [0, 0, 1, 0], [], []>} : vector<8x128xbf16>, vector<8x128xbf16>, vector<8x8xf32> -> vector<8x8xf32>
    %cst_67 = arith.constant 0.176776692 : f32
    %168 = vector.broadcast %cst_67 : f32 to vector<8x8xf32>
    %169 = arith.mulf %167, %168 : vector<8x8xf32>
    %cst_68 = arith.constant dense<0xFF800000> : vector<8xf32>
    %170 = vector.multi_reduction <maximumf>, %169, %cst_68 [1] : vector<8x8xf32> to vector<8xf32>
    %171 = vector.shape_cast %170 : vector<8xf32> to vector<8x1xf32>
    %172 = vector.broadcast %171 : vector<8x1xf32> to vector<8x8xf32>
    %173 = arith.subf %169, %172 : vector<8x8xf32>
    %174 = math.exp %173 : vector<8x8xf32>
    %cst_69 = arith.constant dense<0.000000e+00> : vector<8xf32>
    %175 = vector.multi_reduction <add>, %174, %cst_69 [1] : vector<8x8xf32> to vector<8xf32>
    %176 = vector.shape_cast %175 : vector<8xf32> to vector<8x1xf32>
    %177 = tpu.reciprocal %176 {approx = true} : vector<8x1xf32> -> vector<8x1xf32>
    %178 = vector.broadcast %177 : vector<8x1xf32> to vector<8x8xf32>
    %179 = arith.mulf %174, %178 : vector<8x8xf32>
    %180 = arith.truncf %179 : vector<8x8xf32> to vector<8x8xbf16>
    %cst_70 = arith.constant dense<0.000000e+00> : vector<8x128xf32>
    %181 = tpu.matmul %180, %166, %cst_70 {dimension_numbers = #tpu.dot_dimension_numbers<[1], [0], [0], [1], [0, 0, 1, 1], [], []>} : vector<8x8xbf16>, vector<8x128xbf16>, vector<8x128xf32> -> vector<8x128xf32>
    %182 = vector.extract_strided_slice %158 {offsets = [8, 0], sizes = [8, 128], strides = [1, 1]} : vector<16x128xf32> to vector<8x128xf32>
    %183 = arith.truncf %182 : vector<8x128xf32> to vector<8x128xbf16>
    %184 = vector.extract_strided_slice %159 {offsets = [8, 0], sizes = [8, 128], strides = [1, 1]} : vector<16x128xf32> to vector<8x128xf32>
    %185 = arith.truncf %184 : vector<8x128xf32> to vector<8x128xbf16>
    %186 = vector.extract_strided_slice %160 {offsets = [8, 0], sizes = [8, 128], strides = [1, 1]} : vector<16x128xf32> to vector<8x128xf32>
    %187 = arith.truncf %186 : vector<8x128xf32> to vector<8x128xbf16>
    %cst_71 = arith.constant dense<0.000000e+00> : vector<8x8xf32>
    %188 = tpu.matmul %183, %185, %cst_71 {dimension_numbers = #tpu.dot_dimension_numbers<[1], [1], [0], [0], [0, 0, 1, 0], [], []>} : vector<8x128xbf16>, vector<8x128xbf16>, vector<8x8xf32> -> vector<8x8xf32>
    %cst_72 = arith.constant 0.176776692 : f32
    %189 = vector.broadcast %cst_72 : f32 to vector<8x8xf32>
    %190 = arith.mulf %188, %189 : vector<8x8xf32>
    %cst_73 = arith.constant dense<0xFF800000> : vector<8xf32>
    %191 = vector.multi_reduction <maximumf>, %190, %cst_73 [1] : vector<8x8xf32> to vector<8xf32>
    %192 = vector.shape_cast %191 : vector<8xf32> to vector<8x1xf32>
    %193 = vector.broadcast %192 : vector<8x1xf32> to vector<8x8xf32>
    %194 = arith.subf %190, %193 : vector<8x8xf32>
    %195 = math.exp %194 : vector<8x8xf32>
    %cst_74 = arith.constant dense<0.000000e+00> : vector<8xf32>
    %196 = vector.multi_reduction <add>, %195, %cst_74 [1] : vector<8x8xf32> to vector<8xf32>
    %197 = vector.shape_cast %196 : vector<8xf32> to vector<8x1xf32>
    %198 = tpu.reciprocal %197 {approx = true} : vector<8x1xf32> -> vector<8x1xf32>
    %199 = vector.broadcast %198 : vector<8x1xf32> to vector<8x8xf32>
    %200 = arith.mulf %195, %199 : vector<8x8xf32>
    %201 = arith.truncf %200 : vector<8x8xf32> to vector<8x8xbf16>
    %cst_75 = arith.constant dense<0.000000e+00> : vector<8x128xf32>
    %202 = tpu.matmul %201, %187, %cst_75 {dimension_numbers = #tpu.dot_dimension_numbers<[1], [0], [0], [1], [0, 0, 1, 1], [], []>} : vector<8x8xbf16>, vector<8x128xbf16>, vector<8x128xf32> -> vector<8x128xf32>
    %203 = tpu.concatenate %181, %202 in 0 : vector<8x128xf32>, vector<8x128xf32> -> vector<16x128xf32>
    %204 = arith.truncf %203 : vector<16x128xf32> to vector<16x128xbf16>
    %c0_76 = arith.constant 0 : index
    %c0_77 = arith.constant 0 : index
    %205 = vector.load %arg17[%c0_76, %c0_77] : memref<128x128xbf16, #tpu.memory_space<vmem>>, vector<128x128xbf16>
    %cst_78 = arith.constant dense<0.000000e+00> : vector<16x128xf32>
    %206 = tpu.matmul %204, %205, %cst_78 {dimension_numbers = #tpu.dot_dimension_numbers<[1], [0], [0], [1], [0, 0, 1, 1], [], []>} : vector<16x128xbf16>, vector<128x128xbf16>, vector<16x128xf32> -> vector<16x128xf32>
    %c0_79 = arith.constant 0 : index
    %c0_80 = arith.constant 0 : index
    %207 = vector.load %arg18[%c0_79, %c0_80] : memref<1x128xf32, #tpu.memory_space<vmem>>, vector<1x128xf32>
    %208 = vector.broadcast %207 : vector<1x128xf32> to vector<16x128xf32>
    %209 = arith.addf %206, %208 : vector<16x128xf32>
    %210 = arith.addf %127, %209 : vector<16x128xf32>
    %c0_81 = arith.constant 0 : index
    %c0_82 = arith.constant 0 : index
    %211 = vector.load %arg19[%c0_81, %c0_82] : memref<1x128xf32, #tpu.memory_space<vmem>>, vector<1x128xf32>
    %c0_83 = arith.constant 0 : index
    %c0_84 = arith.constant 0 : index
    %212 = vector.load %arg20[%c0_83, %c0_84] : memref<1x128xf32, #tpu.memory_space<vmem>>, vector<1x128xf32>
    %213 = tpu.iota {dimensions = array<i32: 1>} : vector<16x128xi32>
    %c32_i32_85 = arith.constant 32 : i32
    %214 = vector.broadcast %c32_i32_85 : i32 to vector<16x128xi32>
    %215 = arith.cmpi slt, %213, %214 : vector<16x128xi32>
    %cst_86 = arith.constant dense<0.000000e+00> : vector<16xf32>
    %216 = vector.multi_reduction <add>, %210, %cst_86 [1] : vector<16x128xf32> to vector<16xf32>
    %217 = vector.shape_cast %216 : vector<16xf32> to vector<16x1xf32>
    %cst_87 = arith.constant 3.200000e+01 : f32
    %218 = vector.broadcast %cst_87 : f32 to vector<16x1xf32>
    %219 = arith.divf %217, %218 : vector<16x1xf32>
    %220 = vector.broadcast %219 : vector<16x1xf32> to vector<16x128xf32>
    %221 = arith.subf %210, %220 : vector<16x128xf32>
    %cst_88 = arith.constant 0.000000e+00 : f32
    %222 = vector.broadcast %cst_88 : f32 to vector<16x128xf32>
    %223 = arith.select %215, %221, %222 : vector<16x128xi1>, vector<16x128xf32>
    %224 = arith.mulf %223, %223 : vector<16x128xf32>
    %cst_89 = arith.constant dense<0.000000e+00> : vector<16xf32>
    %225 = vector.multi_reduction <add>, %224, %cst_89 [1] : vector<16x128xf32> to vector<16xf32>
    %226 = vector.shape_cast %225 : vector<16xf32> to vector<16x1xf32>
    %cst_90 = arith.constant 3.200000e+01 : f32
    %227 = vector.broadcast %cst_90 : f32 to vector<16x1xf32>
    %228 = arith.divf %226, %227 : vector<16x1xf32>
    %cst_91 = arith.constant 9.99999974E-6 : f32
    %229 = vector.broadcast %cst_91 : f32 to vector<16x1xf32>
    %230 = arith.addf %228, %229 : vector<16x1xf32>
    %231 = math.rsqrt %230 : vector<16x1xf32>
    %232 = vector.broadcast %231 : vector<16x1xf32> to vector<16x128xf32>
    %233 = arith.mulf %223, %232 : vector<16x128xf32>
    %234 = vector.broadcast %211 : vector<1x128xf32> to vector<16x128xf32>
    %235 = arith.mulf %233, %234 : vector<16x128xf32>
    %236 = vector.broadcast %212 : vector<1x128xf32> to vector<16x128xf32>
    %237 = arith.addf %235, %236 : vector<16x128xf32>
    %238 = arith.truncf %237 : vector<16x128xf32> to vector<16x128xbf16>
    %c0_92 = arith.constant 0 : index
    %c0_93 = arith.constant 0 : index
    %239 = vector.load %arg21[%c0_92, %c0_93] : memref<128x256xbf16, #tpu.memory_space<vmem>>, vector<128x256xbf16>
    %cst_94 = arith.constant dense<0.000000e+00> : vector<16x256xf32>
    %240 = tpu.matmul %238, %239, %cst_94 {dimension_numbers = #tpu.dot_dimension_numbers<[1], [0], [0], [1], [0, 0, 1, 1], [], []>} : vector<16x128xbf16>, vector<128x256xbf16>, vector<16x256xf32> -> vector<16x256xf32>
    %c0_95 = arith.constant 0 : index
    %c0_96 = arith.constant 0 : index
    %241 = vector.load %arg22[%c0_95, %c0_96] : memref<1x256xf32, #tpu.memory_space<vmem>>, vector<1x256xf32>
    %242 = vector.broadcast %241 : vector<1x256xf32> to vector<16x256xf32>
    %243 = arith.addf %240, %242 : vector<16x256xf32>
    %cst_97 = arith.constant 0.000000e+00 : f32
    %244 = vector.broadcast %cst_97 : f32 to vector<16x256xf32>
    %245 = arith.maximumf %243, %244 : vector<16x256xf32>
    %246 = arith.truncf %245 : vector<16x256xf32> to vector<16x256xbf16>
    %c0_98 = arith.constant 0 : index
    %c0_99 = arith.constant 0 : index
    %247 = vector.load %arg23[%c0_98, %c0_99] : memref<256x128xbf16, #tpu.memory_space<vmem>>, vector<256x128xbf16>
    %cst_100 = arith.constant dense<0.000000e+00> : vector<16x128xf32>
    %248 = tpu.matmul %246, %247, %cst_100 {dimension_numbers = #tpu.dot_dimension_numbers<[1], [0], [0], [1], [0, 0, 1, 1], [], []>} : vector<16x256xbf16>, vector<256x128xbf16>, vector<16x128xf32> -> vector<16x128xf32>
    %c0_101 = arith.constant 0 : index
    %c0_102 = arith.constant 0 : index
    %249 = vector.load %arg24[%c0_101, %c0_102] : memref<1x128xf32, #tpu.memory_space<vmem>>, vector<1x128xf32>
    %250 = vector.broadcast %249 : vector<1x128xf32> to vector<16x128xf32>
    %251 = arith.addf %248, %250 : vector<16x128xf32>
    %252 = arith.addf %210, %251 : vector<16x128xf32>
    %c0_103 = arith.constant 0 : index
    %c0_104 = arith.constant 0 : index
    %253 = vector.load %arg25[%c0_103, %c0_104] : memref<1x128xf32, #tpu.memory_space<vmem>>, vector<1x128xf32>
    %c0_105 = arith.constant 0 : index
    %c0_106 = arith.constant 0 : index
    %254 = vector.load %arg26[%c0_105, %c0_106] : memref<1x128xf32, #tpu.memory_space<vmem>>, vector<1x128xf32>
    %255 = tpu.iota {dimensions = array<i32: 1>} : vector<16x128xi32>
    %c32_i32_107 = arith.constant 32 : i32
    %256 = vector.broadcast %c32_i32_107 : i32 to vector<16x128xi32>
    %257 = arith.cmpi slt, %255, %256 : vector<16x128xi32>
    %cst_108 = arith.constant dense<0.000000e+00> : vector<16xf32>
    %258 = vector.multi_reduction <add>, %252, %cst_108 [1] : vector<16x128xf32> to vector<16xf32>
    %259 = vector.shape_cast %258 : vector<16xf32> to vector<16x1xf32>
    %cst_109 = arith.constant 3.200000e+01 : f32
    %260 = vector.broadcast %cst_109 : f32 to vector<16x1xf32>
    %261 = arith.divf %259, %260 : vector<16x1xf32>
    %262 = vector.broadcast %261 : vector<16x1xf32> to vector<16x128xf32>
    %263 = arith.subf %252, %262 : vector<16x128xf32>
    %cst_110 = arith.constant 0.000000e+00 : f32
    %264 = vector.broadcast %cst_110 : f32 to vector<16x128xf32>
    %265 = arith.select %257, %263, %264 : vector<16x128xi1>, vector<16x128xf32>
    %266 = arith.mulf %265, %265 : vector<16x128xf32>
    %cst_111 = arith.constant dense<0.000000e+00> : vector<16xf32>
    %267 = vector.multi_reduction <add>, %266, %cst_111 [1] : vector<16x128xf32> to vector<16xf32>
    %268 = vector.shape_cast %267 : vector<16xf32> to vector<16x1xf32>
    %cst_112 = arith.constant 3.200000e+01 : f32
    %269 = vector.broadcast %cst_112 : f32 to vector<16x1xf32>
    %270 = arith.divf %268, %269 : vector<16x1xf32>
    %cst_113 = arith.constant 9.99999974E-6 : f32
    %271 = vector.broadcast %cst_113 : f32 to vector<16x1xf32>
    %272 = arith.addf %270, %271 : vector<16x1xf32>
    %273 = math.rsqrt %272 : vector<16x1xf32>
    %274 = vector.broadcast %273 : vector<16x1xf32> to vector<16x128xf32>
    %275 = arith.mulf %265, %274 : vector<16x128xf32>
    %276 = vector.broadcast %253 : vector<1x128xf32> to vector<16x128xf32>
    %277 = arith.mulf %275, %276 : vector<16x128xf32>
    %278 = vector.broadcast %254 : vector<1x128xf32> to vector<16x128xf32>
    %279 = arith.addf %277, %278 : vector<16x128xf32>
    %280 = arith.truncf %279 : vector<16x128xf32> to vector<16x128xbf16>
    %c0_114 = arith.constant 0 : index
    %c0_115 = arith.constant 0 : index
    %281 = vector.load %arg27[%c0_114, %c0_115] : memref<128x1024xbf16, #tpu.memory_space<vmem>>, vector<128x1024xbf16>
    %cst_116 = arith.constant dense<0.000000e+00> : vector<16x1024xf32>
    %282 = tpu.matmul %280, %281, %cst_116 {dimension_numbers = #tpu.dot_dimension_numbers<[1], [0], [0], [1], [0, 0, 1, 1], [], []>} : vector<16x128xbf16>, vector<128x1024xbf16>, vector<16x1024xf32> -> vector<16x1024xf32>
    %cst_117 = arith.constant 0.000000e+00 : f32
    %283 = vector.broadcast %cst_117 : f32 to vector<1x128xf32>
    %284 = vector.extract_strided_slice %282 {offsets = [0, 0], sizes = [1, 128], strides = [1, 1]} : vector<16x1024xf32> to vector<1x128xf32>
    %285 = arith.addf %283, %284 : vector<1x128xf32>
    %286 = vector.extract_strided_slice %282 {offsets = [1, 128], sizes = [1, 128], strides = [1, 1]} : vector<16x1024xf32> to vector<1x128xf32>
    %287 = arith.addf %285, %286 : vector<1x128xf32>
    %288 = vector.extract_strided_slice %282 {offsets = [2, 256], sizes = [1, 128], strides = [1, 1]} : vector<16x1024xf32> to vector<1x128xf32>
    %289 = arith.addf %287, %288 : vector<1x128xf32>
    %290 = vector.extract_strided_slice %282 {offsets = [3, 384], sizes = [1, 128], strides = [1, 1]} : vector<16x1024xf32> to vector<1x128xf32>
    %291 = arith.addf %289, %290 : vector<1x128xf32>
    %292 = vector.extract_strided_slice %282 {offsets = [4, 512], sizes = [1, 128], strides = [1, 1]} : vector<16x1024xf32> to vector<1x128xf32>
    %293 = arith.addf %291, %292 : vector<1x128xf32>
    %294 = vector.extract_strided_slice %282 {offsets = [5, 640], sizes = [1, 128], strides = [1, 1]} : vector<16x1024xf32> to vector<1x128xf32>
    %295 = arith.addf %293, %294 : vector<1x128xf32>
    %296 = vector.extract_strided_slice %282 {offsets = [6, 768], sizes = [1, 128], strides = [1, 1]} : vector<16x1024xf32> to vector<1x128xf32>
    %297 = arith.addf %295, %296 : vector<1x128xf32>
    %298 = vector.extract_strided_slice %282 {offsets = [7, 896], sizes = [1, 128], strides = [1, 1]} : vector<16x1024xf32> to vector<1x128xf32>
    %299 = arith.addf %297, %298 : vector<1x128xf32>
    %cst_118 = arith.constant 0.000000e+00 : f32
    %300 = vector.broadcast %cst_118 : f32 to vector<1x128xf32>
    %301 = vector.extract_strided_slice %282 {offsets = [8, 0], sizes = [1, 128], strides = [1, 1]} : vector<16x1024xf32> to vector<1x128xf32>
    %302 = arith.addf %300, %301 : vector<1x128xf32>
    %303 = vector.extract_strided_slice %282 {offsets = [9, 128], sizes = [1, 128], strides = [1, 1]} : vector<16x1024xf32> to vector<1x128xf32>
    %304 = arith.addf %302, %303 : vector<1x128xf32>
    %305 = vector.extract_strided_slice %282 {offsets = [10, 256], sizes = [1, 128], strides = [1, 1]} : vector<16x1024xf32> to vector<1x128xf32>
    %306 = arith.addf %304, %305 : vector<1x128xf32>
    %307 = vector.extract_strided_slice %282 {offsets = [11, 384], sizes = [1, 128], strides = [1, 1]} : vector<16x1024xf32> to vector<1x128xf32>
    %308 = arith.addf %306, %307 : vector<1x128xf32>
    %309 = vector.extract_strided_slice %282 {offsets = [12, 512], sizes = [1, 128], strides = [1, 1]} : vector<16x1024xf32> to vector<1x128xf32>
    %310 = arith.addf %308, %309 : vector<1x128xf32>
    %311 = vector.extract_strided_slice %282 {offsets = [13, 640], sizes = [1, 128], strides = [1, 1]} : vector<16x1024xf32> to vector<1x128xf32>
    %312 = arith.addf %310, %311 : vector<1x128xf32>
    %313 = vector.extract_strided_slice %282 {offsets = [14, 768], sizes = [1, 128], strides = [1, 1]} : vector<16x1024xf32> to vector<1x128xf32>
    %314 = arith.addf %312, %313 : vector<1x128xf32>
    %315 = vector.extract_strided_slice %282 {offsets = [15, 896], sizes = [1, 128], strides = [1, 1]} : vector<16x1024xf32> to vector<1x128xf32>
    %316 = arith.addf %314, %315 : vector<1x128xf32>
    %317 = tpu.concatenate %299, %316 in 0 : vector<1x128xf32>, vector<1x128xf32> -> vector<2x128xf32>
    %c0_119 = arith.constant 0 : index
    %c0_120 = arith.constant 0 : index
    %318 = vector.load %arg28[%c0_119, %c0_120] : memref<1x128xf32, #tpu.memory_space<vmem>>, vector<1x128xf32>
    %319 = vector.broadcast %318 : vector<1x128xf32> to vector<2x128xf32>
    %320 = arith.addf %317, %319 : vector<2x128xf32>
    %c0_121 = arith.constant 0 : index
    %c0_122 = arith.constant 0 : index
    %321 = vector.load %arg29[%c0_121, %c0_122] : memref<2x128xf32, #tpu.memory_space<vmem>>, vector<2x128xf32>
    tpu.vector_store %arg29[%c0_121, %c0_122], %320 {strides = array<i32>} : memref<2x128xf32, #tpu.memory_space<vmem>>, vector<2x128xf32>,
    return
  }
  func.func @transform_0(%arg0: i32) -> (i32, i32) {
    %c0_i32 = arith.constant 0 : i32
    %c0_i32_0 = arith.constant 0 : i32
    %c0_i32_1 = arith.constant 0 : i32
    return %c0_i32, %c0_i32_0 : i32, i32
  }
  func.func @transform_1(%arg0: i32) -> (i32, i32) {
    %c0_i32 = arith.constant 0 : i32
    %c0_i32_0 = arith.constant 0 : i32
    %c0_i32_1 = arith.constant 0 : i32
    return %c0_i32, %c0_i32_0 : i32, i32
  }
  func.func @transform_2(%arg0: i32) -> (i32, i32) {
    %c0_i32 = arith.constant 0 : i32
    %c0_i32_0 = arith.constant 0 : i32
    %c0_i32_1 = arith.constant 0 : i32
    return %c0_i32, %c0_i32_0 : i32, i32
  }
  func.func @transform_3(%arg0: i32) -> (i32, i32) {
    %c0_i32 = arith.constant 0 : i32
    %c0_i32_0 = arith.constant 0 : i32
    %c0_i32_1 = arith.constant 0 : i32
    return %c0_i32, %c0_i32_0 : i32, i32
  }
  func.func @transform_4(%arg0: i32) -> (i32, i32) {
    %c0_i32 = arith.constant 0 : i32
    %c0_i32_0 = arith.constant 0 : i32
    %c0_i32_1 = arith.constant 0 : i32
    return %c0_i32, %c0_i32_0 : i32, i32
  }
  func.func @transform_5(%arg0: i32) -> (i32, i32) {
    %c0_i32 = arith.constant 0 : i32
    %c0_i32_0 = arith.constant 0 : i32
    %c0_i32_1 = arith.constant 0 : i32
    return %c0_i32, %c0_i32_0 : i32, i32
  }
  func.func @transform_6(%arg0: i32) -> (i32, i32) {
    %c0_i32 = arith.constant 0 : i32
    %c0_i32_0 = arith.constant 0 : i32
    %c0_i32_1 = arith.constant 0 : i32
    return %c0_i32, %c0_i32_0 : i32, i32
  }
  func.func @transform_7(%arg0: i32) -> (i32, i32) {
    %c0_i32 = arith.constant 0 : i32
    %c0_i32_0 = arith.constant 0 : i32
    %c0_i32_1 = arith.constant 0 : i32
    return %c0_i32, %c0_i32_0 : i32, i32
  }
  func.func @transform_8(%arg0: i32) -> (i32, i32) {
    %c0_i32 = arith.constant 0 : i32
    %c0_i32_0 = arith.constant 0 : i32
    %c0_i32_1 = arith.constant 0 : i32
    return %c0_i32, %c0_i32_0 : i32, i32
  }
  func.func @transform_9(%arg0: i32) -> (i32, i32) {
    %c0_i32 = arith.constant 0 : i32
    %c0_i32_0 = arith.constant 0 : i32
    %c0_i32_1 = arith.constant 0 : i32
    return %c0_i32, %c0_i32_0 : i32, i32
  }
  func.func @transform_10(%arg0: i32) -> (i32, i32) {
    %c0_i32 = arith.constant 0 : i32
    %c0_i32_0 = arith.constant 0 : i32
    %c0_i32_1 = arith.constant 0 : i32
    return %c0_i32, %c0_i32_0 : i32, i32
  }
  func.func @transform_11(%arg0: i32) -> (i32, i32) {
    %c0_i32 = arith.constant 0 : i32
    %c0_i32_0 = arith.constant 0 : i32
    %c0_i32_1 = arith.constant 0 : i32
    return %c0_i32, %c0_i32_0 : i32, i32
  }
  func.func @transform_12(%arg0: i32) -> (i32, i32) {
    %c0_i32 = arith.constant 0 : i32
    %c0_i32_0 = arith.constant 0 : i32
    %c0_i32_1 = arith.constant 0 : i32
    return %c0_i32, %c0_i32_0 : i32, i32
  }
  func.func @transform_13(%arg0: i32) -> (i32, i32) {
    %c0_i32 = arith.constant 0 : i32
    %c0_i32_0 = arith.constant 0 : i32
    %c0_i32_1 = arith.constant 0 : i32
    return %c0_i32, %c0_i32_0 : i32, i32
  }
  func.func @transform_14(%arg0: i32) -> (i32, i32) {
    %c0_i32 = arith.constant 0 : i32
    %c0_i32_0 = arith.constant 0 : i32
    %c0_i32_1 = arith.constant 0 : i32
    return %c0_i32, %c0_i32_0 : i32, i32
  }
  func.func @transform_15(%arg0: i32) -> (i32, i32) {
    %c0_i32 = arith.constant 0 : i32
    %c0_i32_0 = arith.constant 0 : i32
    %c0_i32_1 = arith.constant 0 : i32
    return %c0_i32, %c0_i32_0 : i32, i32
  }
  func.func @transform_16(%arg0: i32) -> (i32, i32) {
    %c0_i32 = arith.constant 0 : i32
    %c0_i32_0 = arith.constant 0 : i32
    %c0_i32_1 = arith.constant 0 : i32
    return %c0_i32, %c0_i32_0 : i32, i32
  }
  func.func @transform_17(%arg0: i32) -> (i32, i32) {
    %c0_i32 = arith.constant 0 : i32
    %c0_i32_0 = arith.constant 0 : i32
    %c0_i32_1 = arith.constant 0 : i32
    return %c0_i32, %c0_i32_0 : i32, i32
  }
  func.func @transform_18(%arg0: i32) -> (i32, i32) {
    %c0_i32 = arith.constant 0 : i32
    %c0_i32_0 = arith.constant 0 : i32
    %c0_i32_1 = arith.constant 0 : i32
    return %c0_i32, %c0_i32_0 : i32, i32
  }
  func.func @transform_19(%arg0: i32) -> (i32, i32) {
    %c0_i32 = arith.constant 0 : i32
    %c0_i32_0 = arith.constant 0 : i32
    %c0_i32_1 = arith.constant 0 : i32
    return %c0_i32, %c0_i32_0 : i32, i32
  }
  func.func @transform_20(%arg0: i32) -> (i32, i32) {
    %c0_i32 = arith.constant 0 : i32
    %c0_i32_0 = arith.constant 0 : i32
    %c0_i32_1 = arith.constant 0 : i32
    return %c0_i32, %c0_i32_0 : i32, i32
  }
  func.func @transform_21(%arg0: i32) -> (i32, i32) {
    %c0_i32 = arith.constant 0 : i32
    %c0_i32_0 = arith.constant 0 : i32
    %c0_i32_1 = arith.constant 0 : i32
    return %c0_i32, %c0_i32_0 : i32, i32
  }
  func.func @transform_22(%arg0: i32) -> (i32, i32) {
    %c0_i32 = arith.constant 0 : i32
    %c0_i32_0 = arith.constant 0 : i32
    %c0_i32_1 = arith.constant 0 : i32
    return %c0_i32, %c0_i32_0 : i32, i32
  }
  func.func @transform_23(%arg0: i32) -> (i32, i32) {
    %c0_i32 = arith.constant 0 : i32
    %c0_i32_0 = arith.constant 0 : i32
    %c0_i32_1 = arith.constant 0 : i32
    return %c0_i32, %c0_i32_0 : i32, i32
  }
  func.func @transform_24(%arg0: i32) -> (i32, i32) {
    %c0_i32 = arith.constant 0 : i32
    %c0_i32_0 = arith.constant 0 : i32
    %c0_i32_1 = arith.constant 0 : i32
    return %c0_i32, %c0_i32_0 : i32, i32
  }
  func.func @transform_25(%arg0: i32) -> (i32, i32) {
    %c0_i32 = arith.constant 0 : i32
    %c0_i32_0 = arith.constant 0 : i32
    %c0_i32_1 = arith.constant 0 : i32
    return %c0_i32, %c0_i32_0 : i32, i32
  }
  func.func @transform_26(%arg0: i32) -> (i32, i32) {
    %c0_i32 = arith.constant 0 : i32
    %c0_i32_0 = arith.constant 0 : i32
    %c0_i32_1 = arith.constant 0 : i32
    return %c0_i32, %c0_i32_0 : i32, i32
  }
  func.func @transform_27(%arg0: i32) -> (i32, i32) {
    %c0_i32 = arith.constant 0 : i32
    %c0_i32_0 = arith.constant 0 : i32
    %c0_i32_1 = arith.constant 0 : i32
    return %c0_i32, %c0_i32_0 : i32, i32
  }
  func.func @transform_28(%arg0: i32) -> (i32, i32) {
    %c0_i32 = arith.constant 0 : i32
    %c0_i32_0 = arith.constant 0 : i32
    %c0_i32_1 = arith.constant 0 : i32
    return %c0_i32, %c0_i32_0 : i32, i32
  }
}

</mosaic_0001>

<llo_original>
// kernel: microtransformer_forward.1
$region0: #{microtransformer_forward.1}
  #allocation0 [shape = 'u32[]', space=smem, size = 0x4, offset = 0x4, fixed_abs, tag = 'smem constant byte address 0x4 - core index']
  #allocation1 [shape = 'u32[72,128]{1,0:T(1,128)}', space=vmem, size = 0x9000, scoped, tag = 'internal scratch']
  %s0 = inlined_call_operand.vmem [shape: f32[16,128], index: 0, kind: input, shape index: {}]
  %s1 = inlined_call_operand.vmem [shape: f32[16,128], index: 1, kind: input, shape index: {}]
  %s2 = inlined_call_operand.hbm [shape: f32[1,128], index: 2, kind: input, shape index: {}]
  %s3 = inlined_call_operand.hbm [shape: f32[1,128], index: 3, kind: input, shape index: {}]
  %s4 = inlined_call_operand.hbm [shape: bf16[128,384], index: 4, kind: input, shape index: {}]
  %s5 = inlined_call_operand.vmem [shape: bf16[128,128], index: 5, kind: input, shape index: {}]
  %s6 = inlined_call_operand.hbm [shape: f32[1,128], index: 6, kind: input, shape index: {}]
  %s7 = inlined_call_operand.hbm [shape: f32[1,128], index: 7, kind: input, shape index: {}]
  %s8 = inlined_call_operand.hbm [shape: f32[1,128], index: 8, kind: input, shape index: {}]
  %s9 = inlined_call_operand.hbm [shape: bf16[128,256], index: 9, kind: input, shape index: {}]
  %s10 = inlined_call_operand.vmem [shape: f32[1,256], index: 10, kind: input, shape index: {}]
  %s11 = inlined_call_operand.hbm [shape: bf16[256,128], index: 11, kind: input, shape index: {}]
  %s12 = inlined_call_operand.hbm [shape: f32[1,128], index: 12, kind: input, shape index: {}]
  %s13 = inlined_call_operand.vmem [shape: f32[1,128], index: 13, kind: input, shape index: {}]
  %s14 = inlined_call_operand.hbm [shape: f32[1,128], index: 14, kind: input, shape index: {}]
  %s15 = inlined_call_operand.hbm [shape: bf16[128,384], index: 15, kind: input, shape index: {}]
  %s16 = inlined_call_operand.hbm [shape: bf16[128,128], index: 16, kind: input, shape index: {}]
  %s17 = inlined_call_operand.vmem [shape: f32[1,128], index: 17, kind: input, shape index: {}]
  %s18 = inlined_call_operand.vmem [shape: f32[1,128], index: 18, kind: input, shape index: {}]
  %s19 = inlined_call_operand.hbm [shape: f32[1,128], index: 19, kind: input, shape index: {}]
  %s20 = inlined_call_operand.hbm [shape: bf16[128,256], index: 20, kind: input, shape index: {}]
  %s21 = inlined_call_operand.vmem [shape: f32[1,256], index: 21, kind: input, shape index: {}]
  %s22 = inlined_call_operand.hbm [shape: bf16[256,128], index: 22, kind: input, shape index: {}]
  %s23 = inlined_call_operand.hbm [shape: f32[1,128], index: 23, kind: input, shape index: {}]
  %s24 = inlined_call_operand.vmem [shape: f32[1,128], index: 24, kind: input, shape index: {}]
  %s25 = inlined_call_operand.vmem [shape: f32[1,128], index: 25, kind: input, shape index: {}]
  %s26 = inlined_call_operand.hbm [shape: bf16[128,1024], index: 26, kind: input, shape index: {}]
  %s27 = inlined_call_operand.hbm [shape: f32[1,128], index: 27, kind: input, shape index: {}]
  %s28 = inlined_call_operand.hbm [shape: f32[2,128], index: 28, kind: output, shape index: {}]
  %s29 = sld [smem:[#allocation0]]
  $region194: #{microtransformer_forward.1} parent=0
    _
  %s31 = ssub.s32 1, %s29
  %s32 = scalar_select 0, %s31, %s29
  $region1: #{microtransformer_forward.1} parent=0
    #allocation2 [shape = 'u8[512]{0}', space=vmem, size = 0x400, scoped, tag = 'input window, operand 2, single buffered']
    #allocation3 [shape = 's32[1]{0}', space=sflag, size = 0x4, scoped, tag = 'scoped memory for microtransformer_forward.1']
    #allocation4 [shape = 's32[1]{0}', space=sflag, size = 0x4, scoped, tag = 'scoped memory for microtransformer_forward.1']
    #allocation5 [shape = 'u8[512]{0}', space=vmem, size = 0x400, scoped, tag = 'input window, operand 3, single buffered']
    #allocation6 [shape = 's32[1]{0}', space=sflag, size = 0x4, scoped, tag = 'scoped memory for microtransformer_forward.1']
    #allocation7 [shape = 'u8[98304]{0}', space=vmem, size = 0x18000, scoped, tag = 'input window, operand 4, single buffered']
    #allocation8 [shape = 'u8[512]{0}', space=vmem, size = 0x400, scoped, tag = 'input window, operand 6, single buffered']
    #allocation9 [shape = 's32[1]{0}', space=sflag, size = 0x4, scoped, tag = 'scoped memory for microtransformer_forward.1']
    #allocation10 [shape = 'u8[512]{0}', space=vmem, size = 0x400, scoped, tag = 'input window, operand 7, single buffered']
    #allocation11 [shape = 'u8[512]{0}', space=vmem, size = 0x400, scoped, tag = 'input window, operand 8, single buffered']
    #allocation12 [shape = 's32[1]{0}', space=sflag, size = 0x4, scoped, tag = 'scoped memory for microtransformer_forward.1']
    #allocation13 [shape = 'u8[65536]{0}', space=vmem, size = 0x10000, scoped, tag = 'input window, operand 9, single buffered']
    #allocation14 [shape = 'u8[65536]{0}', space=vmem, size = 0x10000, scoped, tag = 'input window, operand 11, single buffered']
    #allocation15 [shape = 's32[1]{0}', space=sflag, size = 0x4, scoped, tag = 'scoped memory for microtransformer_forward.1']
    #allocation16 [shape = 'u8[512]{0}', space=vmem, size = 0x400, scoped, tag = 'input window, operand 12, single buffered']
    #allocation17 [shape = 'u8[512]{0}', space=vmem, size = 0x400, scoped, tag = 'input window, operand 14, single buffered']
    #allocation18 [shape = 's32[1]{0}', space=sflag, size = 0x4, scoped, tag = 'scoped memory for microtransformer_forward.1']
    #allocation19 [shape = 'u8[98304]{0}', space=vmem, size = 0x18000, scoped, tag = 'input window, operand 15, single buffered']
    #allocation20 [shape = 'u8[32768]{0}', space=vmem, size = 0x8000, scoped, tag = 'input window, operand 16, single buffered']
    #allocation21 [shape = 's32[1]{0}', space=sflag, size = 0x4, scoped, tag = 'scoped memory for microtransformer_forward.1']
    #allocation22 [shape = 'u8[512]{0}', space=vmem, size = 0x400, scoped, tag = 'input window, operand 19, single buffered']
    #allocation23 [shape = 'u8[65536]{0}', space=vmem, size = 0x10000, scoped, tag = 'input window, operand 20, single buffered']
    #allocation24 [shape = 's32[1]{0}', space=sflag, size = 0x4, scoped, tag = 'scoped memory for microtransformer_forward.1']
    #allocation25 [shape = 'u8[65536]{0}', space=vmem, size = 0x10000, scoped, tag = 'input window, operand 22, single buffered']
    #allocation26 [shape = 'u8[512]{0}', space=vmem, size = 0x400, scoped, tag = 'input window, operand 23, single buffered']
    #allocation27 [shape = 's32[1]{0}', space=sflag, size = 0x4, scoped, tag = 'scoped memory for microtransformer_forward.1']
    #allocation28 [shape = 'u8[262144]{0}', space=vmem, size = 0x40000, scoped, tag = 'input window, operand 26, single buffered']
    #allocation29 [shape = 'u8[512]{0}', space=vmem, size = 0x400, scoped, tag = 'input window, operand 27, single buffered']
    #allocation30 [shape = 's32[1]{0}', space=sflag, size = 0x4, scoped, tag = 'scoped memory for microtransformer_forward.1']
    #allocation31 [shape = 'u8[1024]{0}', space=vmem, size = 0x400, scoped, tag = 'output window, operand 0, single buffered']
    %33 = vsyncpa [#allocation3], 0
    %34 = vsyncpa [#allocation6], 0
    %35 = vsyncpa [#allocation9], 0
    %36 = vsyncpa [#allocation12], 0
    %37 = vsyncpa [#allocation15], 0
    %38 = vsyncpa [#allocation18], 0
    %39 = vsyncpa [#allocation21], 0
    %40 = vsyncpa [#allocation24], 0
    %41 = vsyncpa [#allocation27], 0
    %42 = vsyncpa [#allocation30], 0
    %43 = vsyncpa [#allocation4], 0
    // Predicated region
    $region2: #{microtransformer_forward.1} parent=1 // pred_check
      _
    $region3: #{microtransformer_forward.1} parent=1 // pred_check_branch
      %45 = sbr.rel (0) target = $region5
    $region4: #{microtransformer_forward.1} parent=1 // pred_region
      _
    $region5: #{microtransformer_forward.1} parent=1 // pred_fallthru
      _
    // Predicated region
    $region6: #{microtransformer_forward.1} parent=1 // pred_check
      _
    $region7: #{microtransformer_forward.1} parent=1 // pred_check_branch
      %47 = sbr.rel (0) target = $region9
    $region8: #{microtransformer_forward.1} parent=1 // pred_region
      _
    $region9: #{microtransformer_forward.1} parent=1 // pred_fallthru
      _
    // Predicated region
    $region10: #{microtransformer_forward.1} parent=1 // pred_check
      _
    $region11: #{microtransformer_forward.1} parent=1 // pred_check_branch
      %49 = sbr.rel (0) target = $region13
    $region12: #{microtransformer_forward.1} parent=1 // pred_region
      %51 = vsyncadd [#allocation3], 0
      %s53 = sshll.u32 %s2, 4
      %s54 = int_to_ptr.hbm [resolvable:$true] %s53
      %s55 = sshll.u32 [#allocation2], 4
      %s56 = int_to_ptr.vmem [resolvable:$true] %s55
      %58 = dma.hbm_to_vmem [thread:$0]  %s54, 16, %s56, [#allocation3]
    $region13: #{microtransformer_forward.1} parent=1 // pred_fallthru
      _
    // Predicated region
    $region14: #{microtransformer_forward.1} parent=1 // pred_check
      _
    $region15: #{microtransformer_forward.1} parent=1 // pred_check_branch
      %60 = sbr.rel (0) target = $region17
    $region16: #{microtransformer_forward.1} parent=1 // pred_region
      %62 = vsyncadd [#allocation6], 0
      %s64 = sshll.u32 %s3, 4
      %s65 = int_to_ptr.hbm [resolvable:$true] %s64
      %s66 = sshll.u32 [#allocation5], 4
      %s67 = int_to_ptr.vmem [resolvable:$true] %s66
      %69 = dma.hbm_to_vmem [thread:$0]  %s65, 16, %s67, [#allocation6]
    $region17: #{microtransformer_forward.1} parent=1 // pred_fallthru
      _
    // Predicated region
    $region18: #{microtransformer_forward.1} parent=1 // pred_check
      _
    $region19: #{microtransformer_forward.1} parent=1 // pred_check_branch
      %71 = sbr.rel (0) target = $region21
    $region20: #{microtransformer_forward.1} parent=1 // pred_region
      %73 = vsyncadd [#allocation6], 0
      %s74 = sshll.u32 %s4, 4
      %s75 = int_to_ptr.hbm [resolvable:$true] %s74
      %s76 = sshll.u32 [#allocation7], 4
      %s77 = int_to_ptr.vmem [resolvable:$true] %s76
      %82 = dma.hbm_to_vmem [thread:$0]  %s75, 3072, %s77, [#allocation6], 192, 192, 12
    $region21: #{microtransformer_forward.1} parent=1 // pred_fallthru
      _
    // Predicated region
    $region22: #{microtransformer_forward.1} parent=1 // pred_check
      _
    $region23: #{microtransformer_forward.1} parent=1 // pred_check_branch
      %84 = sbr.rel (0) target = $region25
    $region24: #{microtransformer_forward.1} parent=1 // pred_region
      _
    $region25: #{microtransformer_forward.1} parent=1 // pred_fallthru
      _
    // Predicated region
    $region26: #{microtransformer_forward.1} parent=1 // pred_check
      _
    $region27: #{microtransformer_forward.1} parent=1 // pred_check_branch
      %86 = sbr.rel (0) target = $region29
    $region28: #{microtransformer_forward.1} parent=1 // pred_region
      %88 = vsyncadd [#allocation9], 0
      %s90 = sshll.u32 %s6, 4
      %s91 = int_to_ptr.hbm [resolvable:$true] %s90
      %s92 = sshll.u32 [#allocation8], 4
      %s93 = int_to_ptr.vmem [resolvable:$true] %s92
      %95 = dma.hbm_to_vmem [thread:$0]  %s91, 16, %s93, [#allocation9]
    $region29: #{microtransformer_forward.1} parent=1 // pred_fallthru
      _
    // Predicated region
    $region30: #{microtransformer_forward.1} parent=1 // pred_check
      _
    $region31: #{microtransformer_forward.1} parent=1 // pred_check_branch
      %97 = sbr.rel (0) target = $region33
    $region32: #{microtransformer_forward.1} parent=1 // pred_region
      %99 = vsyncadd [#allocation9], 0
      %s101 = sshll.u32 %s7, 4
      %s102 = int_to_ptr.hbm [resolvable:$true] %s101
      %s103 = sshll.u32 [#allocation10], 4
      %s104 = int_to_ptr.vmem [resolvable:$true] %s103
      %106 = dma.hbm_to_vmem [thread:$0]  %s102, 16, %s104, [#allocation9]
    $region33: #{microtransformer_forward.1} parent=1 // pred_fallthru
      _
    // Predicated region
    $region34: #{microtransformer_forward.1} parent=1 // pred_check
      _
    $region35: #{microtransformer_forward.1} parent=1 // pred_check_branch
      %108 = sbr.rel (0) target = $region37
    $region36: #{microtransformer_forward.1} parent=1 // pred_region
      %110 = vsyncadd [#allocation12], 0
      %s112 = sshll.u32 %s8, 4
      %s113 = int_to_ptr.hbm [resolvable:$true] %s112
      %s114 = sshll.u32 [#allocation11], 4
      %s115 = int_to_ptr.vmem [resolvable:$true] %s114
      %117 = dma.hbm_to_vmem [thread:$0]  %s113, 16, %s115, [#allocation12]
    $region37: #{microtransformer_forward.1} parent=1 // pred_fallthru
      _
    // Predicated region
    $region38: #{microtransformer_forward.1} parent=1 // pred_check
      _
    $region39: #{microtransformer_forward.1} parent=1 // pred_check_branch
      %119 = sbr.rel (0) target = $region41
    $region40: #{microtransformer_forward.1} parent=1 // pred_region
      %121 = vsyncadd [#allocation12], 0
      %s122 = sshll.u32 %s9, 4
      %s123 = int_to_ptr.hbm [resolvable:$true] %s122
      %s124 = sshll.u32 [#allocation13], 4
      %s125 = int_to_ptr.vmem [resolvable:$true] %s124
      %130 = dma.hbm_to_vmem [thread:$0]  %s123, 2048, %s125, [#allocation12], 128, 128, 8
    $region41: #{microtransformer_forward.1} parent=1 // pred_fallthru
      _
    // Predicated region
    $region42: #{microtransformer_forward.1} parent=1 // pred_check
      _
    $region43: #{microtransformer_forward.1} parent=1 // pred_check_branch
      %132 = sbr.rel (0) target = $region45
    $region44: #{microtransformer_forward.1} parent=1 // pred_region
      _
    $region45: #{microtransformer_forward.1} parent=1 // pred_fallthru
      _
    // Predicated region
    $region46: #{microtransformer_forward.1} parent=1 // pred_check
      _
    $region47: #{microtransformer_forward.1} parent=1 // pred_check_branch
      %134 = sbr.rel (0) target = $region49
    $region48: #{microtransformer_forward.1} parent=1 // pred_region
      %136 = vsyncadd [#allocation15], 0
      %s137 = sshll.u32 %s11, 4
      %s138 = int_to_ptr.hbm [resolvable:$true] %s137
      %s139 = sshll.u32 [#allocation14], 4
      %s140 = int_to_ptr.vmem [resolvable:$true] %s139
      %145 = dma.hbm_to_vmem [thread:$0]  %s138, 2048, %s140, [#allocation15], 64, 64, 4
    $region49: #{microtransformer_forward.1} parent=1 // pred_fallthru
      _
    // Predicated region
    $region50: #{microtransformer_forward.1} parent=1 // pred_check
      _
    $region51: #{microtransformer_forward.1} parent=1 // pred_check_branch
      %147 = sbr.rel (0) target = $region53
    $region52: #{microtransformer_forward.1} parent=1 // pred_region
      %149 = vsyncadd [#allocation15], 0
      %s151 = sshll.u32 %s12, 4
      %s152 = int_to_ptr.hbm [resolvable:$true] %s151
      %s153 = sshll.u32 [#allocation16], 4
      %s154 = int_to_ptr.vmem [resolvable:$true] %s153
      %156 = dma.hbm_to_vmem [thread:$0]  %s152, 16, %s154, [#allocation15]
    $region53: #{microtransformer_forward.1} parent=1 // pred_fallthru
      _
    // Predicated region
    $region54: #{microtransformer_forward.1} parent=1 // pred_check
      _
    $region55: #{microtransformer_forward.1} parent=1 // pred_check_branch
      %158 = sbr.rel (0) target = $region57
    $region56: #{microtransformer_forward.1} parent=1 // pred_region
      _
    $region57: #{microtransformer_forward.1} parent=1 // pred_fallthru
      _
    // Predicated region
    $region58: #{microtransformer_forward.1} parent=1 // pred_check
      _
    $region59: #{microtransformer_forward.1} parent=1 // pred_check_branch
      %160 = sbr.rel (0) target = $region61
    $region60: #{microtransformer_forward.1} parent=1 // pred_region
      %162 = vsyncadd [#allocation18], 0
      %s164 = sshll.u32 %s14, 4
      %s165 = int_to_ptr.hbm [resolvable:$true] %s164
      %s166 = sshll.u32 [#allocation17], 4
      %s167 = int_to_ptr.vmem [resolvable:$true] %s166
      %169 = dma.hbm_to_vmem [thread:$0]  %s165, 16, %s167, [#allocation18]
    $region61: #{microtransformer_forward.1} parent=1 // pred_fallthru
      _
    // Predicated region
    $region62: #{microtransformer_forward.1} parent=1 // pred_check
      _
    $region63: #{microtransformer_forward.1} parent=1 // pred_check_branch
      %171 = sbr.rel (0) target = $region65
    $region64: #{microtransformer_forward.1} parent=1 // pred_region
      %173 = vsyncadd [#allocation18], 0
      %s174 = sshll.u32 %s15, 4
      %s175 = int_to_ptr.hbm [resolvable:$true] %s174
      %s176 = sshll.u32 [#allocation19], 4
      %s177 = int_to_ptr.vmem [resolvable:$true] %s176
      %182 = dma.hbm_to_vmem [thread:$0]  %s175, 3072, %s177, [#allocation18], 192, 192, 12
    $region65: #{microtransformer_forward.1} parent=1 // pred_fallthru
      _
    // Predicated region
    $region66: #{microtransformer_forward.1} parent=1 // pred_check
      _
    $region67: #{microtransformer_forward.1} parent=1 // pred_check_branch
      %184 = sbr.rel (0) target = $region69
    $region68: #{microtransformer_forward.1} parent=1 // pred_region
      %186 = vsyncadd [#allocation21], 0
      %s187 = sshll.u32 %s16, 4
      %s188 = int_to_ptr.hbm [resolvable:$true] %s187
      %s189 = sshll.u32 [#allocation20], 4
      %s190 = int_to_ptr.vmem [resolvable:$true] %s189
      %195 = dma.hbm_to_vmem [thread:$0]  %s188, 1024, %s190, [#allocation21], 64, 64, 4
    $region69: #{microtransformer_forward.1} parent=1 // pred_fallthru
      _
    // Predicated region
    $region70: #{microtransformer_forward.1} parent=1 // pred_check
      _
    $region71: #{microtransformer_forward.1} parent=1 // pred_check_branch
      %197 = sbr.rel (0) target = $region73
    $region72: #{microtransformer_forward.1} parent=1 // pred_region
      _
    $region73: #{microtransformer_forward.1} parent=1 // pred_fallthru
      _
    // Predicated region
    $region74: #{microtransformer_forward.1} parent=1 // pred_check
      _
    $region75: #{microtransformer_forward.1} parent=1 // pred_check_branch
      %199 = sbr.rel (0) target = $region77
    $region76: #{microtransformer_forward.1} parent=1 // pred_region
      _
    $region77: #{microtransformer_forward.1} parent=1 // pred_fallthru
      _
    // Predicated region
    $region78: #{microtransformer_forward.1} parent=1 // pred_check
      _
    $region79: #{microtransformer_forward.1} parent=1 // pred_check_branch
      %201 = sbr.rel (0) target = $region81
    $region80: #{microtransformer_forward.1} parent=1 // pred_region
      %203 = vsyncadd [#allocation21], 0
      %s205 = sshll.u32 %s19, 4
      %s206 = int_to_ptr.hbm [resolvable:$true] %s205
      %s207 = sshll.u32 [#allocation22], 4
      %s208 = int_to_ptr.vmem [resolvable:$true] %s207
      %210 = dma.hbm_to_vmem [thread:$0]  %s206, 16, %s208, [#allocation21]
    $region81: #{microtransformer_forward.1} parent=1 // pred_fallthru
      _
    // Predicated region
    $region82: #{microtransformer_forward.1} parent=1 // pred_check
      _
    $region83: #{microtransformer_forward.1} parent=1 // pred_check_branch
      %212 = sbr.rel (0) target = $region85
    $region84: #{microtransformer_forward.1} parent=1 // pred_region
      %214 = vsyncadd [#allocation24], 0
      %s215 = sshll.u32 %s20, 4
      %s216 = int_to_ptr.hbm [resolvable:$true] %s215
      %s217 = sshll.u32 [#allocation23], 4
      %s218 = int_to_ptr.vmem [resolvable:$true] %s217
      %223 = dma.hbm_to_vmem [thread:$0]  %s216, 2048, %s218, [#allocation24], 128, 128, 8
    $region85: #{microtransformer_forward.1} parent=1 // pred_fallthru
      _
    // Predicated region
    $region86: #{microtransformer_forward.1} parent=1 // pred_check
      _
    $region87: #{microtransformer_forward.1} parent=1 // pred_check_branch
      %225 = sbr.rel (0) target = $region89
    $region88: #{microtransformer_forward.1} parent=1 // pred_region
      _
    $region89: #{microtransformer_forward.1} parent=1 // pred_fallthru
      _
    // Predicated region
    $region90: #{microtransformer_forward.1} parent=1 // pred_check
      _
    $region91: #{microtransformer_forward.1} parent=1 // pred_check_branch
      %227 = sbr.rel (0) target = $region93
    $region92: #{microtransformer_forward.1} parent=1 // pred_region
      %229 = vsyncadd [#allocation24], 0
      %s230 = sshll.u32 %s22, 4
      %s231 = int_to_ptr.hbm [resolvable:$true] %s230
      %s232 = sshll.u32 [#allocation25], 4
      %s233 = int_to_ptr.vmem [resolvable:$true] %s232
      %238 = dma.hbm_to_vmem [thread:$0]  %s231, 2048, %s233, [#allocation24], 64, 64, 4
    $region93: #{microtransformer_forward.1} parent=1 // pred_fallthru
      _
    // Predicated region
    $region94: #{microtransformer_forward.1} parent=1 // pred_check
      _
    $region95: #{microtransformer_forward.1} parent=1 // pred_check_branch
      %240 = sbr.rel (0) target = $region97
    $region96: #{microtransformer_forward.1} parent=1 // pred_region
      %242 = vsyncadd [#allocation27], 0
      %s244 = sshll.u32 %s23, 4
      %s245 = int_to_ptr.hbm [resolvable:$true] %s244
      %s246 = sshll.u32 [#allocation26], 4
      %s247 = int_to_ptr.vmem [resolvable:$true] %s246
      %249 = dma.hbm_to_vmem [thread:$0]  %s245, 16, %s247, [#allocation27]
    $region97: #{microtransformer_forward.1} parent=1 // pred_fallthru
      _
    // Predicated region
    $region98: #{microtransformer_forward.1} parent=1 // pred_check
      _
    $region99: #{microtransformer_forward.1} parent=1 // pred_check_branch
      %251 = sbr.rel (0) target = $region101
    $region100: #{microtransformer_forward.1} parent=1 // pred_region
      _
    $region101: #{microtransformer_forward.1} parent=1 // pred_fallthru
      _
    // Predicated region
    $region102: #{microtransformer_forward.1} parent=1 // pred_check
      _
    $region103: #{microtransformer_forward.1} parent=1 // pred_check_branch
      %253 = sbr.rel (0) target = $region105
    $region104: #{microtransformer_forward.1} parent=1 // pred_region
      _
    $region105: #{microtransformer_forward.1} parent=1 // pred_fallthru
      _
    // Predicated region
    $region106: #{microtransformer_forward.1} parent=1 // pred_check
      _
    $region107: #{microtransformer_forward.1} parent=1 // pred_check_branch
      %255 = sbr.rel (0) target = $region109
    $region108: #{microtransformer_forward.1} parent=1 // pred_region
      %257 = vsyncadd [#allocation27], 0
      %s258 = sshll.u32 %s26, 4
      %s259 = int_to_ptr.hbm [resolvable:$true] %s258
      %s260 = sshll.u32 [#allocation28], 4
      %s261 = int_to_ptr.vmem [resolvable:$true] %s260
      %266 = dma.hbm_to_vmem [thread:$0]  %s259, 8192, %s261, [#allocation27], 512, 512, 32
    $region109: #{microtransformer_forward.1} parent=1 // pred_fallthru
      _
    // Predicated region
    $region110: #{microtransformer_forward.1} parent=1 // pred_check
      _
    $region111: #{microtransformer_forward.1} parent=1 // pred_check_branch
      %268 = sbr.rel (0) target = $region113
    $region112: #{microtransformer_forward.1} parent=1 // pred_region
      %270 = vsyncadd [#allocation30], 0
      %s272 = sshll.u32 %s27, 4
      %s273 = int_to_ptr.hbm [resolvable:$true] %s272
      %s274 = sshll.u32 [#allocation29], 4
      %s275 = int_to_ptr.vmem [resolvable:$true] %s274
      %277 = dma.hbm_to_vmem [thread:$0]  %s273, 16, %s275, [#allocation30]
    $region113: #{microtransformer_forward.1} parent=1 // pred_fallthru
      _
    // Predicated region
    $region114: #{microtransformer_forward.1} parent=1 // pred_check
      _
    $region115: #{microtransformer_forward.1} parent=1 // pred_check_branch
      %279 = sbr.rel (0) target = $region117
    $region116: #{microtransformer_forward.1} parent=1 // pred_region
      %281 = dma.done [#allocation3], 16
    $region117: #{microtransformer_forward.1} parent=1 // pred_fallthru
      _
    // Predicated region
    $region118: #{microtransformer_forward.1} parent=1 // pred_check
      _
    $region119: #{microtransformer_forward.1} parent=1 // pred_check_branch
      %283 = sbr.rel (0) target = $region121
    $region120: #{microtransformer_forward.1} parent=1 // pred_region
      %285 = dma.done [#allocation6], 16
    $region121: #{microtransformer_forward.1} parent=1 // pred_fallthru
      _
    // Predicated region
    $region122: #{microtransformer_forward.1} parent=1 // pred_check
      _
    $region123: #{microtransformer_forward.1} parent=1 // pred_check_branch
      %287 = sbr.rel (0) target = $region125
    $region124: #{microtransformer_forward.1} parent=1 // pred_region
      %289 = dma.done [#allocation6], 3072
    $region125: #{microtransformer_forward.1} parent=1 // pred_fallthru
      _
    // Predicated region
    $region126: #{microtransformer_forward.1} parent=1 // pred_check
      _
    $region127: #{microtransformer_forward.1} parent=1 // pred_check_branch
      %291 = sbr.rel (0) target = $region129
    $region128: #{microtransformer_forward.1} parent=1 // pred_region
      %293 = dma.done [#allocation9], 16
    $region129: #{microtransformer_forward.1} parent=1 // pred_fallthru
      _
    // Predicated region
    $region130: #{microtransformer_forward.1} parent=1 // pred_check
      _
    $region131: #{microtransformer_forward.1} parent=1 // pred_check_branch
      %295 = sbr.rel (0) target = $region133
    $region132: #{microtransformer_forward.1} parent=1 // pred_region
      %297 = dma.done [#allocation9], 16
    $region133: #{microtransformer_forward.1} parent=1 // pred_fallthru
      _
    // Predicated region
    $region134: #{microtransformer_forward.1} parent=1 // pred_check
      _
    $region135: #{microtransformer_forward.1} parent=1 // pred_check_branch
      %299 = sbr.rel (0) target = $region137
    $region136: #{microtransformer_forward.1} parent=1 // pred_region
      %301 = dma.done [#allocation12], 16
    $region137: #{microtransformer_forward.1} parent=1 // pred_fallthru
      _
    // Predicated region
    $region138: #{microtransformer_forward.1} parent=1 // pred_check
      _
    $region139: #{microtransformer_forward.1} parent=1 // pred_check_branch
      %303 = sbr.rel (0) target = $region141
    $region140: #{microtransformer_forward.1} parent=1 // pred_region
      %305 = dma.done [#allocation12], 2048
    $region141: #{microtransformer_forward.1} parent=1 // pred_fallthru
      _
    // Predicated region
    $region142: #{microtransformer_forward.1} parent=1 // pred_check
      _
    $region143: #{microtransformer_forward.1} parent=1 // pred_check_branch
      %307 = sbr.rel (0) target = $region145
    $region144: #{microtransformer_forward.1} parent=1 // pred_region
      %309 = dma.done [#allocation15], 2048
    $region145: #{microtransformer_forward.1} parent=1 // pred_fallthru
      _
    // Predicated region
    $region146: #{microtransformer_forward.1} parent=1 // pred_check
      _
    $region147: #{microtransformer_forward.1} parent=1 // pred_check_branch
      %311 = sbr.rel (0) target = $region149
    $region148: #{microtransformer_forward.1} parent=1 // pred_region
      %313 = dma.done [#allocation15], 16
    $region149: #{microtransformer_forward.1} parent=1 // pred_fallthru
      _
    // Predicated region
    $region150: #{microtransformer_forward.1} parent=1 // pred_check
      _
    $region151: #{microtransformer_forward.1} parent=1 // pred_check_branch
      %315 = sbr.rel (0) target = $region153
    $region152: #{microtransformer_forward.1} parent=1 // pred_region
      %317 = dma.done [#allocation18], 16
    $region153: #{microtransformer_forward.1} parent=1 // pred_fallthru
      _
    // Predicated region
    $region154: #{microtransformer_forward.1} parent=1 // pred_check
      _
    $region155: #{microtransformer_forward.1} parent=1 // pred_check_branch
      %319 = sbr.rel (0) target = $region157
    $region156: #{microtransformer_forward.1} parent=1 // pred_region
      %321 = dma.done [#allocation18], 3072
    $region157: #{microtransformer_forward.1} parent=1 // pred_fallthru
      _
    // Predicated region
    $region158: #{microtransformer_forward.1} parent=1 // pred_check
      _
    $region159: #{microtransformer_forward.1} parent=1 // pred_check_branch
      %323 = sbr.rel (0) target = $region161
    $region160: #{microtransformer_forward.1} parent=1 // pred_region
      %325 = dma.done [#allocation21], 1024
    $region161: #{microtransformer_forward.1} parent=1 // pred_fallthru
      _
    // Predicated region
    $region162: #{microtransformer_forward.1} parent=1 // pred_check
      _
    $region163: #{microtransformer_forward.1} parent=1 // pred_check_branch
      %327 = sbr.rel (0) target = $region165
    $region164: #{microtransformer_forward.1} parent=1 // pred_region
      %329 = dma.done [#allocation21], 16
    $region165: #{microtransformer_forward.1} parent=1 // pred_fallthru
      _
    // Predicated region
    $region166: #{microtransformer_forward.1} parent=1 // pred_check
      _
    $region167: #{microtransformer_forward.1} parent=1 // pred_check_branch
      %331 = sbr.rel (0) target = $region169
    $region168: #{microtransformer_forward.1} parent=1 // pred_region
      %333 = dma.done [#allocation24], 2048
    $region169: #{microtransformer_forward.1} parent=1 // pred_fallthru
      _
    // Predicated region
    $region170: #{microtransformer_forward.1} parent=1 // pred_check
      _
    $region171: #{microtransformer_forward.1} parent=1 // pred_check_branch
      %335 = sbr.rel (0) target = $region173
    $region172: #{microtransformer_forward.1} parent=1 // pred_region
      %337 = dma.done [#allocation24], 2048
    $region173: #{microtransformer_forward.1} parent=1 // pred_fallthru
      _
    // Predicated region
    $region174: #{microtransformer_forward.1} parent=1 // pred_check
      _
    $region175: #{microtransformer_forward.1} parent=1 // pred_check_branch
      %339 = sbr.rel (0) target = $region177
    $region176: #{microtransformer_forward.1} parent=1 // pred_region
      %341 = dma.done [#allocation27], 16
    $region177: #{microtransformer_forward.1} parent=1 // pred_fallthru
      _
    // Predicated region
    $region178: #{microtransformer_forward.1} parent=1 // pred_check
      _
    $region179: #{microtransformer_forward.1} parent=1 // pred_check_branch
      %343 = sbr.rel (0) target = $region181
    $region180: #{microtransformer_forward.1} parent=1 // pred_region
      %345 = dma.done [#allocation27], 8192
    $region181: #{microtransformer_forward.1} parent=1 // pred_fallthru
      _
    // Predicated region
    $region182: #{microtransformer_forward.1} parent=1 // pred_check
      _
    $region183: #{microtransformer_forward.1} parent=1 // pred_check_branch
      %347 = sbr.rel (0) target = $region185
    $region184: #{microtransformer_forward.1} parent=1 // pred_region
      %349 = dma.done [#allocation30], 16
    $region185: #{microtransformer_forward.1} parent=1 // pred_fallthru
      _
    %v351 = vld [vmem:[%s0] sm:$0xff]
    %v352 = vld [vmem:[%s0 + $0x8] sm:$0xff]
    %v353 = vld [vmem:[%s1] sm:$0xff]
    %v354 = vld [vmem:[%s1 + $0x8] sm:$0xff]
    %v355 = vadd.f32 %v351, %v353
    %v356 = vadd.f32 %v352, %v354
    %v357 = vld [vmem:[#allocation2] sm:$0x1]
    %v358 = vld [vmem:[#allocation5] sm:$0x1]
    %v359 = vlaneseq
    %v360 = vand.u32 %v359, 127
    %vm361 = vcmp.lt.s32.totalorder %v360, 32
    %362 = vadd.xlane.f32.xlu0 %v355
    %v363 = vpop.xlane.xlu0 %362
    %364 = vadd.xlane.f32.xlu0 %v356
    %v365 = vpop.xlane.xlu0 %364
    %v366 = vrcp.pop 32.0
    %v367 = vmul.f32 32.0, %v366
    %v368 = vsub.f32 1.0, %v367
    %v369 = vmul.f32 %v366, %v368
    %v370 = vadd.f32 %v366, %v369
    %vm371 = vweird.f32 %v366
    %v372 = vsel %vm371, %v366, %v370
    %v373 = vmul.f32 %v363, %v372
    %v374 = vmul.f32 %v365, %v372
    %v375 = vsub.f32 %v355, %v373
    %v376 = vsub.f32 %v356, %v374
    %v377 = vsel %vm361, %v375, 0.0
    %v378 = vsel %vm361, %v376, 0.0
    %v379 = vmul.f32 %v377, %v377
    %v380 = vmul.f32 %v378, %v378
    %381 = vadd.xlane.f32.xlu0 %v379
    %v382 = vpop.xlane.xlu0 %381
    %383 = vadd.xlane.f32.xlu0 %v380
    %v384 = vpop.xlane.xlu0 %383
    %v385 = vmul.f32 %v382, %v372
    %v386 = vmul.f32 %v384, %v372
    %v387 = vadd.f32 %v385, 1e-05
    %v388 = vadd.f32 %v386, 1e-05
    %v389 = vrsqrt.pop %v387
    %v390 = vmul.f32 %v389, %v387
    %v391 = vmul.f32 %v390, %v389
    %v392 = vmul.f32 0.5, %v391
    %v393 = vsub.f32 1.5, %v392
    %v394 = vmul.f32 %v389, %v393
    %vm395 = vweird.f32 %v387
    %vm396 = vweird.f32 %v389
    %vm397 = vmor %vm395, %vm396
    %v398 = vsel %vm397, %v389, %v394
    %v399 = vrsqrt.pop %v388
    %v400 = vmul.f32 %v399, %v388
    %v401 = vmul.f32 %v400, %v399
    %v402 = vmul.f32 0.5, %v401
    %v403 = vsub.f32 1.5, %v402
    %v404 = vmul.f32 %v399, %v403
    %vm405 = vweird.f32 %v388
    %vm406 = vweird.f32 %v399
    %vm407 = vmor %vm405, %vm406
    %v408 = vsel %vm407, %v399, %v404
    %v409 = vmul.f32 %v377, %v398
    %v410 = vmul.f32 %v378, %v408
    %v412 = vperm.slane %v357, 0
    %v414 = vmul.f32 %v409, %v412
    %v415 = vmul.f32 %v410, %v412
    %v417 = vperm.slane %v358, 0
    %v419 = vadd.f32 %v414, %v417
    %v420 = vadd.f32 %v415, %v417
    %v421 = vpack.c.bf16 %v420, %v419
    %v422 = vld [vmem:[#allocation7] sm:$0xff]
    %v423 = vld [vmem:[#allocation7 + $0x8] sm:$0xf]
    %v424 = vld [vmem:[#allocation7 + $0xc] sm:$0xff]
    %v425 = vld [vmem:[#allocation7 + $0x14] sm:$0xf]
    %v426 = vld [vmem:[#allocation7 + $0x18] sm:$0xff]
    %v427 = vld [vmem:[#allocation7 + $0x20] sm:$0xf]
    %v428 = vld [vmem:[#allocation7 + $0x24] sm:$0xff]
    %v429 = vld [vmem:[#allocation7 + $0x2c] sm:$0xf]
    %v430 = vld [vmem:[#allocation7 + $0x30] sm:$0xff]
    %v431 = vld [vmem:[#allocation7 + $0x38] sm:$0xf]
    %v432 = vld [vmem:[#allocation7 + $0x3c] sm:$0xff]
    %v433 = vld [vmem:[#allocation7 + $0x44] sm:$0xf]
    %v434 = vld [vmem:[#allocation7 + $0x48] sm:$0xff]
    %v435 = vld [vmem:[#allocation7 + $0x50] sm:$0xf]
    %v436 = vld [vmem:[#allocation7 + $0x54] sm:$0xff]
    %v437 = vld [vmem:[#allocation7 + $0x5c] sm:$0xf]
    %v438 = vld [vmem:[#allocation7 + $0x60] sm:$0xff]
    %v439 = vld [vmem:[#allocation7 + $0x68] sm:$0xf]
    %v440 = vld [vmem:[#allocation7 + $0x6c] sm:$0xff]
    %v441 = vld [vmem:[#allocation7 + $0x74] sm:$0xf]
    %v442 = vld [vmem:[#allocation7 + $0x78] sm:$0xff]
    %v443 = vld [vmem:[#allocation7 + $0x80] sm:$0xf]
    %v444 = vld [vmem:[#allocation7 + $0x84] sm:$0xff]
    %v445 = vld [vmem:[#allocation7 + $0x8c] sm:$0xf]
    %v446 = vld [vmem:[#allocation7 + $0x90] sm:$0xff]
    %v447 = vld [vmem:[#allocation7 + $0x98] sm:$0xf]
    %v448 = vld [vmem:[#allocation7 + $0x9c] sm:$0xff]
    %v449 = vld [vmem:[#allocation7 + $0xa4] sm:$0xf]
    %v450 = vld [vmem:[#allocation7 + $0xa8] sm:$0xff]
    %v451 = vld [vmem:[#allocation7 + $0xb0] sm:$0xf]
    %v452 = vld [vmem:[#allocation7 + $0xb4] sm:$0xff]
    %v453 = vld [vmem:[#allocation7 + $0xbc] sm:$0xf]
    %v486 = vunpack.c.l.b16 %v422
    %v487 = vunpack.c.h.b16 %v422
    %v488 = vunpack.c.l.b16 %v423
    %v489 = vunpack.c.l.b16 %v424
    %v490 = vunpack.c.h.b16 %v424
    %v491 = vunpack.c.l.b16 %v425
    %v492 = vunpack.c.l.b16 %v426
    %v493 = vunpack.c.h.b16 %v426
    %v494 = vunpack.c.l.b16 %v427
    %v495 = vunpack.c.l.b16 %v428
    %v496 = vunpack.c.h.b16 %v428
    %v497 = vunpack.c.l.b16 %v429
    %v498 = vunpack.c.l.b16 %v430
    %v499 = vunpack.c.h.b16 %v430
    %v500 = vunpack.c.l.b16 %v431
    %v501 = vunpack.c.l.b16 %v432
    %v502 = vunpack.c.h.b16 %v432
    %v503 = vunpack.c.l.b16 %v433
    %v504 = vunpack.c.l.b16 %v434
    %v505 = vunpack.c.h.b16 %v434
    %v506 = vunpack.c.l.b16 %v435
    %v507 = vunpack.c.l.b16 %v436
    %v508 = vunpack.c.h.b16 %v436
    %v509 = vunpack.c.l.b16 %v437
    %v510 = vunpack.c.l.b16 %v438
    %v511 = vunpack.c.h.b16 %v438
    %v512 = vunpack.c.l.b16 %v439
    %v513 = vunpack.c.l.b16 %v440
    %v514 = vunpack.c.h.b16 %v440
    %v515 = vunpack.c.l.b16 %v441
    %v516 = vunpack.c.l.b16 %v442
    %v517 = vunpack.c.h.b16 %v442
    %v518 = vunpack.c.l.b16 %v443
    %v519 = vunpack.c.l.b16 %v444
    %v520 = vunpack.c.h.b16 %v444
    %v521 = vunpack.c.l.b16 %v445
    %v522 = vunpack.c.l.b16 %v446
    %v523 = vunpack.c.h.b16 %v446
    %v524 = vunpack.c.l.b16 %v447
    %v525 = vunpack.c.l.b16 %v448
    %v526 = vunpack.c.h.b16 %v448
    %v527 = vunpack.c.l.b16 %v449
    %v528 = vunpack.c.l.b16 %v450
    %v529 = vunpack.c.h.b16 %v450
    %v530 = vunpack.c.l.b16 %v451
    %v531 = vunpack.c.l.b16 %v452
    %v532 = vunpack.c.h.b16 %v452
    %v533 = vunpack.c.l.b16 %v453
    %v534 = vpack.c.b16 %v489, %v486
    %v535 = vpack.c.b16 %v490, %v487
    %v536 = vpack.c.b16 %v491, %v488
    %v537 = vpack.c.b16 %v495, %v492
    %v538 = vpack.c.b16 %v496, %v493
    %v539 = vpack.c.b16 %v497, %v494
    %v540 = vpack.c.b16 %v501, %v498
    %v541 = vpack.c.b16 %v502, %v499
    %v542 = vpack.c.b16 %v503, %v500
    %v543 = vpack.c.b16 %v507, %v504
    %v544 = vpack.c.b16 %v508, %v505
    %v545 = vpack.c.b16 %v509, %v506
    %v546 = vpack.c.b16 %v513, %v510
    %v547 = vpack.c.b16 %v514, %v511
    %v548 = vpack.c.b16 %v515, %v512
    %v549 = vpack.c.b16 %v519, %v516
    %v550 = vpack.c.b16 %v520, %v517
    %v551 = vpack.c.b16 %v521, %v518
    %v552 = vpack.c.b16 %v525, %v522
    %v553 = vpack.c.b16 %v526, %v523
    %v554 = vpack.c.b16 %v527, %v524
    %v555 = vpack.c.b16 %v531, %v528
    %v556 = vpack.c.b16 %v532, %v529
    %v557 = vpack.c.b16 %v533, %v530
    %582 = vmatpush.bf16.msra.mxu0 %v555
    %583 = vmatpush.bf16.msra.mxu0 %v552
    %584 = vmatpush.bf16.msra.mxu0 %v549
    %585 = vmatpush.bf16.msra.mxu0 %v546
    %586 = vmatpush.bf16.msra.mxu0 %v543
    %587 = vmatpush.bf16.msra.mxu0 %v540
    %588 = vmatpush.bf16.msra.mxu0 %v537
    %589 = vmatpush.bf16.msra.mxu0 %v534
    %590 = vmatmul.bf16.gmra.mxu0 %v421
    %v591 = vpop.f32.mrf.mxu0
    %v592 = vadd.f32 0.0, %v591
    %v593 = vpop.f32.mrf.mxu0
    %v594 = vadd.f32 0.0, %v593
    %595 = vdwg.mxu0
    %596 = vmatpush.bf16.msra.mxu0 %v556
    %597 = vmatpush.bf16.msra.mxu0 %v553
    %598 = vmatpush.bf16.msra.mxu0 %v550
    %599 = vmatpush.bf16.msra.mxu0 %v547
    %600 = vmatpush.bf16.msra.mxu0 %v544
    %601 = vmatpush.bf16.msra.mxu0 %v541
    %602 = vmatpush.bf16.msra.mxu0 %v538
    %603 = vmatpush.bf16.msra.mxu0 %v535
    %604 = vmatmul.bf16.gmra.mxu0 %v421
    %v605 = vpop.f32.mrf.mxu0
    %v606 = vadd.f32 0.0, %v605
    %v607 = vpop.f32.mrf.mxu0
    %v608 = vadd.f32 0.0, %v607
    %609 = vdwg.mxu0
    %610 = vmatpush.bf16.msra.mxu0 %v557
    %611 = vmatpush.bf16.msra.mxu0 %v554
    %612 = vmatpush.bf16.msra.mxu0 %v551
    %613 = vmatpush.bf16.msra.mxu0 %v548
    %614 = vmatpush.bf16.msra.mxu0 %v545
    %615 = vmatpush.bf16.msra.mxu0 %v542
    %616 = vmatpush.bf16.msra.mxu0 %v539
    %617 = vmatpush.bf16.msra.mxu0 %v536
    %618 = vmatmul.bf16.gmra.mxu0 %v421
    %v619 = vpop.f32.mrf.mxu0
    %v620 = vadd.f32 0.0, %v619
    %v621 = vpop.f32.mrf.mxu0
    %v622 = vadd.f32 0.0, %v621
    %623 = vdwg.mxu0
    %v624 = vpack.c.bf16 %v592, %v592
    %v625 = vpack.c.bf16 %v606, %v606
    %v626 = vpack.c.bf16 %v620, %v620
    %627 = vmatpush.bf16.xpose.msra.mxu0 0
    %628 = vmatpush.bf16.xpose.msra.mxu0 0
    %629 = vmatpush.bf16.xpose.msra.mxu0 0
    %630 = vmatpush.bf16.xpose.msra.mxu0 0
    %631 = vmatpush.bf16.xpose.msra.mxu0 0
    %632 = vmatpush.bf16.xpose.msra.mxu0 0
    %633 = vmatpush.bf16.xpose.msra.mxu0 0
    %634 = vmatpush.bf16.xpose.msra.mxu0 %v625
    %635 = vmatmul.bf16.gmra.mxu0 %v624
    %v636 = vpop.f32.mrf.mxu0
    %v637 = vadd.f32 0.0, %v636
    %v638 = vpop.f32.mrf.mxu0
    %639 = vdwg.mxu0
    %v640 = vmul.f32 %v637, 0.17677669
    %vm641 = vcmask 64512
    %v642 = vsel %vm641, %v640, -inf
    %643 = vmax.xlane.f32.xlu0 %v642
    %v644 = vpop.xlane.xlu0 %643
    %v645 = vsub.f32 %v640, %v644
    %v646 = vmul.f32 %v645, 1.442695
    %v647 = vpow.pop %v646
    %v648 = vsel %vm641, %v647, 0.0
    %649 = vadd.xlane.f32.xlu0 %v648
    %v650 = vpop.xlane.xlu0 %649
    %v651 = vrcp.pop %v650
    %v652 = vmul.f32 %v647, %v651
    %v653 = vpack.c.bf16 %v652, %v652
    %v655 = vsel %vm641, %v653, 0
    %vm657 = vcmask 1043456
    %v659 = vsel %vm657, %v626, 0
    %661 = vmatpush.bf16.msra.mxu0 0
    %662 = vmatpush.bf16.msra.mxu0 0
    %663 = vmatpush.bf16.msra.mxu0 0
    %664 = vmatpush.bf16.msra.mxu0 0
    %665 = vmatpush.bf16.msra.mxu0 0
    %666 = vmatpush.bf16.msra.mxu0 0
    %667 = vmatpush.bf16.msra.mxu0 0
    %668 = vmatpush.bf16.msra.mxu0 %v659
    %669 = vmatmul.bf16.gmra.mxu0 %v655
    %v670 = vpop.f32.mrf.mxu0
    %v671 = vadd.f32 0.0, %v670
    %v672 = vpop.f32.mrf.mxu0
    %673 = vdwg.mxu0
    %v674 = vpack.c.bf16 %v594, %v594
    %v675 = vpack.c.bf16 %v608, %v608
    %v676 = vpack.c.bf16 %v622, %v622
    %677 = vmatpush.bf16.xpose.msra.mxu0 0
    %678 = vmatpush.bf16.xpose.msra.mxu0 0
    %679 = vmatpush.bf16.xpose.msra.mxu0 0
    %680 = vmatpush.bf16.xpose.msra.mxu0 0
    %681 = vmatpush.bf16.xpose.msra.mxu0 0
    %682 = vmatpush.bf16.xpose.msra.mxu0 0
    %683 = vmatpush.bf16.xpose.msra.mxu0 0
    %684 = vmatpush.bf16.xpose.msra.mxu0 %v675
    %685 = vmatmul.bf16.gmra.mxu0 %v674
    %v686 = vpop.f32.mrf.mxu0
    %v687 = vadd.f32 0.0, %v686
    %v688 = vpop.f32.mrf.mxu0
    %689 = vdwg.mxu0
    %v690 = vmul.f32 %v687, 0.17677669
    %v691 = vsel %vm641, %v690, -inf
    %692 = vmax.xlane.f32.xlu0 %v691
    %v693 = vpop.xlane.xlu0 %692
    %v694 = vsub.f32 %v690, %v693
    %v695 = vmul.f32 %v694, 1.442695
    %v696 = vpow.pop %v695
    %v697 = vsel %vm641, %v696, 0.0
    %698 = vadd.xlane.f32.xlu0 %v697
    %v699 = vpop.xlane.xlu0 %698
    %v700 = vrcp.pop %v699
    %v701 = vmul.f32 %v696, %v700
    %v702 = vpack.c.bf16 %v701, %v701
    %v704 = vsel %vm641, %v702, 0
    %v707 = vsel %vm657, %v676, 0
    %709 = vmatpush.bf16.msra.mxu0 0
    %710 = vmatpush.bf16.msra.mxu0 0
    %711 = vmatpush.bf16.msra.mxu0 0
    %712 = vmatpush.bf16.msra.mxu0 0
    %713 = vmatpush.bf16.msra.mxu0 0
    %714 = vmatpush.bf16.msra.mxu0 0
    %715 = vmatpush.bf16.msra.mxu0 0
    %716 = vmatpush.bf16.msra.mxu0 %v707
    %717 = vmatmul.bf16.gmra.mxu0 %v704
    %v718 = vpop.f32.mrf.mxu0
    %v719 = vadd.f32 0.0, %v718
    %v720 = vpop.f32.mrf.mxu0
    %721 = vdwg.mxu0
    %v722 = vpack.c.bf16 %v719, %v671
    %v723 = vld [vmem:[%s5] sm:$0xf]
    %v724 = vld [vmem:[%s5 + $0x4] sm:$0xf]
    %v725 = vld [vmem:[%s5 + $0x8] sm:$0xf]
    %v726 = vld [vmem:[%s5 + $0xc] sm:$0xf]
    %v727 = vld [vmem:[%s5 + $0x10] sm:$0xf]
    %v728 = vld [vmem:[%s5 + $0x14] sm:$0xf]
    %v729 = vld [vmem:[%s5 + $0x18] sm:$0xf]
    %v730 = vld [vmem:[%s5 + $0x1c] sm:$0xf]
    %v731 = vld [vmem:[%s5 + $0x20] sm:$0xf]
    %v732 = vld [vmem:[%s5 + $0x24] sm:$0xf]
    %v733 = vld [vmem:[%s5 + $0x28] sm:$0xf]
    %v734 = vld [vmem:[%s5 + $0x2c] sm:$0xf]
    %v735 = vld [vmem:[%s5 + $0x30] sm:$0xf]
    %v736 = vld [vmem:[%s5 + $0x34] sm:$0xf]
    %v737 = vld [vmem:[%s5 + $0x38] sm:$0xf]
    %v738 = vld [vmem:[%s5 + $0x3c] sm:$0xf]
    %v739 = vld [vmem:[#allocation8] sm:$0x1]
    %v741 = vperm.slane %v739, 0
    %v759 = vunpack.c.l.b16 %v723
    %v760 = vunpack.c.l.b16 %v724
    %v761 = vunpack.c.l.b16 %v725
    %v762 = vunpack.c.l.b16 %v726
    %v763 = vunpack.c.l.b16 %v727
    %v764 = vunpack.c.l.b16 %v728
    %v765 = vunpack.c.l.b16 %v729
    %v766 = vunpack.c.l.b16 %v730
    %v767 = vunpack.c.l.b16 %v731
    %v768 = vunpack.c.l.b16 %v732
    %v769 = vunpack.c.l.b16 %v733
    %v770 = vunpack.c.l.b16 %v734
    %v771 = vunpack.c.l.b16 %v735
    %v772 = vunpack.c.l.b16 %v736
    %v773 = vunpack.c.l.b16 %v737
    %v774 = vunpack.c.l.b16 %v738
    %v775 = vpack.c.b16 %v760, %v759
    %v776 = vpack.c.b16 %v762, %v761
    %v777 = vpack.c.b16 %v764, %v763
    %v778 = vpack.c.b16 %v766, %v765
    %v779 = vpack.c.b16 %v768, %v767
    %v780 = vpack.c.b16 %v770, %v769
    %v781 = vpack.c.b16 %v772, %v771
    %v782 = vpack.c.b16 %v774, %v773
    %791 = vmatpush.bf16.msra.mxu0 %v782
    %792 = vmatpush.bf16.msra.mxu0 %v781
    %793 = vmatpush.bf16.msra.mxu0 %v780
    %794 = vmatpush.bf16.msra.mxu0 %v779
    %795 = vmatpush.bf16.msra.mxu0 %v778
    %796 = vmatpush.bf16.msra.mxu0 %v777
    %797 = vmatpush.bf16.msra.mxu0 %v776
    %798 = vmatpush.bf16.msra.mxu0 %v775
    %799 = vmatmul.bf16.gmra.mxu0 %v722
    %v800 = vpop.f32.mrf.mxu0
    %v801 = vadd.f32 %v741, %v800
    %v802 = vpop.f32.mrf.mxu0
    %v803 = vadd.f32 %v741, %v802
    %804 = vdwg.mxu0
    %v805 = vadd.f32 %v355, %v801
    %v806 = vadd.f32 %v356, %v803
    %v807 = vld [vmem:[#allocation10] sm:$0x1]
    %v808 = vld [vmem:[#allocation11] sm:$0x1]
    %809 = vadd.xlane.f32.xlu0 %v805
    %v810 = vpop.xlane.xlu0 %809
    %811 = vadd.xlane.f32.xlu0 %v806
    %v812 = vpop.xlane.xlu0 %811
    %v813 = vmul.f32 %v810, %v372
    %v814 = vmul.f32 %v812, %v372
    %v815 = vsub.f32 %v805, %v813
    %v816 = vsub.f32 %v806, %v814
    %v817 = vsel %vm361, %v815, 0.0
    %v818 = vsel %vm361, %v816, 0.0
    %v819 = vmul.f32 %v817, %v817
    %v820 = vmul.f32 %v818, %v818
    %821 = vadd.xlane.f32.xlu0 %v819
    %v822 = vpop.xlane.xlu0 %821
    %823 = vadd.xlane.f32.xlu0 %v820
    %v824 = vpop.xlane.xlu0 %823
    %v825 = vmul.f32 %v822, %v372
    %v826 = vmul.f32 %v824, %v372
    %v827 = vadd.f32 %v825, 1e-05
    %v828 = vadd.f32 %v826, 1e-05
    %v829 = vrsqrt.pop %v827
    %v830 = vmul.f32 %v829, %v827
    %v831 = vmul.f32 %v830, %v829
    %v832 = vmul.f32 0.5, %v831
    %v833 = vsub.f32 1.5, %v832
    %v834 = vmul.f32 %v829, %v833
    %vm835 = vweird.f32 %v827
    %vm836 = vweird.f32 %v829
    %vm837 = vmor %vm835, %vm836
    %v838 = vsel %vm837, %v829, %v834
    %v839 = vrsqrt.pop %v828
    %v840 = vmul.f32 %v839, %v828
    %v841 = vmul.f32 %v840, %v839
    %v842 = vmul.f32 0.5, %v841
    %v843 = vsub.f32 1.5, %v842
    %v844 = vmul.f32 %v839, %v843
    %vm845 = vweird.f32 %v828
    %vm846 = vweird.f32 %v839
    %vm847 = vmor %vm845, %vm846
    %v848 = vsel %vm847, %v839, %v844
    %v849 = vmul.f32 %v817, %v838
    %v850 = vmul.f32 %v818, %v848
    %v852 = vperm.slane %v807, 0
    %v854 = vmul.f32 %v849, %v852
    %v855 = vmul.f32 %v850, %v852
    %v857 = vperm.slane %v808, 0
    %v859 = vadd.f32 %v854, %v857
    %v860 = vadd.f32 %v855, %v857
    %v861 = vpack.c.bf16 %v860, %v859
    %v862 = vld [vmem:[#allocation13] sm:$0xff]
    %v863 = vld [vmem:[#allocation13 + $0x8] sm:$0xff]
    %v864 = vld [vmem:[#allocation13 + $0x10] sm:$0xff]
    %v865 = vld [vmem:[#allocation13 + $0x18] sm:$0xff]
    %v866 = vld [vmem:[#allocation13 + $0x20] sm:$0xff]
    %v867 = vld [vmem:[#allocation13 + $0x28] sm:$0xff]
    %v868 = vld [vmem:[#allocation13 + $0x30] sm:$0xff]
    %v869 = vld [vmem:[#allocation13 + $0x38] sm:$0xff]
    %v870 = vld [vmem:[#allocation13 + $0x40] sm:$0xff]
    %v871 = vld [vmem:[#allocation13 + $0x48] sm:$0xff]
    %v872 = vld [vmem:[#allocation13 + $0x50] sm:$0xff]
    %v873 = vld [vmem:[#allocation13 + $0x58] sm:$0xff]
    %v874 = vld [vmem:[#allocation13 + $0x60] sm:$0xff]
    %v875 = vld [vmem:[#allocation13 + $0x68] sm:$0xff]
    %v876 = vld [vmem:[#allocation13 + $0x70] sm:$0xff]
    %v877 = vld [vmem:[#allocation13 + $0x78] sm:$0xff]
    %v878 = vld [vmem:[%s10] sm:$0x3]
    %v880 = vperm.slane %v878, 0
    %v881 = vperm.slane %v878, 1
    %v900 = vunpack.c.l.b16 %v862
    %v901 = vunpack.c.h.b16 %v862
    %v902 = vunpack.c.l.b16 %v863
    %v903 = vunpack.c.h.b16 %v863
    %v904 = vunpack.c.l.b16 %v864
    %v905 = vunpack.c.h.b16 %v864
    %v906 = vunpack.c.l.b16 %v865
    %v907 = vunpack.c.h.b16 %v865
    %v908 = vunpack.c.l.b16 %v866
    %v909 = vunpack.c.h.b16 %v866
    %v910 = vunpack.c.l.b16 %v867
    %v911 = vunpack.c.h.b16 %v867
    %v912 = vunpack.c.l.b16 %v868
    %v913 = vunpack.c.h.b16 %v868
    %v914 = vunpack.c.l.b16 %v869
    %v915 = vunpack.c.h.b16 %v869
    %v916 = vunpack.c.l.b16 %v870
    %v917 = vunpack.c.h.b16 %v870
    %v918 = vunpack.c.l.b16 %v871
    %v919 = vunpack.c.h.b16 %v871
    %v920 = vunpack.c.l.b16 %v872
    %v921 = vunpack.c.h.b16 %v872
    %v922 = vunpack.c.l.b16 %v873
    %v923 = vunpack.c.h.b16 %v873
    %v924 = vunpack.c.l.b16 %v874
    %v925 = vunpack.c.h.b16 %v874
    %v926 = vunpack.c.l.b16 %v875
    %v927 = vunpack.c.h.b16 %v875
    %v928 = vunpack.c.l.b16 %v876
    %v929 = vunpack.c.h.b16 %v876
    %v930 = vunpack.c.l.b16 %v877
    %v931 = vunpack.c.h.b16 %v877
    %v932 = vpack.c.b16 %v902, %v900
    %v933 = vpack.c.b16 %v903, %v901
    %v934 = vpack.c.b16 %v906, %v904
    %v935 = vpack.c.b16 %v907, %v905
    %v936 = vpack.c.b16 %v910, %v908
    %v937 = vpack.c.b16 %v911, %v909
    %v938 = vpack.c.b16 %v914, %v912
    %v939 = vpack.c.b16 %v915, %v913
    %v940 = vpack.c.b16 %v918, %v916
    %v941 = vpack.c.b16 %v919, %v917
    %v942 = vpack.c.b16 %v922, %v920
    %v943 = vpack.c.b16 %v923, %v921
    %v944 = vpack.c.b16 %v926, %v924
    %v945 = vpack.c.b16 %v927, %v925
    %v946 = vpack.c.b16 %v930, %v928
    %v947 = vpack.c.b16 %v931, %v929
    %964 = vmatpush.bf16.msra.mxu0 %v946
    %965 = vmatpush.bf16.msra.mxu0 %v944
    %966 = vmatpush.bf16.msra.mxu0 %v942
    %967 = vmatpush.bf16.msra.mxu0 %v940
    %968 = vmatpush.bf16.msra.mxu0 %v938
    %969 = vmatpush.bf16.msra.mxu0 %v936
    %970 = vmatpush.bf16.msra.mxu0 %v934
    %971 = vmatpush.bf16.msra.mxu0 %v932
    %972 = vmatmul.bf16.gmra.mxu0 %v861
    %v973 = vpop.f32.mrf.mxu0
    %v974 = vadd.f32 %v880, %v973
    %v975 = vpop.f32.mrf.mxu0
    %v976 = vadd.f32 %v880, %v975
    %977 = vdwg.mxu0
    %978 = vmatpush.bf16.msra.mxu0 %v947
    %979 = vmatpush.bf16.msra.mxu0 %v945
    %980 = vmatpush.bf16.msra.mxu0 %v943
    %981 = vmatpush.bf16.msra.mxu0 %v941
    %982 = vmatpush.bf16.msra.mxu0 %v939
    %983 = vmatpush.bf16.msra.mxu0 %v937
    %984 = vmatpush.bf16.msra.mxu0 %v935
    %985 = vmatpush.bf16.msra.mxu0 %v933
    %986 = vmatmul.bf16.gmra.mxu0 %v861
    %v987 = vpop.f32.mrf.mxu0
    %v988 = vadd.f32 %v881, %v987
    %v989 = vpop.f32.mrf.mxu0
    %v990 = vadd.f32 %v881, %v989
    %991 = vdwg.mxu0
    %v992 = vmax.f32 %v974, 0.0
    %v993 = vmax.f32 %v988, 0.0
    %v994 = vmax.f32 %v976, 0.0
    %v995 = vmax.f32 %v990, 0.0
    %v996 = vpack.c.bf16 %v994, %v992
    %v997 = vpack.c.bf16 %v995, %v993
    %v998 = vld [vmem:[#allocation14] sm:$0xf]
    %v999 = vld [vmem:[#allocation14 + $0x4] sm:$0xf]
    %v1000 = vld [vmem:[#allocation14 + $0x8] sm:$0xf]
    %v1001 = vld [vmem:[#allocation14 + $0xc] sm:$0xf]
    %v1002 = vld [vmem:[#allocation14 + $0x10] sm:$0xf]
    %v1003 = vld [vmem:[#allocation14 + $0x14] sm:$0xf]
    %v1004 = vld [vmem:[#allocation14 + $0x18] sm:$0xf]
    %v1005 = vld [vmem:[#allocation14 + $0x1c] sm:$0xf]
    %v1006 = vld [vmem:[#allocation14 + $0x20] sm:$0xf]
    %v1007 = vld [vmem:[#allocation14 + $0x24] sm:$0xf]
    %v1008 = vld [vmem:[#allocation14 + $0x28] sm:$0xf]
    %v1009 = vld [vmem:[#allocation14 + $0x2c] sm:$0xf]
    %v1010 = vld [vmem:[#allocation14 + $0x30] sm:$0xf]
    %v1011 = vld [vmem:[#allocation14 + $0x34] sm:$0xf]
    %v1012 = vld [vmem:[#allocation14 + $0x38] sm:$0xf]
    %v1013 = vld [vmem:[#allocation14 + $0x3c] sm:$0xf]
    %v1014 = vld [vmem:[#allocation14 + $0x40] sm:$0xf]
    %v1015 = vld [vmem:[#allocation14 + $0x44] sm:$0xf]
    %v1016 = vld [vmem:[#allocation14 + $0x48] sm:$0xf]
    %v1017 = vld [vmem:[#allocation14 + $0x4c] sm:$0xf]
    %v1018 = vld [vmem:[#allocation14 + $0x50] sm:$0xf]
    %v1019 = vld [vmem:[#allocation14 + $0x54] sm:$0xf]
    %v1020 = vld [vmem:[#allocation14 + $0x58] sm:$0xf]
    %v1021 = vld [vmem:[#allocation14 + $0x5c] sm:$0xf]
    %v1022 = vld [vmem:[#allocation14 + $0x60] sm:$0xf]
    %v1023 = vld [vmem:[#allocation14 + $0x64] sm:$0xf]
    %v1024 = vld [vmem:[#allocation14 + $0x68] sm:$0xf]
    %v1025 = vld [vmem:[#allocation14 + $0x6c] sm:$0xf]
    %v1026 = vld [vmem:[#allocation14 + $0x70] sm:$0xf]
    %v1027 = vld [vmem:[#allocation14 + $0x74] sm:$0xf]
    %v1028 = vld [vmem:[#allocation14 + $0x78] sm:$0xf]
    %v1029 = vld [vmem:[#allocation14 + $0x7c] sm:$0xf]
    %v1030 = vld [vmem:[#allocation16] sm:$0x1]
    %v1032 = vperm.slane %v1030, 0
    %v1066 = vunpack.c.l.b16 %v998
    %v1067 = vunpack.c.l.b16 %v999
    %v1068 = vunpack.c.l.b16 %v1000
    %v1069 = vunpack.c.l.b16 %v1001
    %v1070 = vunpack.c.l.b16 %v1002
    %v1071 = vunpack.c.l.b16 %v1003
    %v1072 = vunpack.c.l.b16 %v1004
    %v1073 = vunpack.c.l.b16 %v1005
    %v1074 = vunpack.c.l.b16 %v1006
    %v1075 = vunpack.c.l.b16 %v1007
    %v1076 = vunpack.c.l.b16 %v1008
    %v1077 = vunpack.c.l.b16 %v1009
    %v1078 = vunpack.c.l.b16 %v1010
    %v1079 = vunpack.c.l.b16 %v1011
    %v1080 = vunpack.c.l.b16 %v1012
    %v1081 = vunpack.c.l.b16 %v1013
    %v1082 = vunpack.c.l.b16 %v1014
    %v1083 = vunpack.c.l.b16 %v1015
    %v1084 = vunpack.c.l.b16 %v1016
    %v1085 = vunpack.c.l.b16 %v1017
    %v1086 = vunpack.c.l.b16 %v1018
    %v1087 = vunpack.c.l.b16 %v1019
    %v1088 = vunpack.c.l.b16 %v1020
    %v1089 = vunpack.c.l.b16 %v1021
    %v1090 = vunpack.c.l.b16 %v1022
    %v1091 = vunpack.c.l.b16 %v1023
    %v1092 = vunpack.c.l.b16 %v1024
    %v1093 = vunpack.c.l.b16 %v1025
    %v1094 = vunpack.c.l.b16 %v1026
    %v1095 = vunpack.c.l.b16 %v1027
    %v1096 = vunpack.c.l.b16 %v1028
    %v1097 = vunpack.c.l.b16 %v1029
    %v1098 = vpack.c.b16 %v1067, %v1066
    %v1099 = vpack.c.b16 %v1069, %v1068
    %v1100 = vpack.c.b16 %v1071, %v1070
    %v1101 = vpack.c.b16 %v1073, %v1072
    %v1102 = vpack.c.b16 %v1075, %v1074
    %v1103 = vpack.c.b16 %v1077, %v1076
    %v1104 = vpack.c.b16 %v1079, %v1078
    %v1105 = vpack.c.b16 %v1081, %v1080
    %v1106 = vpack.c.b16 %v1083, %v1082
    %v1107 = vpack.c.b16 %v1085, %v1084
    %v1108 = vpack.c.b16 %v1087, %v1086
    %v1109 = vpack.c.b16 %v1089, %v1088
    %v1110 = vpack.c.b16 %v1091, %v1090
    %v1111 = vpack.c.b16 %v1093, %v1092
    %v1112 = vpack.c.b16 %v1095, %v1094
    %v1113 = vpack.c.b16 %v1097, %v1096
    %1130 = vmatpush.bf16.msra.mxu0 %v1105
    %1131 = vmatpush.bf16.msra.mxu0 %v1104
    %1132 = vmatpush.bf16.msra.mxu0 %v1103
    %1133 = vmatpush.bf16.msra.mxu0 %v1102
    %1134 = vmatpush.bf16.msra.mxu0 %v1101
    %1135 = vmatpush.bf16.msra.mxu0 %v1100
    %1136 = vmatpush.bf16.msra.mxu0 %v1099
    %1137 = vmatpush.bf16.msra.mxu0 %v1098
    %1138 = vmatmul.bf16.gmra.mxu0 %v996
    %v1139 = vpop.f32.mrf.mxu0
    %v1140 = vadd.f32 %v1032, %v1139
    %v1141 = vpop.f32.mrf.mxu0
    %v1142 = vadd.f32 %v1032, %v1141
    %1143 = vdwg.mxu0
    %1144 = vmatpush.bf16.msra.mxu0 %v1113
    %1145 = vmatpush.bf16.msra.mxu0 %v1112
    %1146 = vmatpush.bf16.msra.mxu0 %v1111
    %1147 = vmatpush.bf16.msra.mxu0 %v1110
    %1148 = vmatpush.bf16.msra.mxu0 %v1109
    %1149 = vmatpush.bf16.msra.mxu0 %v1108
    %1150 = vmatpush.bf16.msra.mxu0 %v1107
    %1151 = vmatpush.bf16.msra.mxu0 %v1106
    %1152 = vmatmul.bf16.gmra.mxu0 %v997
    %v1153 = vpop.f32.mrf.mxu0
    %v1154 = vadd.f32 %v1140, %v1153
    %v1155 = vpop.f32.mrf.mxu0
    %v1156 = vadd.f32 %v1142, %v1155
    %1157 = vdwg.mxu0
    %v1158 = vadd.f32 %v805, %v1154
    %v1159 = vadd.f32 %v806, %v1156
    %v1160 = vld [vmem:[%s13] sm:$0x1]
    %v1161 = vld [vmem:[#allocation17] sm:$0x1]
    %1162 = vadd.xlane.f32.xlu0 %v1158
    %v1163 = vpop.xlane.xlu0 %1162
    %1164 = vadd.xlane.f32.xlu0 %v1159
    %v1165 = vpop.xlane.xlu0 %1164
    %v1166 = vmul.f32 %v1163, %v372
    %v1167 = vmul.f32 %v1165, %v372
    %v1168 = vsub.f32 %v1158, %v1166
    %v1169 = vsub.f32 %v1159, %v1167
    %v1170 = vsel %vm361, %v1168, 0.0
    %v1171 = vsel %vm361, %v1169, 0.0
    %v1172 = vmul.f32 %v1170, %v1170
    %v1173 = vmul.f32 %v1171, %v1171
    %1174 = vadd.xlane.f32.xlu0 %v1172
    %v1175 = vpop.xlane.xlu0 %1174
    %1176 = vadd.xlane.f32.xlu0 %v1173
    %v1177 = vpop.xlane.xlu0 %1176
    %v1178 = vmul.f32 %v1175, %v372
    %v1179 = vmul.f32 %v1177, %v372
    %v1180 = vadd.f32 %v1178, 1e-05
    %v1181 = vadd.f32 %v1179, 1e-05
    %v1182 = vrsqrt.pop %v1180
    %v1183 = vmul.f32 %v1182, %v1180
    %v1184 = vmul.f32 %v1183, %v1182
    %v1185 = vmul.f32 0.5, %v1184
    %v1186 = vsub.f32 1.5, %v1185
    %v1187 = vmul.f32 %v1182, %v1186
    %vm1188 = vweird.f32 %v1180
    %vm1189 = vweird.f32 %v1182
    %vm1190 = vmor %vm1188, %vm1189
    %v1191 = vsel %vm1190, %v1182, %v1187
    %v1192 = vrsqrt.pop %v1181
    %v1193 = vmul.f32 %v1192, %v1181
    %v1194 = vmul.f32 %v1193, %v1192
    %v1195 = vmul.f32 0.5, %v1194
    %v1196 = vsub.f32 1.5, %v1195
    %v1197 = vmul.f32 %v1192, %v1196
    %vm1198 = vweird.f32 %v1181
    %vm1199 = vweird.f32 %v1192
    %vm1200 = vmor %vm1198, %vm1199
    %v1201 = vsel %vm1200, %v1192, %v1197
    %v1202 = vmul.f32 %v1170, %v1191
    %v1203 = vmul.f32 %v1171, %v1201
    %v1205 = vperm.slane %v1160, 0
    %v1207 = vmul.f32 %v1202, %v1205
    %v1208 = vmul.f32 %v1203, %v1205
    %v1210 = vperm.slane %v1161, 0
    %v1212 = vadd.f32 %v1207, %v1210
    %v1213 = vadd.f32 %v1208, %v1210
    %v1214 = vpack.c.bf16 %v1213, %v1212
    %v1215 = vld [vmem:[#allocation19] sm:$0xff]
    %v1216 = vld [vmem:[#allocation19 + $0x8] sm:$0xf]
    %v1217 = vld [vmem:[#allocation19 + $0xc] sm:$0xff]
    %v1218 = vld [vmem:[#allocation19 + $0x14] sm:$0xf]
    %v1219 = vld [vmem:[#allocation19 + $0x18] sm:$0xff]
    %v1220 = vld [vmem:[#allocation19 + $0x20] sm:$0xf]
    %v1221 = vld [vmem:[#allocation19 + $0x24] sm:$0xff]
    %v1222 = vld [vmem:[#allocation19 + $0x2c] sm:$0xf]
    %v1223 = vld [vmem:[#allocation19 + $0x30] sm:$0xff]
    %v1224 = vld [vmem:[#allocation19 + $0x38] sm:$0xf]
    %v1225 = vld [vmem:[#allocation19 + $0x3c] sm:$0xff]
    %v1226 = vld [vmem:[#allocation19 + $0x44] sm:$0xf]
    %v1227 = vld [vmem:[#allocation19 + $0x48] sm:$0xff]
    %v1228 = vld [vmem:[#allocation19 + $0x50] sm:$0xf]
    %v1229 = vld [vmem:[#allocation19 + $0x54] sm:$0xff]
    %v1230 = vld [vmem:[#allocation19 + $0x5c] sm:$0xf]
    %v1231 = vld [vmem:[#allocation19 + $0x60] sm:$0xff]
    %v1232 = vld [vmem:[#allocation19 + $0x68] sm:$0xf]
    %v1233 = vld [vmem:[#allocation19 + $0x6c] sm:$0xff]
    %v1234 = vld [vmem:[#allocation19 + $0x74] sm:$0xf]
    %v1235 = vld [vmem:[#allocation19 + $0x78] sm:$0xff]
    %v1236 = vld [vmem:[#allocation19 + $0x80] sm:$0xf]
    %v1237 = vld [vmem:[#allocation19 + $0x84] sm:$0xff]
    %v1238 = vld [vmem:[#allocation19 + $0x8c] sm:$0xf]
    %v1239 = vld [vmem:[#allocation19 + $0x90] sm:$0xff]
    %v1240 = vld [vmem:[#allocation19 + $0x98] sm:$0xf]
    %v1241 = vld [vmem:[#allocation19 + $0x9c] sm:$0xff]
    %v1242 = vld [vmem:[#allocation19 + $0xa4] sm:$0xf]
    %v1243 = vld [vmem:[#allocation19 + $0xa8] sm:$0xff]
    %v1244 = vld [vmem:[#allocation19 + $0xb0] sm:$0xf]
    %v1245 = vld [vmem:[#allocation19 + $0xb4] sm:$0xff]
    %v1246 = vld [vmem:[#allocation19 + $0xbc] sm:$0xf]
    %v1279 = vunpack.c.l.b16 %v1215
    %v1280 = vunpack.c.h.b16 %v1215
    %v1281 = vunpack.c.l.b16 %v1216
    %v1282 = vunpack.c.l.b16 %v1217
    %v1283 = vunpack.c.h.b16 %v1217
    %v1284 = vunpack.c.l.b16 %v1218
    %v1285 = vunpack.c.l.b16 %v1219
    %v1286 = vunpack.c.h.b16 %v1219
    %v1287 = vunpack.c.l.b16 %v1220
    %v1288 = vunpack.c.l.b16 %v1221
    %v1289 = vunpack.c.h.b16 %v1221
    %v1290 = vunpack.c.l.b16 %v1222
    %v1291 = vunpack.c.l.b16 %v1223
    %v1292 = vunpack.c.h.b16 %v1223
    %v1293 = vunpack.c.l.b16 %v1224
    %v1294 = vunpack.c.l.b16 %v1225
    %v1295 = vunpack.c.h.b16 %v1225
    %v1296 = vunpack.c.l.b16 %v1226
    %v1297 = vunpack.c.l.b16 %v1227
    %v1298 = vunpack.c.h.b16 %v1227
    %v1299 = vunpack.c.l.b16 %v1228
    %v1300 = vunpack.c.l.b16 %v1229
    %v1301 = vunpack.c.h.b16 %v1229
    %v1302 = vunpack.c.l.b16 %v1230
    %v1303 = vunpack.c.l.b16 %v1231
    %v1304 = vunpack.c.h.b16 %v1231
    %v1305 = vunpack.c.l.b16 %v1232
    %v1306 = vunpack.c.l.b16 %v1233
    %v1307 = vunpack.c.h.b16 %v1233
    %v1308 = vunpack.c.l.b16 %v1234
    %v1309 = vunpack.c.l.b16 %v1235
    %v1310 = vunpack.c.h.b16 %v1235
    %v1311 = vunpack.c.l.b16 %v1236
    %v1312 = vunpack.c.l.b16 %v1237
    %v1313 = vunpack.c.h.b16 %v1237
    %v1314 = vunpack.c.l.b16 %v1238
    %v1315 = vunpack.c.l.b16 %v1239
    %v1316 = vunpack.c.h.b16 %v1239
    %v1317 = vunpack.c.l.b16 %v1240
    %v1318 = vunpack.c.l.b16 %v1241
    %v1319 = vunpack.c.h.b16 %v1241
    %v1320 = vunpack.c.l.b16 %v1242
    %v1321 = vunpack.c.l.b16 %v1243
    %v1322 = vunpack.c.h.b16 %v1243
    %v1323 = vunpack.c.l.b16 %v1244
    %v1324 = vunpack.c.l.b16 %v1245
    %v1325 = vunpack.c.h.b16 %v1245
    %v1326 = vunpack.c.l.b16 %v1246
    %v1327 = vpack.c.b16 %v1282, %v1279
    %v1328 = vpack.c.b16 %v1283, %v1280
    %v1329 = vpack.c.b16 %v1284, %v1281
    %v1330 = vpack.c.b16 %v1288, %v1285
    %v1331 = vpack.c.b16 %v1289, %v1286
    %v1332 = vpack.c.b16 %v1290, %v1287
    %v1333 = vpack.c.b16 %v1294, %v1291
    %v1334 = vpack.c.b16 %v1295, %v1292
    %v1335 = vpack.c.b16 %v1296, %v1293
    %v1336 = vpack.c.b16 %v1300, %v1297
    %v1337 = vpack.c.b16 %v1301, %v1298
    %v1338 = vpack.c.b16 %v1302, %v1299
    %v1339 = vpack.c.b16 %v1306, %v1303
    %v1340 = vpack.c.b16 %v1307, %v1304
    %v1341 = vpack.c.b16 %v1308, %v1305
    %v1342 = vpack.c.b16 %v1312, %v1309
    %v1343 = vpack.c.b16 %v1313, %v1310
    %v1344 = vpack.c.b16 %v1314, %v1311
    %v1345 = vpack.c.b16 %v1318, %v1315
    %v1346 = vpack.c.b16 %v1319, %v1316
    %v1347 = vpack.c.b16 %v1320, %v1317
    %v1348 = vpack.c.b16 %v1324, %v1321
    %v1349 = vpack.c.b16 %v1325, %v1322
    %v1350 = vpack.c.b16 %v1326, %v1323
    %1375 = vmatpush.bf16.msra.mxu0 %v1348
    %1376 = vmatpush.bf16.msra.mxu0 %v1345
    %1377 = vmatpush.bf16.msra.mxu0 %v1342
    %1378 = vmatpush.bf16.msra.mxu0 %v1339
    %1379 = vmatpush.bf16.msra.mxu0 %v1336
    %1380 = vmatpush.bf16.msra.mxu0 %v1333
    %1381 = vmatpush.bf16.msra.mxu0 %v1330
    %1382 = vmatpush.bf16.msra.mxu0 %v1327
    %1383 = vmatmul.bf16.gmra.mxu0 %v1214
    %v1384 = vpop.f32.mrf.mxu0
    %v1385 = vadd.f32 0.0, %v1384
    %v1386 = vpop.f32.mrf.mxu0
    %v1387 = vadd.f32 0.0, %v1386
    %1388 = vdwg.mxu0
    %1389 = vmatpush.bf16.msra.mxu0 %v1349
    %1390 = vmatpush.bf16.msra.mxu0 %v1346
    %1391 = vmatpush.bf16.msra.mxu0 %v1343
    %1392 = vmatpush.bf16.msra.mxu0 %v1340
    %1393 = vmatpush.bf16.msra.mxu0 %v1337
    %1394 = vmatpush.bf16.msra.mxu0 %v1334
    %1395 = vmatpush.bf16.msra.mxu0 %v1331
    %1396 = vmatpush.bf16.msra.mxu0 %v1328
    %1397 = vmatmul.bf16.gmra.mxu0 %v1214
    %v1398 = vpop.f32.mrf.mxu0
    %v1399 = vadd.f32 0.0, %v1398
    %v1400 = vpop.f32.mrf.mxu0
    %v1401 = vadd.f32 0.0, %v1400
    %1402 = vdwg.mxu0
    %1403 = vmatpush.bf16.msra.mxu0 %v1350
    %1404 = vmatpush.bf16.msra.mxu0 %v1347
    %1405 = vmatpush.bf16.msra.mxu0 %v1344
    %1406 = vmatpush.bf16.msra.mxu0 %v1341
    %1407 = vmatpush.bf16.msra.mxu0 %v1338
    %1408 = vmatpush.bf16.msra.mxu0 %v1335
    %1409 = vmatpush.bf16.msra.mxu0 %v1332
    %1410 = vmatpush.bf16.msra.mxu0 %v1329
    %1411 = vmatmul.bf16.gmra.mxu0 %v1214
    %v1412 = vpop.f32.mrf.mxu0
    %v1413 = vadd.f32 0.0, %v1412
    %v1414 = vpop.f32.mrf.mxu0
    %v1415 = vadd.f32 0.0, %v1414
    %1416 = vdwg.mxu0
    %v1417 = vpack.c.bf16 %v1385, %v1385
    %v1418 = vpack.c.bf16 %v1399, %v1399
    %v1419 = vpack.c.bf16 %v1413, %v1413
    %1420 = vmatpush.bf16.xpose.msra.mxu0 0
    %1421 = vmatpush.bf16.xpose.msra.mxu0 0
    %1422 = vmatpush.bf16.xpose.msra.mxu0 0
    %1423 = vmatpush.bf16.xpose.msra.mxu0 0
    %1424 = vmatpush.bf16.xpose.msra.mxu0 0
    %1425 = vmatpush.bf16.xpose.msra.mxu0 0
    %1426 = vmatpush.bf16.xpose.msra.mxu0 0
    %1427 = vmatpush.bf16.xpose.msra.mxu0 %v1418
    %1428 = vmatmul.bf16.gmra.mxu0 %v1417
    %v1429 = vpop.f32.mrf.mxu0
    %v1430 = vadd.f32 0.0, %v1429
    %v1431 = vpop.f32.mrf.mxu0
    %1432 = vdwg.mxu0
    %v1433 = vmul.f32 %v1430, 0.17677669
    %v1434 = vsel %vm641, %v1433, -inf
    %1435 = vmax.xlane.f32.xlu0 %v1434
    %v1436 = vpop.xlane.xlu0 %1435
    %v1437 = vsub.f32 %v1433, %v1436
    %v1438 = vmul.f32 %v1437, 1.442695
    %v1439 = vpow.pop %v1438
    %v1440 = vsel %vm641, %v1439, 0.0
    %1441 = vadd.xlane.f32.xlu0 %v1440
    %v1442 = vpop.xlane.xlu0 %1441
    %v1443 = vrcp.pop %v1442
    %v1444 = vmul.f32 %v1439, %v1443
    %v1445 = vpack.c.bf16 %v1444, %v1444
    %v1447 = vsel %vm641, %v1445, 0
    %v1450 = vsel %vm657, %v1419, 0
    %1452 = vmatpush.bf16.msra.mxu0 0
    %1453 = vmatpush.bf16.msra.mxu0 0
    %1454 = vmatpush.bf16.msra.mxu0 0
    %1455 = vmatpush.bf16.msra.mxu0 0
    %1456 = vmatpush.bf16.msra.mxu0 0
    %1457 = vmatpush.bf16.msra.mxu0 0
    %1458 = vmatpush.bf16.msra.mxu0 0
    %1459 = vmatpush.bf16.msra.mxu0 %v1450
    %1460 = vmatmul.bf16.gmra.mxu0 %v1447
    %v1461 = vpop.f32.mrf.mxu0
    %v1462 = vadd.f32 0.0, %v1461
    %v1463 = vpop.f32.mrf.mxu0
    %1464 = vdwg.mxu0
    %v1465 = vpack.c.bf16 %v1387, %v1387
    %v1466 = vpack.c.bf16 %v1401, %v1401
    %v1467 = vpack.c.bf16 %v1415, %v1415
    %1468 = vmatpush.bf16.xpose.msra.mxu0 0
    %1469 = vmatpush.bf16.xpose.msra.mxu0 0
    %1470 = vmatpush.bf16.xpose.msra.mxu0 0
    %1471 = vmatpush.bf16.xpose.msra.mxu0 0
    %1472 = vmatpush.bf16.xpose.msra.mxu0 0
    %1473 = vmatpush.bf16.xpose.msra.mxu0 0
    %1474 = vmatpush.bf16.xpose.msra.mxu0 0
    %1475 = vmatpush.bf16.xpose.msra.mxu0 %v1466
    %1476 = vmatmul.bf16.gmra.mxu0 %v1465
    %v1477 = vpop.f32.mrf.mxu0
    %v1478 = vadd.f32 0.0, %v1477
    %v1479 = vpop.f32.mrf.mxu0
    %1480 = vdwg.mxu0
    %v1481 = vmul.f32 %v1478, 0.17677669
    %v1482 = vsel %vm641, %v1481, -inf
    %1483 = vmax.xlane.f32.xlu0 %v1482
    %v1484 = vpop.xlane.xlu0 %1483
    %v1485 = vsub.f32 %v1481, %v1484
    %v1486 = vmul.f32 %v1485, 1.442695
    %v1487 = vpow.pop %v1486
    %v1488 = vsel %vm641, %v1487, 0.0
    %1489 = vadd.xlane.f32.xlu0 %v1488
    %v1490 = vpop.xlane.xlu0 %1489
    %v1491 = vrcp.pop %v1490
    %v1492 = vmul.f32 %v1487, %v1491
    %v1493 = vpack.c.bf16 %v1492, %v1492
    %v1495 = vsel %vm641, %v1493, 0
    %v1498 = vsel %vm657, %v1467, 0
    %1500 = vmatpush.bf16.msra.mxu0 0
    %1501 = vmatpush.bf16.msra.mxu0 0
    %1502 = vmatpush.bf16.msra.mxu0 0
    %1503 = vmatpush.bf16.msra.mxu0 0
    %1504 = vmatpush.bf16.msra.mxu0 0
    %1505 = vmatpush.bf16.msra.mxu0 0
    %1506 = vmatpush.bf16.msra.mxu0 0
    %1507 = vmatpush.bf16.msra.mxu0 %v1498
    %1508 = vmatmul.bf16.gmra.mxu0 %v1495
    %v1509 = vpop.f32.mrf.mxu0
    %v1510 = vadd.f32 0.0, %v1509
    %v1511 = vpop.f32.mrf.mxu0
    %1512 = vdwg.mxu0
    %v1513 = vpack.c.bf16 %v1510, %v1462
    %v1514 = vld [vmem:[#allocation20] sm:$0xf]
    %v1515 = vld [vmem:[#allocation20 + $0x4] sm:$0xf]
    %v1516 = vld [vmem:[#allocation20 + $0x8] sm:$0xf]
    %v1517 = vld [vmem:[#allocation20 + $0xc] sm:$0xf]
    %v1518 = vld [vmem:[#allocation20 + $0x10] sm:$0xf]
    %v1519 = vld [vmem:[#allocation20 + $0x14] sm:$0xf]
    %v1520 = vld [vmem:[#allocation20 + $0x18] sm:$0xf]
    %v1521 = vld [vmem:[#allocation20 + $0x1c] sm:$0xf]
    %v1522 = vld [vmem:[#allocation20 + $0x20] sm:$0xf]
    %v1523 = vld [vmem:[#allocation20 + $0x24] sm:$0xf]
    %v1524 = vld [vmem:[#allocation20 + $0x28] sm:$0xf]
    %v1525 = vld [vmem:[#allocation20 + $0x2c] sm:$0xf]
    %v1526 = vld [vmem:[#allocation20 + $0x30] sm:$0xf]
    %v1527 = vld [vmem:[#allocation20 + $0x34] sm:$0xf]
    %v1528 = vld [vmem:[#allocation20 + $0x38] sm:$0xf]
    %v1529 = vld [vmem:[#allocation20 + $0x3c] sm:$0xf]
    %v1530 = vld [vmem:[%s17] sm:$0x1]
    %v1532 = vperm.slane %v1530, 0
    %v1550 = vunpack.c.l.b16 %v1514
    %v1551 = vunpack.c.l.b16 %v1515
    %v1552 = vunpack.c.l.b16 %v1516
    %v1553 = vunpack.c.l.b16 %v1517
    %v1554 = vunpack.c.l.b16 %v1518
    %v1555 = vunpack.c.l.b16 %v1519
    %v1556 = vunpack.c.l.b16 %v1520
    %v1557 = vunpack.c.l.b16 %v1521
    %v1558 = vunpack.c.l.b16 %v1522
    %v1559 = vunpack.c.l.b16 %v1523
    %v1560 = vunpack.c.l.b16 %v1524
    %v1561 = vunpack.c.l.b16 %v1525
    %v1562 = vunpack.c.l.b16 %v1526
    %v1563 = vunpack.c.l.b16 %v1527
    %v1564 = vunpack.c.l.b16 %v1528
    %v1565 = vunpack.c.l.b16 %v1529
    %v1566 = vpack.c.b16 %v1551, %v1550
    %v1567 = vpack.c.b16 %v1553, %v1552
    %v1568 = vpack.c.b16 %v1555, %v1554
    %v1569 = vpack.c.b16 %v1557, %v1556
    %v1570 = vpack.c.b16 %v1559, %v1558
    %v1571 = vpack.c.b16 %v1561, %v1560
    %v1572 = vpack.c.b16 %v1563, %v1562
    %v1573 = vpack.c.b16 %v1565, %v1564
    %1582 = vmatpush.bf16.msra.mxu0 %v1573
    %1583 = vmatpush.bf16.msra.mxu0 %v1572
    %1584 = vmatpush.bf16.msra.mxu0 %v1571
    %1585 = vmatpush.bf16.msra.mxu0 %v1570
    %1586 = vmatpush.bf16.msra.mxu0 %v1569
    %1587 = vmatpush.bf16.msra.mxu0 %v1568
    %1588 = vmatpush.bf16.msra.mxu0 %v1567
    %1589 = vmatpush.bf16.msra.mxu0 %v1566
    %1590 = vmatmul.bf16.gmra.mxu0 %v1513
    %v1591 = vpop.f32.mrf.mxu0
    %v1592 = vadd.f32 %v1532, %v1591
    %v1593 = vpop.f32.mrf.mxu0
    %v1594 = vadd.f32 %v1532, %v1593
    %1595 = vdwg.mxu0
    %v1596 = vadd.f32 %v1158, %v1592
    %v1597 = vadd.f32 %v1159, %v1594
    %v1598 = vld [vmem:[%s18] sm:$0x1]
    %v1599 = vld [vmem:[#allocation22] sm:$0x1]
    %1600 = vadd.xlane.f32.xlu0 %v1596
    %v1601 = vpop.xlane.xlu0 %1600
    %1602 = vadd.xlane.f32.xlu0 %v1597
    %v1603 = vpop.xlane.xlu0 %1602
    %v1604 = vmul.f32 %v1601, %v372
    %v1605 = vmul.f32 %v1603, %v372
    %v1606 = vsub.f32 %v1596, %v1604
    %v1607 = vsub.f32 %v1597, %v1605
    %v1608 = vsel %vm361, %v1606, 0.0
    %v1609 = vsel %vm361, %v1607, 0.0
    %v1610 = vmul.f32 %v1608, %v1608
    %v1611 = vmul.f32 %v1609, %v1609
    %1612 = vadd.xlane.f32.xlu0 %v1610
    %v1613 = vpop.xlane.xlu0 %1612
    %1614 = vadd.xlane.f32.xlu0 %v1611
    %v1615 = vpop.xlane.xlu0 %1614
    %v1616 = vmul.f32 %v1613, %v372
    %v1617 = vmul.f32 %v1615, %v372
    %v1618 = vadd.f32 %v1616, 1e-05
    %v1619 = vadd.f32 %v1617, 1e-05
    %v1620 = vrsqrt.pop %v1618
    %v1621 = vmul.f32 %v1620, %v1618
    %v1622 = vmul.f32 %v1621, %v1620
    %v1623 = vmul.f32 0.5, %v1622
    %v1624 = vsub.f32 1.5, %v1623
    %v1625 = vmul.f32 %v1620, %v1624
    %vm1626 = vweird.f32 %v1618
    %vm1627 = vweird.f32 %v1620
    %vm1628 = vmor %vm1626, %vm1627
    %v1629 = vsel %vm1628, %v1620, %v1625
    %v1630 = vrsqrt.pop %v1619
    %v1631 = vmul.f32 %v1630, %v1619
    %v1632 = vmul.f32 %v1631, %v1630
    %v1633 = vmul.f32 0.5, %v1632
    %v1634 = vsub.f32 1.5, %v1633
    %v1635 = vmul.f32 %v1630, %v1634
    %vm1636 = vweird.f32 %v1619
    %vm1637 = vweird.f32 %v1630
    %vm1638 = vmor %vm1636, %vm1637
    %v1639 = vsel %vm1638, %v1630, %v1635
    %v1640 = vmul.f32 %v1608, %v1629
    %v1641 = vmul.f32 %v1609, %v1639
    %v1643 = vperm.slane %v1598, 0
    %v1645 = vmul.f32 %v1640, %v1643
    %v1646 = vmul.f32 %v1641, %v1643
    %v1648 = vperm.slane %v1599, 0
    %v1650 = vadd.f32 %v1645, %v1648
    %v1651 = vadd.f32 %v1646, %v1648
    %v1652 = vpack.c.bf16 %v1651, %v1650
    %v1653 = vld [vmem:[#allocation23] sm:$0xff]
    %v1654 = vld [vmem:[#allocation23 + $0x8] sm:$0xff]
    %v1655 = vld [vmem:[#allocation23 + $0x10] sm:$0xff]
    %v1656 = vld [vmem:[#allocation23 + $0x18] sm:$0xff]
    %v1657 = vld [vmem:[#allocation23 + $0x20] sm:$0xff]
    %v1658 = vld [vmem:[#allocation23 + $0x28] sm:$0xff]
    %v1659 = vld [vmem:[#allocation23 + $0x30] sm:$0xff]
    %v1660 = vld [vmem:[#allocation23 + $0x38] sm:$0xff]
    %v1661 = vld [vmem:[#allocation23 + $0x40] sm:$0xff]
    %v1662 = vld [vmem:[#allocation23 + $0x48] sm:$0xff]
    %v1663 = vld [vmem:[#allocation23 + $0x50] sm:$0xff]
    %v1664 = vld [vmem:[#allocation23 + $0x58] sm:$0xff]
    %v1665 = vld [vmem:[#allocation23 + $0x60] sm:$0xff]
    %v1666 = vld [vmem:[#allocation23 + $0x68] sm:$0xff]
    %v1667 = vld [vmem:[#allocation23 + $0x70] sm:$0xff]
    %v1668 = vld [vmem:[#allocation23 + $0x78] sm:$0xff]
    %v1669 = vld [vmem:[%s21] sm:$0x3]
    %v1671 = vperm.slane %v1669, 0
    %v1672 = vperm.slane %v1669, 1
    %v1691 = vunpack.c.l.b16 %v1653
    %v1692 = vunpack.c.h.b16 %v1653
    %v1693 = vunpack.c.l.b16 %v1654
    %v1694 = vunpack.c.h.b16 %v1654
    %v1695 = vunpack.c.l.b16 %v1655
    %v1696 = vunpack.c.h.b16 %v1655
    %v1697 = vunpack.c.l.b16 %v1656
    %v1698 = vunpack.c.h.b16 %v1656
    %v1699 = vunpack.c.l.b16 %v1657
    %v1700 = vunpack.c.h.b16 %v1657
    %v1701 = vunpack.c.l.b16 %v1658
    %v1702 = vunpack.c.h.b16 %v1658
    %v1703 = vunpack.c.l.b16 %v1659
    %v1704 = vunpack.c.h.b16 %v1659
    %v1705 = vunpack.c.l.b16 %v1660
    %v1706 = vunpack.c.h.b16 %v1660
    %v1707 = vunpack.c.l.b16 %v1661
    %v1708 = vunpack.c.h.b16 %v1661
    %v1709 = vunpack.c.l.b16 %v1662
    %v1710 = vunpack.c.h.b16 %v1662
    %v1711 = vunpack.c.l.b16 %v1663
    %v1712 = vunpack.c.h.b16 %v1663
    %v1713 = vunpack.c.l.b16 %v1664
    %v1714 = vunpack.c.h.b16 %v1664
    %v1715 = vunpack.c.l.b16 %v1665
    %v1716 = vunpack.c.h.b16 %v1665
    %v1717 = vunpack.c.l.b16 %v1666
    %v1718 = vunpack.c.h.b16 %v1666
    %v1719 = vunpack.c.l.b16 %v1667
    %v1720 = vunpack.c.h.b16 %v1667
    %v1721 = vunpack.c.l.b16 %v1668
    %v1722 = vunpack.c.h.b16 %v1668
    %v1723 = vpack.c.b16 %v1693, %v1691
    %v1724 = vpack.c.b16 %v1694, %v1692
    %v1725 = vpack.c.b16 %v1697, %v1695
    %v1726 = vpack.c.b16 %v1698, %v1696
    %v1727 = vpack.c.b16 %v1701, %v1699
    %v1728 = vpack.c.b16 %v1702, %v1700
    %v1729 = vpack.c.b16 %v1705, %v1703
    %v1730 = vpack.c.b16 %v1706, %v1704
    %v1731 = vpack.c.b16 %v1709, %v1707
    %v1732 = vpack.c.b16 %v1710, %v1708
    %v1733 = vpack.c.b16 %v1713, %v1711
    %v1734 = vpack.c.b16 %v1714, %v1712
    %v1735 = vpack.c.b16 %v1717, %v1715
    %v1736 = vpack.c.b16 %v1718, %v1716
    %v1737 = vpack.c.b16 %v1721, %v1719
    %v1738 = vpack.c.b16 %v1722, %v1720
    %1755 = vmatpush.bf16.msra.mxu0 %v1737
    %1756 = vmatpush.bf16.msra.mxu0 %v1735
    %1757 = vmatpush.bf16.msra.mxu0 %v1733
    %1758 = vmatpush.bf16.msra.mxu0 %v1731
    %1759 = vmatpush.bf16.msra.mxu0 %v1729
    %1760 = vmatpush.bf16.msra.mxu0 %v1727
    %1761 = vmatpush.bf16.msra.mxu0 %v1725
    %1762 = vmatpush.bf16.msra.mxu0 %v1723
    %1763 = vmatmul.bf16.gmra.mxu0 %v1652
    %v1764 = vpop.f32.mrf.mxu0
    %v1765 = vadd.f32 %v1671, %v1764
    %v1766 = vpop.f32.mrf.mxu0
    %v1767 = vadd.f32 %v1671, %v1766
    %1768 = vdwg.mxu0
    %1769 = vmatpush.bf16.msra.mxu0 %v1738
    %1770 = vmatpush.bf16.msra.mxu0 %v1736
    %1771 = vmatpush.bf16.msra.mxu0 %v1734
    %1772 = vmatpush.bf16.msra.mxu0 %v1732
    %1773 = vmatpush.bf16.msra.mxu0 %v1730
    %1774 = vmatpush.bf16.msra.mxu0 %v1728
    %1775 = vmatpush.bf16.msra.mxu0 %v1726
    %1776 = vmatpush.bf16.msra.mxu0 %v1724
    %1777 = vmatmul.bf16.gmra.mxu0 %v1652
    %v1778 = vpop.f32.mrf.mxu0
    %v1779 = vadd.f32 %v1672, %v1778
    %v1780 = vpop.f32.mrf.mxu0
    %v1781 = vadd.f32 %v1672, %v1780
    %1782 = vdwg.mxu0
    %v1783 = vmax.f32 %v1765, 0.0
    %v1784 = vmax.f32 %v1779, 0.0
    %v1785 = vmax.f32 %v1767, 0.0
    %v1786 = vmax.f32 %v1781, 0.0
    %v1787 = vpack.c.bf16 %v1785, %v1783
    %v1788 = vpack.c.bf16 %v1786, %v1784
    %v1789 = vld [vmem:[#allocation25] sm:$0xf]
    %v1790 = vld [vmem:[#allocation25 + $0x4] sm:$0xf]
    %v1791 = vld [vmem:[#allocation25 + $0x8] sm:$0xf]
    %v1792 = vld [vmem:[#allocation25 + $0xc] sm:$0xf]
    %v1793 = vld [vmem:[#allocation25 + $0x10] sm:$0xf]
    %v1794 = vld [vmem:[#allocation25 + $0x14] sm:$0xf]
    %v1795 = vld [vmem:[#allocation25 + $0x18] sm:$0xf]
    %v1796 = vld [vmem:[#allocation25 + $0x1c] sm:$0xf]
    %v1797 = vld [vmem:[#allocation25 + $0x20] sm:$0xf]
    %v1798 = vld [vmem:[#allocation25 + $0x24] sm:$0xf]
    %v1799 = vld [vmem:[#allocation25 + $0x28] sm:$0xf]
    %v1800 = vld [vmem:[#allocation25 + $0x2c] sm:$0xf]
    %v1801 = vld [vmem:[#allocation25 + $0x30] sm:$0xf]
    %v1802 = vld [vmem:[#allocation25 + $0x34] sm:$0xf]
    %v1803 = vld [vmem:[#allocation25 + $0x38] sm:$0xf]
    %v1804 = vld [vmem:[#allocation25 + $0x3c] sm:$0xf]
    %v1805 = vld [vmem:[#allocation25 + $0x40] sm:$0xf]
    %v1806 = vld [vmem:[#allocation25 + $0x44] sm:$0xf]
    %v1807 = vld [vmem:[#allocation25 + $0x48] sm:$0xf]
    %v1808 = vld [vmem:[#allocation25 + $0x4c] sm:$0xf]
    %v1809 = vld [vmem:[#allocation25 + $0x50] sm:$0xf]
    %v1810 = vld [vmem:[#allocation25 + $0x54] sm:$0xf]
    %v1811 = vld [vmem:[#allocation25 + $0x58] sm:$0xf]
    %v1812 = vld [vmem:[#allocation25 + $0x5c] sm:$0xf]
    %v1813 = vld [vmem:[#allocation25 + $0x60] sm:$0xf]
    %v1814 = vld [vmem:[#allocation25 + $0x64] sm:$0xf]
    %v1815 = vld [vmem:[#allocation25 + $0x68] sm:$0xf]
    %v1816 = vld [vmem:[#allocation25 + $0x6c] sm:$0xf]
    %v1817 = vld [vmem:[#allocation25 + $0x70] sm:$0xf]
    %v1818 = vld [vmem:[#allocation25 + $0x74] sm:$0xf]
    %v1819 = vld [vmem:[#allocation25 + $0x78] sm:$0xf]
    %v1820 = vld [vmem:[#allocation25 + $0x7c] sm:$0xf]
    %v1821 = vld [vmem:[#allocation26] sm:$0x1]
    %v1823 = vperm.slane %v1821, 0
    %v1857 = vunpack.c.l.b16 %v1789
    %v1858 = vunpack.c.l.b16 %v1790
    %v1859 = vunpack.c.l.b16 %v1791
    %v1860 = vunpack.c.l.b16 %v1792
    %v1861 = vunpack.c.l.b16 %v1793
    %v1862 = vunpack.c.l.b16 %v1794
    %v1863 = vunpack.c.l.b16 %v1795
    %v1864 = vunpack.c.l.b16 %v1796
    %v1865 = vunpack.c.l.b16 %v1797
    %v1866 = vunpack.c.l.b16 %v1798
    %v1867 = vunpack.c.l.b16 %v1799
    %v1868 = vunpack.c.l.b16 %v1800
    %v1869 = vunpack.c.l.b16 %v1801
    %v1870 = vunpack.c.l.b16 %v1802
    %v1871 = vunpack.c.l.b16 %v1803
    %v1872 = vunpack.c.l.b16 %v1804
    %v1873 = vunpack.c.l.b16 %v1805
    %v1874 = vunpack.c.l.b16 %v1806
    %v1875 = vunpack.c.l.b16 %v1807
    %v1876 = vunpack.c.l.b16 %v1808
    %v1877 = vunpack.c.l.b16 %v1809
    %v1878 = vunpack.c.l.b16 %v1810
    %v1879 = vunpack.c.l.b16 %v1811
    %v1880 = vunpack.c.l.b16 %v1812
    %v1881 = vunpack.c.l.b16 %v1813
    %v1882 = vunpack.c.l.b16 %v1814
    %v1883 = vunpack.c.l.b16 %v1815
    %v1884 = vunpack.c.l.b16 %v1816
    %v1885 = vunpack.c.l.b16 %v1817
    %v1886 = vunpack.c.l.b16 %v1818
    %v1887 = vunpack.c.l.b16 %v1819
    %v1888 = vunpack.c.l.b16 %v1820
    %v1889 = vpack.c.b16 %v1858, %v1857
    %v1890 = vpack.c.b16 %v1860, %v1859
    %v1891 = vpack.c.b16 %v1862, %v1861
    %v1892 = vpack.c.b16 %v1864, %v1863
    %v1893 = vpack.c.b16 %v1866, %v1865
    %v1894 = vpack.c.b16 %v1868, %v1867
    %v1895 = vpack.c.b16 %v1870, %v1869
    %v1896 = vpack.c.b16 %v1872, %v1871
    %v1897 = vpack.c.b16 %v1874, %v1873
    %v1898 = vpack.c.b16 %v1876, %v1875
    %v1899 = vpack.c.b16 %v1878, %v1877
    %v1900 = vpack.c.b16 %v1880, %v1879
    %v1901 = vpack.c.b16 %v1882, %v1881
    %v1902 = vpack.c.b16 %v1884, %v1883
    %v1903 = vpack.c.b16 %v1886, %v1885
    %v1904 = vpack.c.b16 %v1888, %v1887
    %1921 = vmatpush.bf16.msra.mxu0 %v1896
    %1922 = vmatpush.bf16.msra.mxu0 %v1895
    %1923 = vmatpush.bf16.msra.mxu0 %v1894
    %1924 = vmatpush.bf16.msra.mxu0 %v1893
    %1925 = vmatpush.bf16.msra.mxu0 %v1892
    %1926 = vmatpush.bf16.msra.mxu0 %v1891
    %1927 = vmatpush.bf16.msra.mxu0 %v1890
    %1928 = vmatpush.bf16.msra.mxu0 %v1889
    %1929 = vmatmul.bf16.gmra.mxu0 %v1787
    %v1930 = vpop.f32.mrf.mxu0
    %v1931 = vadd.f32 %v1823, %v1930
    %v1932 = vpop.f32.mrf.mxu0
    %v1933 = vadd.f32 %v1823, %v1932
    %1934 = vdwg.mxu0
    %1935 = vmatpush.bf16.msra.mxu0 %v1904
    %1936 = vmatpush.bf16.msra.mxu0 %v1903
    %1937 = vmatpush.bf16.msra.mxu0 %v1902
    %1938 = vmatpush.bf16.msra.mxu0 %v1901
    %1939 = vmatpush.bf16.msra.mxu0 %v1900
    %1940 = vmatpush.bf16.msra.mxu0 %v1899
    %1941 = vmatpush.bf16.msra.mxu0 %v1898
    %1942 = vmatpush.bf16.msra.mxu0 %v1897
    %1943 = vmatmul.bf16.gmra.mxu0 %v1788
    %v1944 = vpop.f32.mrf.mxu0
    %v1945 = vadd.f32 %v1931, %v1944
    %v1946 = vpop.f32.mrf.mxu0
    %v1947 = vadd.f32 %v1933, %v1946
    %1948 = vdwg.mxu0
    %v1949 = vadd.f32 %v1596, %v1945
    %v1950 = vadd.f32 %v1597, %v1947
    %v1951 = vld [vmem:[%s24] sm:$0x1]
    %v1952 = vld [vmem:[%s25] sm:$0x1]
    %1953 = vadd.xlane.f32.xlu0 %v1949
    %v1954 = vpop.xlane.xlu0 %1953
    %1955 = vadd.xlane.f32.xlu0 %v1950
    %v1956 = vpop.xlane.xlu0 %1955
    %v1957 = vmul.f32 %v1954, %v372
    %v1958 = vmul.f32 %v1956, %v372
    %v1959 = vsub.f32 %v1949, %v1957
    %v1960 = vsub.f32 %v1950, %v1958
    %v1961 = vsel %vm361, %v1959, 0.0
    %v1962 = vsel %vm361, %v1960, 0.0
    %v1963 = vmul.f32 %v1961, %v1961
    %v1964 = vmul.f32 %v1962, %v1962
    %1965 = vadd.xlane.f32.xlu0 %v1963
    %v1966 = vpop.xlane.xlu0 %1965
    %1967 = vadd.xlane.f32.xlu0 %v1964
    %v1968 = vpop.xlane.xlu0 %1967
    %v1969 = vmul.f32 %v1966, %v372
    %v1970 = vmul.f32 %v1968, %v372
    %v1971 = vadd.f32 %v1969, 1e-05
    %v1972 = vadd.f32 %v1970, 1e-05
    %v1973 = vrsqrt.pop %v1971
    %v1974 = vmul.f32 %v1973, %v1971
    %v1975 = vmul.f32 %v1974, %v1973
    %v1976 = vmul.f32 0.5, %v1975
    %v1977 = vsub.f32 1.5, %v1976
    %v1978 = vmul.f32 %v1973, %v1977
    %vm1979 = vweird.f32 %v1971
    %vm1980 = vweird.f32 %v1973
    %vm1981 = vmor %vm1979, %vm1980
    %v1982 = vsel %vm1981, %v1973, %v1978
    %v1983 = vrsqrt.pop %v1972
    %v1984 = vmul.f32 %v1983, %v1972
    %v1985 = vmul.f32 %v1984, %v1983
    %v1986 = vmul.f32 0.5, %v1985
    %v1987 = vsub.f32 1.5, %v1986
    %v1988 = vmul.f32 %v1983, %v1987
    %vm1989 = vweird.f32 %v1972
    %vm1990 = vweird.f32 %v1983
    %vm1991 = vmor %vm1989, %vm1990
    %v1992 = vsel %vm1991, %v1983, %v1988
    %v1993 = vmul.f32 %v1961, %v1982
    %v1994 = vmul.f32 %v1962, %v1992
    %v1996 = vperm.slane %v1951, 0
    %v1998 = vmul.f32 %v1993, %v1996
    %v1999 = vmul.f32 %v1994, %v1996
    %v2001 = vperm.slane %v1952, 0
    %v2003 = vadd.f32 %v1998, %v2001
    %v2004 = vadd.f32 %v1999, %v2001
    %v2005 = vpack.c.bf16 %v2004, %v2003
    %v2006 = vld [vmem:[#allocation28] sm:$0xff]
    %v2007 = vld [vmem:[#allocation28 + $0x8] sm:$0xff]
    %v2008 = vld [vmem:[#allocation28 + $0x10] sm:$0xff]
    %v2009 = vld [vmem:[#allocation28 + $0x18] sm:$0xff]
    %v2010 = vld [vmem:[#allocation28 + $0x20] sm:$0xff]
    %v2011 = vld [vmem:[#allocation28 + $0x28] sm:$0xff]
    %v2012 = vld [vmem:[#allocation28 + $0x30] sm:$0xff]
    %v2013 = vld [vmem:[#allocation28 + $0x38] sm:$0xff]
    %v2014 = vld [vmem:[#allocation28 + $0x40] sm:$0xff]
    %v2015 = vld [vmem:[#allocation28 + $0x48] sm:$0xff]
    %v2016 = vld [vmem:[#allocation28 + $0x50] sm:$0xff]
    %v2017 = vld [vmem:[#allocation28 + $0x58] sm:$0xff]
    %v2018 = vld [vmem:[#allocation28 + $0x60] sm:$0xff]
    %v2019 = vld [vmem:[#allocation28 + $0x68] sm:$0xff]
    %v2020 = vld [vmem:[#allocation28 + $0x70] sm:$0xff]
    %v2021 = vld [vmem:[#allocation28 + $0x78] sm:$0xff]
    %v2022 = vld [vmem:[#allocation28 + $0x80] sm:$0xff]
    %v2023 = vld [vmem:[#allocation28 + $0x88] sm:$0xff]
    %v2024 = vld [vmem:[#allocation28 + $0x90] sm:$0xff]
    %v2025 = vld [vmem:[#allocation28 + $0x98] sm:$0xff]
    %v2026 = vld [vmem:[#allocation28 + $0xa0] sm:$0xff]
    %v2027 = vld [vmem:[#allocation28 + $0xa8] sm:$0xff]
    %v2028 = vld [vmem:[#allocation28 + $0xb0] sm:$0xff]
    %v2029 = vld [vmem:[#allocation28 + $0xb8] sm:$0xff]
    %v2030 = vld [vmem:[#allocation28 + $0xc0] sm:$0xff]
    %v2031 = vld [vmem:[#allocation28 + $0xc8] sm:$0xff]
    %v2032 = vld [vmem:[#allocation28 + $0xd0] sm:$0xff]
    %v2033 = vld [vmem:[#allocation28 + $0xd8] sm:$0xff]
    %v2034 = vld [vmem:[#allocation28 + $0xe0] sm:$0xff]
    %v2035 = vld [vmem:[#allocation28 + $0xe8] sm:$0xff]
    %v2036 = vld [vmem:[#allocation28 + $0xf0] sm:$0xff]
    %v2037 = vld [vmem:[#allocation28 + $0xf8] sm:$0xff]
    %v2038 = vld [vmem:[#allocation28 + $0x100] sm:$0xff]
    %v2039 = vld [vmem:[#allocation28 + $0x108] sm:$0xff]
    %v2040 = vld [vmem:[#allocation28 + $0x110] sm:$0xff]
    %v2041 = vld [vmem:[#allocation28 + $0x118] sm:$0xff]
    %v2042 = vld [vmem:[#allocation28 + $0x120] sm:$0xff]
    %v2043 = vld [vmem:[#allocation28 + $0x128] sm:$0xff]
    %v2044 = vld [vmem:[#allocation28 + $0x130] sm:$0xff]
    %v2045 = vld [vmem:[#allocation28 + $0x138] sm:$0xff]
    %v2046 = vld [vmem:[#allocation28 + $0x140] sm:$0xff]
    %v2047 = vld [vmem:[#allocation28 + $0x148] sm:$0xff]
    %v2048 = vld [vmem:[#allocation28 + $0x150] sm:$0xff]
    %v2049 = vld [vmem:[#allocation28 + $0x158] sm:$0xff]
    %v2050 = vld [vmem:[#allocation28 + $0x160] sm:$0xff]
    %v2051 = vld [vmem:[#allocation28 + $0x168] sm:$0xff]
    %v2052 = vld [vmem:[#allocation28 + $0x170] sm:$0xff]
    %v2053 = vld [vmem:[#allocation28 + $0x178] sm:$0xff]
    %v2054 = vld [vmem:[#allocation28 + $0x180] sm:$0xff]
    %v2055 = vld [vmem:[#allocation28 + $0x188] sm:$0xff]
    %v2056 = vld [vmem:[#allocation28 + $0x190] sm:$0xff]
    %v2057 = vld [vmem:[#allocation28 + $0x198] sm:$0xff]
    %v2058 = vld [vmem:[#allocation28 + $0x1a0] sm:$0xff]
    %v2059 = vld [vmem:[#allocation28 + $0x1a8] sm:$0xff]
    %v2060 = vld [vmem:[#allocation28 + $0x1b0] sm:$0xff]
    %v2061 = vld [vmem:[#allocation28 + $0x1b8] sm:$0xff]
    %v2062 = vld [vmem:[#allocation28 + $0x1c0] sm:$0xff]
    %v2063 = vld [vmem:[#allocation28 + $0x1c8] sm:$0xff]
    %v2064 = vld [vmem:[#allocation28 + $0x1d0] sm:$0xff]
    %v2065 = vld [vmem:[#allocation28 + $0x1d8] sm:$0xff]
    %v2066 = vld [vmem:[#allocation28 + $0x1e0] sm:$0xff]
    %v2067 = vld [vmem:[#allocation28 + $0x1e8] sm:$0xff]
    %v2068 = vld [vmem:[#allocation28 + $0x1f0] sm:$0xff]
    %v2069 = vld [vmem:[#allocation28 + $0x1f8] sm:$0xff]
    %v2134 = vunpack.c.l.b16 %v2006
    %v2135 = vunpack.c.h.b16 %v2006
    %v2136 = vunpack.c.l.b16 %v2007
    %v2137 = vunpack.c.h.b16 %v2007
    %v2138 = vunpack.c.l.b16 %v2008
    %v2139 = vunpack.c.h.b16 %v2008
    %v2140 = vunpack.c.l.b16 %v2009
    %v2141 = vunpack.c.h.b16 %v2009
    %v2142 = vunpack.c.l.b16 %v2010
    %v2143 = vunpack.c.h.b16 %v2010
    %v2144 = vunpack.c.l.b16 %v2011
    %v2145 = vunpack.c.h.b16 %v2011
    %v2146 = vunpack.c.l.b16 %v2012
    %v2147 = vunpack.c.h.b16 %v2012
    %v2148 = vunpack.c.l.b16 %v2013
    %v2149 = vunpack.c.h.b16 %v2013
    %v2150 = vunpack.c.l.b16 %v2014
    %v2151 = vunpack.c.h.b16 %v2014
    %v2152 = vunpack.c.l.b16 %v2015
    %v2153 = vunpack.c.h.b16 %v2015
    %v2154 = vunpack.c.l.b16 %v2016
    %v2155 = vunpack.c.h.b16 %v2016
    %v2156 = vunpack.c.l.b16 %v2017
    %v2157 = vunpack.c.h.b16 %v2017
    %v2158 = vunpack.c.l.b16 %v2018
    %v2159 = vunpack.c.h.b16 %v2018
    %v2160 = vunpack.c.l.b16 %v2019
    %v2161 = vunpack.c.h.b16 %v2019
    %v2162 = vunpack.c.l.b16 %v2020
    %v2163 = vunpack.c.h.b16 %v2020
    %v2164 = vunpack.c.l.b16 %v2021
    %v2165 = vunpack.c.h.b16 %v2021
    %v2166 = vunpack.c.l.b16 %v2022
    %v2167 = vunpack.c.h.b16 %v2022
    %v2168 = vunpack.c.l.b16 %v2023
    %v2169 = vunpack.c.h.b16 %v2023
    %v2170 = vunpack.c.l.b16 %v2024
    %v2171 = vunpack.c.h.b16 %v2024
    %v2172 = vunpack.c.l.b16 %v2025
    %v2173 = vunpack.c.h.b16 %v2025
    %v2174 = vunpack.c.l.b16 %v2026
    %v2175 = vunpack.c.h.b16 %v2026
    %v2176 = vunpack.c.l.b16 %v2027
    %v2177 = vunpack.c.h.b16 %v2027
    %v2178 = vunpack.c.l.b16 %v2028
    %v2179 = vunpack.c.h.b16 %v2028
    %v2180 = vunpack.c.l.b16 %v2029
    %v2181 = vunpack.c.h.b16 %v2029
    %v2182 = vunpack.c.l.b16 %v2030
    %v2183 = vunpack.c.h.b16 %v2030
    %v2184 = vunpack.c.l.b16 %v2031
    %v2185 = vunpack.c.h.b16 %v2031
    %v2186 = vunpack.c.l.b16 %v2032
    %v2187 = vunpack.c.h.b16 %v2032
    %v2188 = vunpack.c.l.b16 %v2033
    %v2189 = vunpack.c.h.b16 %v2033
    %v2190 = vunpack.c.l.b16 %v2034
    %v2191 = vunpack.c.h.b16 %v2034
    %v2192 = vunpack.c.l.b16 %v2035
    %v2193 = vunpack.c.h.b16 %v2035
    %v2194 = vunpack.c.l.b16 %v2036
    %v2195 = vunpack.c.h.b16 %v2036
    %v2196 = vunpack.c.l.b16 %v2037
    %v2197 = vunpack.c.h.b16 %v2037
    %v2198 = vunpack.c.l.b16 %v2038
    %v2199 = vunpack.c.h.b16 %v2038
    %v2200 = vunpack.c.l.b16 %v2039
    %v2201 = vunpack.c.h.b16 %v2039
    %v2202 = vunpack.c.l.b16 %v2040
    %v2203 = vunpack.c.h.b16 %v2040
    %v2204 = vunpack.c.l.b16 %v2041
    %v2205 = vunpack.c.h.b16 %v2041
    %v2206 = vunpack.c.l.b16 %v2042
    %v2207 = vunpack.c.h.b16 %v2042
    %v2208 = vunpack.c.l.b16 %v2043
    %v2209 = vunpack.c.h.b16 %v2043
    %v2210 = vunpack.c.l.b16 %v2044
    %v2211 = vunpack.c.h.b16 %v2044
    %v2212 = vunpack.c.l.b16 %v2045
    %v2213 = vunpack.c.h.b16 %v2045
    %v2214 = vunpack.c.l.b16 %v2046
    %v2215 = vunpack.c.h.b16 %v2046
    %v2216 = vunpack.c.l.b16 %v2047
    %v2217 = vunpack.c.h.b16 %v2047
    %v2218 = vunpack.c.l.b16 %v2048
    %v2219 = vunpack.c.h.b16 %v2048
    %v2220 = vunpack.c.l.b16 %v2049
    %v2221 = vunpack.c.h.b16 %v2049
    %v2222 = vunpack.c.l.b16 %v2050
    %v2223 = vunpack.c.h.b16 %v2050
    %v2224 = vunpack.c.l.b16 %v2051
    %v2225 = vunpack.c.h.b16 %v2051
    %v2226 = vunpack.c.l.b16 %v2052
    %v2227 = vunpack.c.h.b16 %v2052
    %v2228 = vunpack.c.l.b16 %v2053
    %v2229 = vunpack.c.h.b16 %v2053
    %v2230 = vunpack.c.l.b16 %v2054
    %v2231 = vunpack.c.h.b16 %v2054
    %v2232 = vunpack.c.l.b16 %v2055
    %v2233 = vunpack.c.h.b16 %v2055
    %v2234 = vunpack.c.l.b16 %v2056
    %v2235 = vunpack.c.h.b16 %v2056
    %v2236 = vunpack.c.l.b16 %v2057
    %v2237 = vunpack.c.h.b16 %v2057
    %v2238 = vunpack.c.l.b16 %v2058
    %v2239 = vunpack.c.h.b16 %v2058
    %v2240 = vunpack.c.l.b16 %v2059
    %v2241 = vunpack.c.h.b16 %v2059
    %v2242 = vunpack.c.l.b16 %v2060
    %v2243 = vunpack.c.h.b16 %v2060
    %v2244 = vunpack.c.l.b16 %v2061
    %v2245 = vunpack.c.h.b16 %v2061
    %v2246 = vunpack.c.l.b16 %v2062
    %v2247 = vunpack.c.h.b16 %v2062
    %v2248 = vunpack.c.l.b16 %v2063
    %v2249 = vunpack.c.h.b16 %v2063
    %v2250 = vunpack.c.l.b16 %v2064
    %v2251 = vunpack.c.h.b16 %v2064
    %v2252 = vunpack.c.l.b16 %v2065
    %v2253 = vunpack.c.h.b16 %v2065
    %v2254 = vunpack.c.l.b16 %v2066
    %v2255 = vunpack.c.h.b16 %v2066
    %v2256 = vunpack.c.l.b16 %v2067
    %v2257 = vunpack.c.h.b16 %v2067
    %v2258 = vunpack.c.l.b16 %v2068
    %v2259 = vunpack.c.h.b16 %v2068
    %v2260 = vunpack.c.l.b16 %v2069
    %v2261 = vunpack.c.h.b16 %v2069
    %v2262 = vpack.c.b16 %v2142, %v2134
    %v2263 = vpack.c.b16 %v2143, %v2135
    %v2264 = vpack.c.b16 %v2144, %v2136
    %v2265 = vpack.c.b16 %v2145, %v2137
    %v2266 = vpack.c.b16 %v2146, %v2138
    %v2267 = vpack.c.b16 %v2147, %v2139
    %v2268 = vpack.c.b16 %v2148, %v2140
    %v2269 = vpack.c.b16 %v2149, %v2141
    %v2270 = vpack.c.b16 %v2158, %v2150
    %v2271 = vpack.c.b16 %v2159, %v2151
    %v2272 = vpack.c.b16 %v2160, %v2152
    %v2273 = vpack.c.b16 %v2161, %v2153
    %v2274 = vpack.c.b16 %v2162, %v2154
    %v2275 = vpack.c.b16 %v2163, %v2155
    %v2276 = vpack.c.b16 %v2164, %v2156
    %v2277 = vpack.c.b16 %v2165, %v2157
    %v2278 = vpack.c.b16 %v2174, %v2166
    %v2279 = vpack.c.b16 %v2175, %v2167
    %v2280 = vpack.c.b16 %v2176, %v2168
    %v2281 = vpack.c.b16 %v2177, %v2169
    %v2282 = vpack.c.b16 %v2178, %v2170
    %v2283 = vpack.c.b16 %v2179, %v2171
    %v2284 = vpack.c.b16 %v2180, %v2172
    %v2285 = vpack.c.b16 %v2181, %v2173
    %v2286 = vpack.c.b16 %v2190, %v2182
    %v2287 = vpack.c.b16 %v2191, %v2183
    %v2288 = vpack.c.b16 %v2192, %v2184
    %v2289 = vpack.c.b16 %v2193, %v2185
    %v2290 = vpack.c.b16 %v2194, %v2186
    %v2291 = vpack.c.b16 %v2195, %v2187
    %v2292 = vpack.c.b16 %v2196, %v2188
    %v2293 = vpack.c.b16 %v2197, %v2189
    %v2294 = vpack.c.b16 %v2206, %v2198
    %v2295 = vpack.c.b16 %v2207, %v2199
    %v2296 = vpack.c.b16 %v2208, %v2200
    %v2297 = vpack.c.b16 %v2209, %v2201
    %v2298 = vpack.c.b16 %v2210, %v2202
    %v2299 = vpack.c.b16 %v2211, %v2203
    %v2300 = vpack.c.b16 %v2212, %v2204
    %v2301 = vpack.c.b16 %v2213, %v2205
    %v2302 = vpack.c.b16 %v2222, %v2214
    %v2303 = vpack.c.b16 %v2223, %v2215
    %v2304 = vpack.c.b16 %v2224, %v2216
    %v2305 = vpack.c.b16 %v2225, %v2217
    %v2306 = vpack.c.b16 %v2226, %v2218
    %v2307 = vpack.c.b16 %v2227, %v2219
    %v2308 = vpack.c.b16 %v2228, %v2220
    %v2309 = vpack.c.b16 %v2229, %v2221
    %v2310 = vpack.c.b16 %v2238, %v2230
    %v2311 = vpack.c.b16 %v2239, %v2231
    %v2312 = vpack.c.b16 %v2240, %v2232
    %v2313 = vpack.c.b16 %v2241, %v2233
    %v2314 = vpack.c.b16 %v2242, %v2234
    %v2315 = vpack.c.b16 %v2243, %v2235
    %v2316 = vpack.c.b16 %v2244, %v2236
    %v2317 = vpack.c.b16 %v2245, %v2237
    %v2318 = vpack.c.b16 %v2254, %v2246
    %v2319 = vpack.c.b16 %v2255, %v2247
    %v2320 = vpack.c.b16 %v2256, %v2248
    %v2321 = vpack.c.b16 %v2257, %v2249
    %v2322 = vpack.c.b16 %v2258, %v2250
    %v2323 = vpack.c.b16 %v2259, %v2251
    %v2324 = vpack.c.b16 %v2260, %v2252
    %v2325 = vpack.c.b16 %v2261, %v2253
    %2390 = vmatpush.bf16.msra.mxu0 %v2318
    %2391 = vmatpush.bf16.msra.mxu0 %v2310
    %2392 = vmatpush.bf16.msra.mxu0 %v2302
    %2393 = vmatpush.bf16.msra.mxu0 %v2294
    %2394 = vmatpush.bf16.msra.mxu0 %v2286
    %2395 = vmatpush.bf16.msra.mxu0 %v2278
    %2396 = vmatpush.bf16.msra.mxu0 %v2270
    %2397 = vmatpush.bf16.msra.mxu0 %v2262
    %2398 = vmatmul.bf16.gmra.mxu0 %v2005
    %v2399 = vpop.f32.mrf.mxu0
    %v2400 = vadd.f32 0.0, %v2399
    %v2401 = vpop.f32.mrf.mxu0
    %v2402 = vadd.f32 0.0, %v2401
    %2403 = vdwg.mxu0
    %2404 = vmatpush.bf16.msra.mxu0 %v2319
    %2405 = vmatpush.bf16.msra.mxu0 %v2311
    %2406 = vmatpush.bf16.msra.mxu0 %v2303
    %2407 = vmatpush.bf16.msra.mxu0 %v2295
    %2408 = vmatpush.bf16.msra.mxu0 %v2287
    %2409 = vmatpush.bf16.msra.mxu0 %v2279
    %2410 = vmatpush.bf16.msra.mxu0 %v2271
    %2411 = vmatpush.bf16.msra.mxu0 %v2263
    %2412 = vmatmul.bf16.gmra.mxu0 %v2005
    %v2413 = vpop.f32.mrf.mxu0
    %v2414 = vadd.f32 0.0, %v2413
    %v2415 = vpop.f32.mrf.mxu0
    %v2416 = vadd.f32 0.0, %v2415
    %2417 = vdwg.mxu0
    %2418 = vmatpush.bf16.msra.mxu0 %v2320
    %2419 = vmatpush.bf16.msra.mxu0 %v2312
    %2420 = vmatpush.bf16.msra.mxu0 %v2304
    %2421 = vmatpush.bf16.msra.mxu0 %v2296
    %2422 = vmatpush.bf16.msra.mxu0 %v2288
    %2423 = vmatpush.bf16.msra.mxu0 %v2280
    %2424 = vmatpush.bf16.msra.mxu0 %v2272
    %2425 = vmatpush.bf16.msra.mxu0 %v2264
    %2426 = vmatmul.bf16.gmra.mxu0 %v2005
    %v2427 = vpop.f32.mrf.mxu0
    %v2428 = vadd.f32 0.0, %v2427
    %v2429 = vpop.f32.mrf.mxu0
    %v2430 = vadd.f32 0.0, %v2429
    %2431 = vdwg.mxu0
    %2432 = vmatpush.bf16.msra.mxu0 %v2321
    %2433 = vmatpush.bf16.msra.mxu0 %v2313
    %2434 = vmatpush.bf16.msra.mxu0 %v2305
    %2435 = vmatpush.bf16.msra.mxu0 %v2297
    %2436 = vmatpush.bf16.msra.mxu0 %v2289
    %2437 = vmatpush.bf16.msra.mxu0 %v2281
    %2438 = vmatpush.bf16.msra.mxu0 %v2273
    %2439 = vmatpush.bf16.msra.mxu0 %v2265
    %2440 = vmatmul.bf16.gmra.mxu0 %v2005
    %v2441 = vpop.f32.mrf.mxu0
    %v2442 = vadd.f32 0.0, %v2441
    %v2443 = vpop.f32.mrf.mxu0
    %v2444 = vadd.f32 0.0, %v2443
    %2445 = vdwg.mxu0
    %2446 = vmatpush.bf16.msra.mxu0 %v2322
    %2447 = vmatpush.bf16.msra.mxu0 %v2314
    %2448 = vmatpush.bf16.msra.mxu0 %v2306
    %2449 = vmatpush.bf16.msra.mxu0 %v2298
    %2450 = vmatpush.bf16.msra.mxu0 %v2290
    %2451 = vmatpush.bf16.msra.mxu0 %v2282
    %2452 = vmatpush.bf16.msra.mxu0 %v2274
    %2453 = vmatpush.bf16.msra.mxu0 %v2266
    %2454 = vmatmul.bf16.gmra.mxu0 %v2005
    %v2455 = vpop.f32.mrf.mxu0
    %v2456 = vadd.f32 0.0, %v2455
    %v2457 = vpop.f32.mrf.mxu0
    %v2458 = vadd.f32 0.0, %v2457
    %2459 = vdwg.mxu0
    %2460 = vmatpush.bf16.msra.mxu0 %v2323
    %2461 = vmatpush.bf16.msra.mxu0 %v2315
    %2462 = vmatpush.bf16.msra.mxu0 %v2307
    %2463 = vmatpush.bf16.msra.mxu0 %v2299
    %2464 = vmatpush.bf16.msra.mxu0 %v2291
    %2465 = vmatpush.bf16.msra.mxu0 %v2283
    %2466 = vmatpush.bf16.msra.mxu0 %v2275
    %2467 = vmatpush.bf16.msra.mxu0 %v2267
    %2468 = vmatmul.bf16.gmra.mxu0 %v2005
    %v2469 = vpop.f32.mrf.mxu0
    %v2470 = vadd.f32 0.0, %v2469
    %v2471 = vpop.f32.mrf.mxu0
    %v2472 = vadd.f32 0.0, %v2471
    %2473 = vdwg.mxu0
    %2474 = vmatpush.bf16.msra.mxu0 %v2324
    %2475 = vmatpush.bf16.msra.mxu0 %v2316
    %2476 = vmatpush.bf16.msra.mxu0 %v2308
    %2477 = vmatpush.bf16.msra.mxu0 %v2300
    %2478 = vmatpush.bf16.msra.mxu0 %v2292
    %2479 = vmatpush.bf16.msra.mxu0 %v2284
    %2480 = vmatpush.bf16.msra.mxu0 %v2276
    %2481 = vmatpush.bf16.msra.mxu0 %v2268
    %2482 = vmatmul.bf16.gmra.mxu0 %v2005
    %v2483 = vpop.f32.mrf.mxu0
    %v2484 = vadd.f32 0.0, %v2483
    %v2485 = vpop.f32.mrf.mxu0
    %v2486 = vadd.f32 0.0, %v2485
    %2487 = vdwg.mxu0
    %2488 = vmatpush.bf16.msra.mxu0 %v2325
    %2489 = vmatpush.bf16.msra.mxu0 %v2317
    %2490 = vmatpush.bf16.msra.mxu0 %v2309
    %2491 = vmatpush.bf16.msra.mxu0 %v2301
    %2492 = vmatpush.bf16.msra.mxu0 %v2293
    %2493 = vmatpush.bf16.msra.mxu0 %v2285
    %2494 = vmatpush.bf16.msra.mxu0 %v2277
    %2495 = vmatpush.bf16.msra.mxu0 %v2269
    %2496 = vmatmul.bf16.gmra.mxu0 %v2005
    %v2497 = vpop.f32.mrf.mxu0
    %v2498 = vadd.f32 0.0, %v2497
    %v2499 = vpop.f32.mrf.mxu0
    %v2500 = vadd.f32 0.0, %v2499
    %2501 = vdwg.mxu0
    %v2502 = vadd.f32 %v2400, 0.0
    %v2504 = vrot.slane %v2414, 1
    %v2506 = vadd.f32 %v2502, %v2504
    %v2508 = vrot.slane %v2428, 2
    %v2510 = vadd.f32 %v2506, %v2508
    %v2512 = vrot.slane %v2442, 3
    %v2514 = vadd.f32 %v2510, %v2512
    %v2516 = vrot.slane %v2456, 4
    %v2518 = vadd.f32 %v2514, %v2516
    %v2520 = vrot.slane %v2470, 5
    %v2522 = vadd.f32 %v2518, %v2520
    %v2524 = vrot.slane %v2484, 6
    %v2526 = vadd.f32 %v2522, %v2524
    %v2528 = vrot.slane %v2498, 7
    %v2530 = vadd.f32 %v2526, %v2528
    %v2531 = vadd.f32 %v2402, 0.0
    %v2533 = vrot.slane %v2416, 1
    %v2535 = vadd.f32 %v2531, %v2533
    %v2537 = vrot.slane %v2430, 2
    %v2539 = vadd.f32 %v2535, %v2537
    %v2541 = vrot.slane %v2444, 3
    %v2543 = vadd.f32 %v2539, %v2541
    %v2545 = vrot.slane %v2458, 4
    %v2547 = vadd.f32 %v2543, %v2545
    %v2549 = vrot.slane %v2472, 5
    %v2551 = vadd.f32 %v2547, %v2549
    %v2553 = vrot.slane %v2486, 6
    %v2555 = vadd.f32 %v2551, %v2553
    %v2557 = vrot.slane %v2500, 7
    %v2559 = vadd.f32 %v2555, %v2557
    %v2561 = vrot.slane %v2559, 7
    %vm2563 = vcmask 1040384
    %v2564 = vsel %vm2563, %v2530, %v2561
    %v2565 = vld [vmem:[#allocation29] sm:$0x1]
    %v2567 = vperm.slane %v2565, 0
    %v2569 = vadd.f32 %v2564, %v2567
    %2570 = vst [vmem:[#allocation31] sm:$0x3] %v2569
    // Predicated region
    $region186: #{microtransformer_forward.1} parent=1 // pred_check
      _
    $region187: #{microtransformer_forward.1} parent=1 // pred_check_branch
      %2572 = sbr.rel (0) target = $region189
    $region188: #{microtransformer_forward.1} parent=1 // pred_region
      %2574 = vsyncadd [#allocation4], 0
      %s2576 = sshll.u32 [#allocation31], 4
      %s2577 = int_to_ptr.vmem [resolvable:$true] %s2576
      %s2578 = sshll.u32 %s28, 4
      %s2579 = int_to_ptr.hbm [resolvable:$true] %s2578
      %2581 = dma.vmem_to_hbm [thread:$0]  %s2577, 32, %s2579, [#allocation4]
    $region189: #{microtransformer_forward.1} parent=1 // pred_fallthru
      _
    // Predicated region
    $region190: #{microtransformer_forward.1} parent=1 // pred_check
      _
    $region191: #{microtransformer_forward.1} parent=1 // pred_check_branch
      %2583 = sbr.rel (0) target = $region193
    $region192: #{microtransformer_forward.1} parent=1 // pred_region
      %2585 = dma.done [#allocation4], 32
    $region193: #{microtransformer_forward.1} parent=1 // pred_fallthru
      _
    %2586 = vsyncpa [#allocation3], 1
    %2587 = vsyncpa [#allocation6], 1
    %2588 = vsyncpa [#allocation9], 1
    %2589 = vsyncpa [#allocation12], 1
    %2590 = vsyncpa [#allocation15], 1
    %2591 = vsyncpa [#allocation18], 1
    %2592 = vsyncpa [#allocation21], 1
    %2593 = vsyncpa [#allocation24], 1
    %2594 = vsyncpa [#allocation27], 1
    %2595 = vsyncpa [#allocation30], 1
    %2596 = vsyncpa [#allocation4], 1

</llo_original>
